<compile_context>
chip_gen: v5e
topology: v5e:2x2
jax: 0.10.0
libtpu: 0.0.40
codegen_flags: <defaults>
</compile_context>

<pallas_src>
import functools

import jax
import jax.numpy as jnp
from jax.experimental import pallas as pl
from jax.experimental.pallas import tpu as pltpu

# TODO(synk): PyTorch nn.LayerNorm default eps=1e-5 assumed; some annotated-transformer
# LayerNorm variants use 1e-6 — swap if matching an exact reference.
LN_EPS = 1e-5


# --------------------------------------------------------------------------
# plain-JAX glue: farthest point sampling + ball-query grouping
# --------------------------------------------------------------------------
def farthest_point_sampling(xyz, ratio):
    """xyz: [B, N, 3] -> xyz_fps: [B, S, 3], idx: [B, S]."""
    B, N, _ = xyz.shape
    S = max(1, int(N * ratio))

    def fps_one(pts):
        def body(i, state):
            idxs, dists = state
            last = pts[idxs[i - 1]]
            d = jnp.sum((pts - last) ** 2, axis=-1)
            dists = jnp.minimum(dists, d)
            nxt = jnp.argmax(dists).astype(jnp.int32)
            return idxs.at[i].set(nxt), dists

        # TODO(synk): torch_geometric fps uses a random start; we use index 0 (deterministic).
        idxs0 = jnp.zeros((S,), jnp.int32)
        dists0 = jnp.full((N,), 1e10, jnp.float32)
        idxs, _ = jax.lax.fori_loop(1, S, body, (idxs0, dists0))
        return idxs

    idx = jax.vmap(fps_one)(xyz)
    xyz_fps = jnp.take_along_axis(xyz, idx[..., None], axis=1)
    return xyz_fps, idx


def sampling_and_group(xyz, xyz_fps, features, radius, n_sample):
    """PointNet++ MSG ball query + grouping, emitted K-major: [B, K, S, in_channel + 3]."""
    B, N, _ = xyz.shape
    S = xyz_fps.shape[1]
    sqr = jnp.sum((xyz_fps[:, :, None, :] - xyz[:, None, :, :]) ** 2, axis=-1)  # [B,S,N]
    ar = jnp.broadcast_to(jnp.arange(N, dtype=jnp.int32), (B, S, N))
    gidx = jnp.where(sqr > radius * radius, N, ar)
    gidx = jnp.sort(gidx, axis=-1)[:, :, :n_sample]                             # [B,S,K]
    first = gidx[:, :, :1]
    first = jnp.where(first == N, 0, first)
    gidx = jnp.where(gidx == N, first, gidx)

    # K-major gather: the only transpose happens on the tiny int32 index array,
    # so the big grouped tensor is produced directly in the kernel-friendly layout.
    gidx_km = jnp.transpose(gidx, (0, 2, 1))                                    # [B,K,S]
    gather = jax.vmap(lambda pts, idx: pts[idx])                                # [N,C],[K,S]->[K,S,C]
    grouped_xyz = gather(xyz, gidx_km) - xyz_fps[:, None, :, :]                 # [B,K,S,3]
    grouped_feat = gather(features, gidx_km)                                    # [B,K,S,Cf]
    # TODO(synk): channel order [features, relative_xyz] follows PointNetSetAbstractionMsg;
    # swap if the reference sampling_and_group uses [xyz, features].
    return jnp.concatenate([grouped_feat, grouped_xyz], axis=-1)                # [B,K,S,Cin]


# --------------------------------------------------------------------------
# fused per-branch Pallas kernel
# --------------------------------------------------------------------------
def _full_spec(a):
    nd = a.ndim
    return pl.BlockSpec(a.shape, lambda b, _nd=nd: (0,) * _nd)


def _layer_norm(v, g, b, eps):
    mu = jnp.mean(v, axis=-1, keepdims=True)
    var = jnp.mean((v - mu) ** 2, axis=-1, keepdims=True)
    return (v - mu) * jax.lax.rsqrt(var + eps) * g + b


def make_branch_kernel(K, n_mlp, n_enc, num_heads, qkv_blk, eps=LN_EPS):
    """Fused MSG branch: shared MLP + max over K, pre-norm encoder stack, final LN,
    use_cat concat. Processes `nb` batch elements per grid step; activations never
    leave VMEM/vregs."""

    def kernel(g_ref, vec_ref, *rest):
        out_ref = rest[-1]
        conv_ws = rest[:n_mlp]
        wqkv_ref, wo_ref, w1_ref, w2_ref = rest[n_mlp:n_mlp + 4]

        nb, KS, cin = g_ref.shape
        S = KS // K
        d_model = wo_ref.shape[-1]
        dk = d_model // num_heads
        scale = 1.0 / float(dk) ** 0.5
        blk = qkv_blk

        # packed small vectors: conv biases, per-layer encoder biases/LN params, final LN
        row = [0]

        def vec(width):
            v = vec_ref[row[0]:row[0] + 1, 0:width]          # [1, width] f32
            row[0] += 1
            return v

        # ---- PointNet shared MLP: ONE matmul per layer over ALL nb*K*S grouped rows ----
        xb = g_ref[...].reshape(nb * KS, cin)                # bf16 grouped points
        x = None
        for l in range(n_mlp):
            w = conv_ws[l][...]                              # bf16 [Cin_l, Cout_l]
            b = vec(w.shape[1])
            x = jnp.dot(xb, w, preferred_element_type=jnp.float32) + b
            x = jnp.maximum(x, 0.0)                          # f32 ReLU (v5e-safe)
            xb = x.astype(jnp.bfloat16)

        # ---- max over the K neighbours: log2(K)-deep pairwise VPU tree ----
        x4 = x.reshape(nb, K, S, d_model)
        slabs = [x4[:, k] for k in range(K)]                 # each [nb, S, D] f32
        while len(slabs) > 1:
            nxt = [jnp.maximum(slabs[i], slabs[i + 1])
                   for i in range(0, len(slabs) - 1, 2)]
            if len(slabs) % 2:
                nxt.append(slabs[-1])
            slabs = nxt
        maxed = slabs[0]                                     # [nb, S, D] f32

        # ---- pre-norm transformer encoder stack over nb*S token rows ----
        xx = maxed.reshape(nb * S, d_model)
        for li in range(n_enc):
            wqkv = wqkv_ref[li]                              # bf16 [D, 3*blk]
            wo = wo_ref[li]                                  # bf16 [D, D]
            w1 = w1_ref[li]                                  # bf16 [D, d_ff]
            w2 = w2_ref[li]                                  # bf16 [d_ff, D]
            bqkv = vec(3 * blk)
            bo, ln1g, ln1b = vec(d_model), vec(d_model), vec(d_model)
            b1 = vec(w1.shape[-1])
            b2, ln2g, ln2b = vec(d_model), vec(d_model), vec(d_model)

            # -- multi-head self-attention sublayer --
            xn = _layer_norm(xx, ln1g, ln1b, eps)
            # fused QKV projection: one [nb*S, D] x [D, 3*blk] matmul, one bias add,
            # one f32->bf16 cast; q/k/v segments start at 128-aligned lane offsets.
            qkv = jnp.dot(xn.astype(jnp.bfloat16), wqkv,
                          preferred_element_type=jnp.float32) + bqkv
            qkvb = qkv.astype(jnp.bfloat16)
            q = qkvb[:, 0:d_model]
            kk = qkvb[:, blk:blk + d_model]
            vv = qkvb[:, 2 * blk:2 * blk + d_model]

            # TODO(synk): per-head dk-wide lane slices below remain (within one 128-lane
            # segment); switch to a pltpu.einshape head split if profiling shows XLU cost.
            heads = []
            for h in range(num_heads):
                sl = slice(h * dk, (h + 1) * dk)
                qh = q[:, sl].reshape(nb, S, dk)
                kh = kk[:, sl].reshape(nb, S, dk)
                vh = vv[:, sl].reshape(nb, S, dk)
                s = jnp.einsum('bqd,bkd->bqk', qh, kh,
                               preferred_element_type=jnp.float32) * scale
                s = s - jnp.max(s, axis=-1, keepdims=True)   # f32 softmax math
                p = jnp.exp(s)
                p = p * pl.reciprocal(jnp.sum(p, axis=-1, keepdims=True), approx=True)
                heads.append(jnp.einsum('bqk,bkd->bqd', p.astype(jnp.bfloat16), vh,
                                        preferred_element_type=jnp.float32))
            attn = jnp.concatenate(heads, axis=-1).reshape(nb * S, d_model)
            # single consolidated output projection over all nb*S rows
            attn_out = jnp.dot(attn.astype(jnp.bfloat16), wo,
                               preferred_element_type=jnp.float32) + bo
            xx = xx + attn_out

            # -- feed-forward sublayer --
            xn2 = _layer_norm(xx, ln2g, ln2b, eps)
            h1 = jnp.maximum(
                jnp.dot(xn2.astype(jnp.bfloat16), w1,
                        preferred_element_type=jnp.float32) + b1, 0.0)
            h2 = jnp.dot(h1.astype(jnp.bfloat16), w2,
                         preferred_element_type=jnp.float32) + b2
            xx = xx + h2

        # ---- final encoder LayerNorm + use_cat concat (lane-dense 2*D output) ----
        fg, fb = vec(d_model), vec(d_model)
        xf = _layer_norm(xx, fg, fb, eps)
        out_ref[...] = jnp.concatenate(
            [maxed, xf.reshape(nb, S, d_model)], axis=-1)    # [nb, S, 2*D]

    return kernel


def _pick_nb(B, S, K, target_rows=256, vmem_budget_bytes=8 << 20):
    """Largest divisor of B with nb*S <= target_rows and grouped VMEM block within budget."""
    per_b = K * S * 128 * 2 * 2   # bf16 grouped block, lane-padded to 128, double-buffered
    cap = max(1, vmem_budget_bytes // per_b)
    nb = 1
    for cand in range(1, B + 1):
        if B % cand == 0 and cand * S <= target_rows and cand <= cap:
            nb = cand
    return nb


def _pack_rows(vecs, width):
    rows = [jnp.pad(jnp.asarray(v, jnp.float32).reshape(-1),
                    (0, width - int(v.size))) for v in vecs]
    pad = (-len(rows)) % 8
    rows += [jnp.zeros((width,), jnp.float32)] * pad
    return jnp.stack(rows, axis=0)                            # [rows_pad, width]


def _vmem_limit_bytes():
    try:
        cap = int(pltpu.get_tpu_info().vmem_capacity_bytes)
    except Exception:
        cap = 64 * 1024 * 1024
    # leave headroom below physical VMEM; ~100 MiB on v5e/v6e, ~48 MiB on v7x
    return max(32 << 20, min(cap - (16 << 20), 100 << 20))


def branch_forward(grouped_bksc, br, num_heads):
    """grouped_bksc: [B, K, S, Cin] (K-major) -> [B, S, 2*d_model] (fused branch)."""
    B, K, S, Cin = grouped_bksc.shape
    n_mlp = len(br["conv_w"])
    layers = br["encoder"]["layers"]
    n_enc = len(layers)
    d_model = br["conv_w"][-1].shape[1]
    d_ff = layers[0]["w1"].shape[1]
    blk = ((d_model + 127) // 128) * 128                      # 128-aligned q/k/v segments

    nb = _pick_nb(B, S, K)

    # grouped points: free reshape to [B, K*S, Cin] (already K-major), bf16 halves DMA bytes
    gksc = grouped_bksc.reshape(B, K * S, Cin).astype(jnp.bfloat16)

    # fused, 128-aligned QKV weights/biases + stacked per-layer encoder weights
    wqkv_list, bqkv_rows, wo_list, w1_list, w2_list = [], [], [], [], []
    for lp in layers:
        wl = jnp.zeros((d_model, 3 * blk), jnp.float32)
        wl = wl.at[:, 0:d_model].set(lp["wq"])
        wl = wl.at[:, blk:blk + d_model].set(lp["wk"])
        wl = wl.at[:, 2 * blk:2 * blk + d_model].set(lp["wv"])
        bl = jnp.zeros((3 * blk,), jnp.float32)
        bl = bl.at[0:d_model].set(lp["bq"].reshape(-1))
        bl = bl.at[blk:blk + d_model].set(lp["bk"].reshape(-1))
        bl = bl.at[2 * blk:2 * blk + d_model].set(lp["bv"].reshape(-1))
        wqkv_list.append(wl)
        bqkv_rows.append(bl)
        wo_list.append(lp["wo"])
        w1_list.append(lp["w1"])
        w2_list.append(lp["w2"])
    wqkv = jnp.stack(wqkv_list).astype(jnp.bfloat16)          # [n_enc, D, 3*blk]
    wo = jnp.stack(wo_list).astype(jnp.bfloat16)              # [n_enc, D, D]
    w1 = jnp.stack(w1_list).astype(jnp.bfloat16)              # [n_enc, D, d_ff]
    w2 = jnp.stack(w2_list).astype(jnp.bfloat16)              # [n_enc, d_ff, D]
    conv_ws = [w.astype(jnp.bfloat16) for w in br["conv_w"]]

    # pack every small bias / LN vector into one padded VMEM array (one DMA window)
    vec_list = list(br["conv_b"])
    for li, lp in enumerate(layers):
        vec_list += [bqkv_rows[li], lp["bo"], lp["ln1g"], lp["ln1b"],
                     lp["b1"], lp["b2"], lp["ln2g"], lp["ln2b"]]
    vec_list += [br["encoder"]["final_g"], br["encoder"]["final_b"]]
    wpad = max(int(v.size) for v in vec_list)
    wpad = ((wpad + 127) // 128) * 128
    vec_pack = _pack_rows(vec_list, wpad)

    # TODO(synk): single-buffer the resident weight operands (pipeline_mode=pl.Buffered(1))
    # once verified on the target jax version; kept default-buffered here for compile safety.
    weights = conv_ws + [wqkv, wo, w1, w2]
    in_specs = [pl.BlockSpec((nb, K * S, Cin), lambda b: (b, 0, 0)),
                _full_spec(vec_pack)] + [_full_spec(w) for w in weights]

    # advisory cost estimate so XLA schedules the FPS / ball-query glue around the kernel
    dk = d_model // num_heads
    flops = 0
    for w in br["conv_w"]:
        flops += 2 * B * K * S * int(w.shape[0]) * int(w.shape[1])
    per_layer = (2 * B * S * d_model * 3 * blk
                 + 2 * B * S * d_model * d_model
                 + 4 * B * S * d_model * d_ff
                 + 4 * B * num_heads * S * S * dk)
    flops += n_enc * per_layer
    transcendentals = n_enc * B * num_heads * S * S
    bytes_accessed = int(gksc.size) * 2 + int(vec_pack.size) * 4 \
        + sum(int(w.size) * 2 for w in weights) + B * S * 2 * d_model * 4

    # TODO(synk): for v7x with tiny B, add a second parallel grid axis (query tiles) so
    # both TensorCores stay busy; single batch axis kept here for simplicity.
    return pl.pallas_call(
        make_branch_kernel(K, n_mlp, n_enc, num_heads, blk),
        out_shape=jax.ShapeDtypeStruct((B, S, 2 * d_model), jnp.float32),
        grid=(B // nb,),
        in_specs=in_specs,
        out_specs=pl.BlockSpec((nb, S, 2 * d_model), lambda b: (b, 0, 0)),
        compiler_params=pltpu.CompilerParams(
            dimension_semantics=("parallel",),
            vmem_limit_bytes=_vmem_limit_bytes()),
        cost_estimate=pl.CostEstimate(flops=int(flops),
                                      transcendentals=int(transcendentals),
                                      bytes_accessed=int(bytes_accessed)),
    )(gksc, vec_pack, *weights)


# --------------------------------------------------------------------------
# parameter construction (deterministic, BN folded into the 1x1 convs, eval mode)
# --------------------------------------------------------------------------
def _fold_bn(w, b, gamma, beta, mean, var, eps=1e-5):
    scale = gamma / jnp.sqrt(var + eps)
    return w * scale[None, :], (b - mean) * scale + beta


def init_params(key, pn_cfg, attn_cfg):
    d_model = attn_cfg["d_model"]
    d_ff = attn_cfg["d_ff"]
    branches = []
    for mlp in pn_cfg["mlp_list"]:
        channels = [pn_cfg["in_channel"] + 3] + list(mlp)   # == channels.insert(0, in_channel+3)
        assert channels[-1] == d_model, "last MLP channel must equal d_model (input_linear_transform=None)"
        conv_w, conv_b = [], []
        for l in range(len(channels) - 1):
            key, k1, k2, k3, k4, k5 = jax.random.split(key, 6)
            cin, cout = channels[l], channels[l + 1]
            w = 0.1 * jax.random.normal(k1, (cin, cout), jnp.float32)
            b = 0.01 * jax.random.normal(k2, (cout,), jnp.float32)
            gamma = 1.0 + 0.1 * jax.random.normal(k3, (cout,), jnp.float32)
            beta = 0.1 * jax.random.normal(k4, (cout,), jnp.float32)
            mean = 0.1 * jax.random.normal(k5, (cout,), jnp.float32)
            var = jnp.ones((cout,), jnp.float32)
            wf, bf = _fold_bn(w, b, gamma, beta, mean, var)
            conv_w.append(wf)
            conv_b.append(bf.reshape(1, cout))

        layers = []
        for _ in range(attn_cfg["N"]):
            lp = {}
            for name, shape in [("wq", (d_model, d_model)), ("wk", (d_model, d_model)),
                                ("wv", (d_model, d_model)), ("wo", (d_model, d_model)),
                                ("w1", (d_model, d_ff)), ("w2", (d_ff, d_model))]:
                key, k1 = jax.random.split(key)
                lp[name] = (0.5 / (shape[0] ** 0.5)) * jax.random.normal(k1, shape, jnp.float32)
            for name, dim in [("bq", d_model), ("bk", d_model), ("bv", d_model),
                              ("bo", d_model), ("b1", d_ff), ("b2", d_model)]:
                lp[name] = jnp.zeros((1, dim), jnp.float32)
            lp["ln1g"] = jnp.ones((1, d_model), jnp.float32)
            lp["ln1b"] = jnp.zeros((1, d_model), jnp.float32)
            lp["ln2g"] = jnp.ones((1, d_model), jnp.float32)
            lp["ln2b"] = jnp.zeros((1, d_model), jnp.float32)
            layers.append(lp)
        enc = {"layers": layers,
               "final_g": jnp.ones((1, d_model), jnp.float32),
               "final_b": jnp.zeros((1, d_model), jnp.float32)}
        branches.append({"conv_w": conv_w, "conv_b": conv_b, "encoder": enc})
    return {"branches": branches}


# --------------------------------------------------------------------------
# full forward pass
# --------------------------------------------------------------------------
def transformer_pointnet_sa_msg(xyz, features, params, pn_cfg, attn_cfg):
    # TODO(synk): for large N the FPS loop / ball-query sort dominate; they stay plain JAX here.
    xyz_fps, _ = farthest_point_sampling(xyz, pn_cfg["ratio"])
    new_points_list = []
    for i, _radius in enumerate(pn_cfg["radius_list"]):
        K = pn_cfg["max_sample_list"][i]
        grouped = sampling_and_group(xyz, xyz_fps, features, _radius, K)   # [B,K,S,Cin]
        new_points_list.append(
            branch_forward(grouped, params["branches"][i], attn_cfg["num_head"]))  # [B,S,2*D]
    new_xyz = xyz_fps
    # equivalent of torch.cat(new_points_list, dim=1).permute(0, 2, 1) in channels-last layout
    new_points_concat = jnp.concatenate(new_points_list, axis=-1)          # [B, S, sum(2*D_i)]
    return new_xyz, new_points_concat


# --------------------------------------------------------------------------
if __name__ == "__main__":
    PNConfig = {
        "ratio": 0.25,
        "radius_list": [0.5, 1.0],
        "max_sample_list": [8, 16],
        "mlp_list": [[32, 32, 64], [32, 48, 64]],
        "in_channel": 3,
    }
    AttentionConfig = {"d_model": 64, "d_ff": 128, "num_head": 4, "dropout": 0.0, "N": 1}

    key = jax.random.PRNGKey(0)
    kx, kf, kp = jax.random.split(key, 3)
    B, N = 2, 64
    xyz = jax.random.uniform(kx, (B, N, 3), jnp.float32)
    features = jax.random.normal(kf, (B, N, PNConfig["in_channel"]), jnp.float32)

    params = init_params(kp, PNConfig, AttentionConfig)

    fwd = jax.jit(functools.partial(transformer_pointnet_sa_msg,
                                    pn_cfg=PNConfig, attn_cfg=AttentionConfig))
    new_xyz, new_points = fwd(xyz, features, params)
    new_xyz = jax.block_until_ready(new_xyz)
    new_points = jax.block_until_ready(new_points)

    S = int(N * PNConfig["ratio"])
    expected_D = 2 * sum(m[-1] for m in PNConfig["mlp_list"])  # use_cat doubles each branch
    assert new_xyz.shape == (B, S, 3), new_xyz.shape
    assert new_points.shape == (B, S, expected_D), new_points.shape
    assert bool(jnp.all(jnp.isfinite(new_points)))

    print("KERNEL_OK")
</pallas_src>

<mosaic_0001>
module attributes {stable_mosaic.version = 11 : i64} {
  func.func @kernel(%arg0: i32, %arg1: memref<2x256x6xbf16, #tpu.memory_space<vmem>>, %arg2: memref<16x384xf32, #tpu.memory_space<vmem>>, %arg3: memref<6x32xbf16, #tpu.memory_space<vmem>>, %arg4: memref<32x48xbf16, #tpu.memory_space<vmem>>, %arg5: memref<48x64xbf16, #tpu.memory_space<vmem>>, %arg6: memref<1x64x384xbf16, #tpu.memory_space<vmem>>, %arg7: memref<1x64x64xbf16, #tpu.memory_space<vmem>>, %arg8: memref<1x64x128xbf16, #tpu.memory_space<vmem>>, %arg9: memref<1x128x64xbf16, #tpu.memory_space<vmem>>, %arg10: memref<2x16x128xf32, #tpu.memory_space<vmem>>) attributes {dimension_semantics = [#tpu.dimension_semantics<parallel>], iteration_bounds = array<i64: 1>, scalar_prefetch = 0 : i64, scratch_operands = 0 : i64, tpu.core_type = #tpu.core_type<tc>, window_params = [{transform_indices = @transform_0, window_bounds = array<i64: 2, 256, 6>}, {pipeline_mode = #tpu.pipeline_mode<synchronous>, transform_indices = @transform_1, window_bounds = array<i64: 16, 384>}, {pipeline_mode = #tpu.pipeline_mode<synchronous>, transform_indices = @transform_2, window_bounds = array<i64: 6, 32>}, {pipeline_mode = #tpu.pipeline_mode<synchronous>, transform_indices = @transform_3, window_bounds = array<i64: 32, 48>}, {pipeline_mode = #tpu.pipeline_mode<synchronous>, transform_indices = @transform_4, window_bounds = array<i64: 48, 64>}, {pipeline_mode = #tpu.pipeline_mode<synchronous>, transform_indices = @transform_5, window_bounds = array<i64: 1, 64, 384>}, {pipeline_mode = #tpu.pipeline_mode<synchronous>, transform_indices = @transform_6, window_bounds = array<i64: 1, 64, 64>}, {pipeline_mode = #tpu.pipeline_mode<synchronous>, transform_indices = @transform_7, window_bounds = array<i64: 1, 64, 128>}, {pipeline_mode = #tpu.pipeline_mode<synchronous>, transform_indices = @transform_8, window_bounds = array<i64: 1, 128, 64>}, {transform_indices = @transform_9, window_bounds = array<i64: 2, 16, 128>}]} {
    %c0 = arith.constant 0 : index
    %c0_0 = arith.constant 0 : index
    %c0_1 = arith.constant 0 : index
    %0 = vector.load %arg1[%c0, %c0_0, %c0_1] : memref<2x256x6xbf16, #tpu.memory_space<vmem>>, vector<2x256x6xbf16>
    %1 = vector.shape_cast %0 : vector<2x256x6xbf16> to vector<512x6xbf16>
    %c0_2 = arith.constant 0 : index
    %c0_3 = arith.constant 0 : index
    %2 = vector.load %arg3[%c0_2, %c0_3] : memref<6x32xbf16, #tpu.memory_space<vmem>>, vector<6x32xbf16>
    %c0_4 = arith.constant 0 : index
    %c0_5 = arith.constant 0 : index
    %3 = vector.load %arg2[%c0_4, %c0_5] : memref<16x384xf32, #tpu.memory_space<vmem>>, vector<1x32xf32>
    %cst = arith.constant dense<0.000000e+00> : vector<512x32xf32>
    %4 = tpu.matmul %1, %2, %cst {dimension_numbers = #tpu.dot_dimension_numbers<[1], [0], [0], [1], [0, 0, 1, 1], [], []>} : vector<512x6xbf16>, vector<6x32xbf16>, vector<512x32xf32> -> vector<512x32xf32>
    %5 = vector.broadcast %3 : vector<1x32xf32> to vector<512x32xf32>
    %6 = arith.addf %4, %5 : vector<512x32xf32>
    %cst_6 = arith.constant 0.000000e+00 : f32
    %7 = vector.broadcast %cst_6 : f32 to vector<512x32xf32>
    %8 = arith.maximumf %6, %7 : vector<512x32xf32>
    %9 = arith.truncf %8 : vector<512x32xf32> to vector<512x32xbf16>
    %c0_7 = arith.constant 0 : index
    %c0_8 = arith.constant 0 : index
    %10 = vector.load %arg4[%c0_7, %c0_8] : memref<32x48xbf16, #tpu.memory_space<vmem>>, vector<32x48xbf16>
    %c1 = arith.constant 1 : index
    %c0_9 = arith.constant 0 : index
    %11 = vector.load %arg2[%c1, %c0_9] : memref<16x384xf32, #tpu.memory_space<vmem>>, vector<1x48xf32>
    %cst_10 = arith.constant dense<0.000000e+00> : vector<512x48xf32>
    %12 = tpu.matmul %9, %10, %cst_10 {dimension_numbers = #tpu.dot_dimension_numbers<[1], [0], [0], [1], [0, 0, 1, 1], [], []>} : vector<512x32xbf16>, vector<32x48xbf16>, vector<512x48xf32> -> vector<512x48xf32>
    %13 = vector.broadcast %11 : vector<1x48xf32> to vector<512x48xf32>
    %14 = arith.addf %12, %13 : vector<512x48xf32>
    %cst_11 = arith.constant 0.000000e+00 : f32
    %15 = vector.broadcast %cst_11 : f32 to vector<512x48xf32>
    %16 = arith.maximumf %14, %15 : vector<512x48xf32>
    %17 = arith.truncf %16 : vector<512x48xf32> to vector<512x48xbf16>
    %c0_12 = arith.constant 0 : index
    %c0_13 = arith.constant 0 : index
    %18 = vector.load %arg5[%c0_12, %c0_13] : memref<48x64xbf16, #tpu.memory_space<vmem>>, vector<48x64xbf16>
    %c2 = arith.constant 2 : index
    %c0_14 = arith.constant 0 : index
    %19 = vector.load %arg2[%c2, %c0_14] : memref<16x384xf32, #tpu.memory_space<vmem>>, vector<1x64xf32>
    %cst_15 = arith.constant dense<0.000000e+00> : vector<512x64xf32>
    %20 = tpu.matmul %17, %18, %cst_15 {dimension_numbers = #tpu.dot_dimension_numbers<[1], [0], [0], [1], [0, 0, 1, 1], [], []>} : vector<512x48xbf16>, vector<48x64xbf16>, vector<512x64xf32> -> vector<512x64xf32>
    %21 = vector.broadcast %19 : vector<1x64xf32> to vector<512x64xf32>
    %22 = arith.addf %20, %21 : vector<512x64xf32>
    %cst_16 = arith.constant 0.000000e+00 : f32
    %23 = vector.broadcast %cst_16 : f32 to vector<512x64xf32>
    %24 = arith.maximumf %22, %23 : vector<512x64xf32>
    %25 = vector.shape_cast %24 : vector<512x64xf32> to vector<2x16x16x64xf32>
    %26 = vector.extract_strided_slice %25 {offsets = [0, 0, 0, 0], sizes = [2, 1, 16, 64], strides = [1, 1, 1, 1]} : vector<2x16x16x64xf32> to vector<2x1x16x64xf32>
    %27 = vector.shape_cast %26 : vector<2x1x16x64xf32> to vector<2x16x64xf32>
    %28 = vector.extract_strided_slice %25 {offsets = [0, 1, 0, 0], sizes = [2, 1, 16, 64], strides = [1, 1, 1, 1]} : vector<2x16x16x64xf32> to vector<2x1x16x64xf32>
    %29 = vector.shape_cast %28 : vector<2x1x16x64xf32> to vector<2x16x64xf32>
    %30 = vector.extract_strided_slice %25 {offsets = [0, 2, 0, 0], sizes = [2, 1, 16, 64], strides = [1, 1, 1, 1]} : vector<2x16x16x64xf32> to vector<2x1x16x64xf32>
    %31 = vector.shape_cast %30 : vector<2x1x16x64xf32> to vector<2x16x64xf32>
    %32 = vector.extract_strided_slice %25 {offsets = [0, 3, 0, 0], sizes = [2, 1, 16, 64], strides = [1, 1, 1, 1]} : vector<2x16x16x64xf32> to vector<2x1x16x64xf32>
    %33 = vector.shape_cast %32 : vector<2x1x16x64xf32> to vector<2x16x64xf32>
    %34 = vector.extract_strided_slice %25 {offsets = [0, 4, 0, 0], sizes = [2, 1, 16, 64], strides = [1, 1, 1, 1]} : vector<2x16x16x64xf32> to vector<2x1x16x64xf32>
    %35 = vector.shape_cast %34 : vector<2x1x16x64xf32> to vector<2x16x64xf32>
    %36 = vector.extract_strided_slice %25 {offsets = [0, 5, 0, 0], sizes = [2, 1, 16, 64], strides = [1, 1, 1, 1]} : vector<2x16x16x64xf32> to vector<2x1x16x64xf32>
    %37 = vector.shape_cast %36 : vector<2x1x16x64xf32> to vector<2x16x64xf32>
    %38 = vector.extract_strided_slice %25 {offsets = [0, 6, 0, 0], sizes = [2, 1, 16, 64], strides = [1, 1, 1, 1]} : vector<2x16x16x64xf32> to vector<2x1x16x64xf32>
    %39 = vector.shape_cast %38 : vector<2x1x16x64xf32> to vector<2x16x64xf32>
    %40 = vector.extract_strided_slice %25 {offsets = [0, 7, 0, 0], sizes = [2, 1, 16, 64], strides = [1, 1, 1, 1]} : vector<2x16x16x64xf32> to vector<2x1x16x64xf32>
    %41 = vector.shape_cast %40 : vector<2x1x16x64xf32> to vector<2x16x64xf32>
    %42 = vector.extract_strided_slice %25 {offsets = [0, 8, 0, 0], sizes = [2, 1, 16, 64], strides = [1, 1, 1, 1]} : vector<2x16x16x64xf32> to vector<2x1x16x64xf32>
    %43 = vector.shape_cast %42 : vector<2x1x16x64xf32> to vector<2x16x64xf32>
    %44 = vector.extract_strided_slice %25 {offsets = [0, 9, 0, 0], sizes = [2, 1, 16, 64], strides = [1, 1, 1, 1]} : vector<2x16x16x64xf32> to vector<2x1x16x64xf32>
    %45 = vector.shape_cast %44 : vector<2x1x16x64xf32> to vector<2x16x64xf32>
    %46 = vector.extract_strided_slice %25 {offsets = [0, 10, 0, 0], sizes = [2, 1, 16, 64], strides = [1, 1, 1, 1]} : vector<2x16x16x64xf32> to vector<2x1x16x64xf32>
    %47 = vector.shape_cast %46 : vector<2x1x16x64xf32> to vector<2x16x64xf32>
    %48 = vector.extract_strided_slice %25 {offsets = [0, 11, 0, 0], sizes = [2, 1, 16, 64], strides = [1, 1, 1, 1]} : vector<2x16x16x64xf32> to vector<2x1x16x64xf32>
    %49 = vector.shape_cast %48 : vector<2x1x16x64xf32> to vector<2x16x64xf32>
    %50 = vector.extract_strided_slice %25 {offsets = [0, 12, 0, 0], sizes = [2, 1, 16, 64], strides = [1, 1, 1, 1]} : vector<2x16x16x64xf32> to vector<2x1x16x64xf32>
    %51 = vector.shape_cast %50 : vector<2x1x16x64xf32> to vector<2x16x64xf32>
    %52 = vector.extract_strided_slice %25 {offsets = [0, 13, 0, 0], sizes = [2, 1, 16, 64], strides = [1, 1, 1, 1]} : vector<2x16x16x64xf32> to vector<2x1x16x64xf32>
    %53 = vector.shape_cast %52 : vector<2x1x16x64xf32> to vector<2x16x64xf32>
    %54 = vector.extract_strided_slice %25 {offsets = [0, 14, 0, 0], sizes = [2, 1, 16, 64], strides = [1, 1, 1, 1]} : vector<2x16x16x64xf32> to vector<2x1x16x64xf32>
    %55 = vector.shape_cast %54 : vector<2x1x16x64xf32> to vector<2x16x64xf32>
    %56 = vector.extract_strided_slice %25 {offsets = [0, 15, 0, 0], sizes = [2, 1, 16, 64], strides = [1, 1, 1, 1]} : vector<2x16x16x64xf32> to vector<2x1x16x64xf32>
    %57 = vector.shape_cast %56 : vector<2x1x16x64xf32> to vector<2x16x64xf32>
    %58 = arith.maximumf %27, %29 : vector<2x16x64xf32>
    %59 = arith.maximumf %31, %33 : vector<2x16x64xf32>
    %60 = arith.maximumf %35, %37 : vector<2x16x64xf32>
    %61 = arith.maximumf %39, %41 : vector<2x16x64xf32>
    %62 = arith.maximumf %43, %45 : vector<2x16x64xf32>
    %63 = arith.maximumf %47, %49 : vector<2x16x64xf32>
    %64 = arith.maximumf %51, %53 : vector<2x16x64xf32>
    %65 = arith.maximumf %55, %57 : vector<2x16x64xf32>
    %66 = arith.maximumf %58, %59 : vector<2x16x64xf32>
    %67 = arith.maximumf %60, %61 : vector<2x16x64xf32>
    %68 = arith.maximumf %62, %63 : vector<2x16x64xf32>
    %69 = arith.maximumf %64, %65 : vector<2x16x64xf32>
    %70 = arith.maximumf %66, %67 : vector<2x16x64xf32>
    %71 = arith.maximumf %68, %69 : vector<2x16x64xf32>
    %72 = arith.maximumf %70, %71 : vector<2x16x64xf32>
    %73 = vector.shape_cast %72 : vector<2x16x64xf32> to vector<32x64xf32>
    %c0_17 = arith.constant 0 : index
    %c0_18 = arith.constant 0 : index
    %c0_19 = arith.constant 0 : index
    %74 = vector.load %arg6[%c0_17, %c0_18, %c0_19] : memref<1x64x384xbf16, #tpu.memory_space<vmem>>, vector<1x64x384xbf16>
    %75 = vector.shape_cast %74 : vector<1x64x384xbf16> to vector<64x384xbf16>
    %c0_20 = arith.constant 0 : index
    %c0_21 = arith.constant 0 : index
    %c0_22 = arith.constant 0 : index
    %76 = vector.load %arg7[%c0_20, %c0_21, %c0_22] : memref<1x64x64xbf16, #tpu.memory_space<vmem>>, vector<1x64x64xbf16>
    %77 = vector.shape_cast %76 : vector<1x64x64xbf16> to vector<64x64xbf16>
    %c0_23 = arith.constant 0 : index
    %c0_24 = arith.constant 0 : index
    %c0_25 = arith.constant 0 : index
    %78 = vector.load %arg8[%c0_23, %c0_24, %c0_25] : memref<1x64x128xbf16, #tpu.memory_space<vmem>>, vector<1x64x128xbf16>
    %79 = vector.shape_cast %78 : vector<1x64x128xbf16> to vector<64x128xbf16>
    %c0_26 = arith.constant 0 : index
    %c0_27 = arith.constant 0 : index
    %c0_28 = arith.constant 0 : index
    %80 = vector.load %arg9[%c0_26, %c0_27, %c0_28] : memref<1x128x64xbf16, #tpu.memory_space<vmem>>, vector<1x128x64xbf16>
    %81 = vector.shape_cast %80 : vector<1x128x64xbf16> to vector<128x64xbf16>
    %c3 = arith.constant 3 : index
    %c0_29 = arith.constant 0 : index
    %82 = vector.load %arg2[%c3, %c0_29] : memref<16x384xf32, #tpu.memory_space<vmem>>, vector<1x384xf32>
    %c4 = arith.constant 4 : index
    %c0_30 = arith.constant 0 : index
    %83 = vector.load %arg2[%c4, %c0_30] : memref<16x384xf32, #tpu.memory_space<vmem>>, vector<1x64xf32>
    %c5 = arith.constant 5 : index
    %c0_31 = arith.constant 0 : index
    %84 = vector.load %arg2[%c5, %c0_31] : memref<16x384xf32, #tpu.memory_space<vmem>>, vector<1x64xf32>
    %c6 = arith.constant 6 : index
    %c0_32 = arith.constant 0 : index
    %85 = vector.load %arg2[%c6, %c0_32] : memref<16x384xf32, #tpu.memory_space<vmem>>, vector<1x64xf32>
    %c7 = arith.constant 7 : index
    %c0_33 = arith.constant 0 : index
    %86 = vector.load %arg2[%c7, %c0_33] : memref<16x384xf32, #tpu.memory_space<vmem>>, vector<1x128xf32>
    %c8 = arith.constant 8 : index
    %c0_34 = arith.constant 0 : index
    %87 = vector.load %arg2[%c8, %c0_34] : memref<16x384xf32, #tpu.memory_space<vmem>>, vector<1x64xf32>
    %c9 = arith.constant 9 : index
    %c0_35 = arith.constant 0 : index
    %88 = vector.load %arg2[%c9, %c0_35] : memref<16x384xf32, #tpu.memory_space<vmem>>, vector<1x64xf32>
    %c10 = arith.constant 10 : index
    %c0_36 = arith.constant 0 : index
    %89 = vector.load %arg2[%c10, %c0_36] : memref<16x384xf32, #tpu.memory_space<vmem>>, vector<1x64xf32>
    %cst_37 = arith.constant dense<0.000000e+00> : vector<32xf32>
    %90 = vector.multi_reduction <add>, %73, %cst_37 [1] : vector<32x64xf32> to vector<32xf32>
    %91 = vector.shape_cast %90 : vector<32xf32> to vector<32x1xf32>
    %cst_38 = arith.constant 6.400000e+01 : f32
    %92 = vector.broadcast %cst_38 : f32 to vector<32x1xf32>
    %93 = arith.divf %91, %92 : vector<32x1xf32>
    %94 = vector.broadcast %93 : vector<32x1xf32> to vector<32x64xf32>
    %95 = arith.subf %73, %94 : vector<32x64xf32>
    %96 = arith.mulf %95, %95 : vector<32x64xf32>
    %cst_39 = arith.constant dense<0.000000e+00> : vector<32xf32>
    %97 = vector.multi_reduction <add>, %96, %cst_39 [1] : vector<32x64xf32> to vector<32xf32>
    %98 = vector.shape_cast %97 : vector<32xf32> to vector<32x1xf32>
    %cst_40 = arith.constant 6.400000e+01 : f32
    %99 = vector.broadcast %cst_40 : f32 to vector<32x1xf32>
    %100 = arith.divf %98, %99 : vector<32x1xf32>
    %101 = vector.broadcast %93 : vector<32x1xf32> to vector<32x64xf32>
    %102 = arith.subf %73, %101 : vector<32x64xf32>
    %cst_41 = arith.constant 9.99999974E-6 : f32
    %103 = vector.broadcast %cst_41 : f32 to vector<32x1xf32>
    %104 = arith.addf %100, %103 : vector<32x1xf32>
    %105 = math.rsqrt %104 : vector<32x1xf32>
    %106 = vector.broadcast %105 : vector<32x1xf32> to vector<32x64xf32>
    %107 = arith.mulf %102, %106 : vector<32x64xf32>
    %108 = vector.broadcast %84 : vector<1x64xf32> to vector<32x64xf32>
    %109 = arith.mulf %107, %108 : vector<32x64xf32>
    %110 = vector.broadcast %85 : vector<1x64xf32> to vector<32x64xf32>
    %111 = arith.addf %109, %110 : vector<32x64xf32>
    %112 = arith.truncf %111 : vector<32x64xf32> to vector<32x64xbf16>
    %cst_42 = arith.constant dense<0.000000e+00> : vector<32x384xf32>
    %113 = tpu.matmul %112, %75, %cst_42 {dimension_numbers = #tpu.dot_dimension_numbers<[1], [0], [0], [1], [0, 0, 1, 1], [], []>} : vector<32x64xbf16>, vector<64x384xbf16>, vector<32x384xf32> -> vector<32x384xf32>
    %114 = vector.broadcast %82 : vector<1x384xf32> to vector<32x384xf32>
    %115 = arith.addf %113, %114 : vector<32x384xf32>
    %116 = arith.truncf %115 : vector<32x384xf32> to vector<32x384xbf16>
    %117 = vector.extract_strided_slice %116 {offsets = [0, 0], sizes = [32, 64], strides = [1, 1]} : vector<32x384xbf16> to vector<32x64xbf16>
    %118 = vector.extract_strided_slice %116 {offsets = [0, 128], sizes = [32, 64], strides = [1, 1]} : vector<32x384xbf16> to vector<32x64xbf16>
    %119 = vector.extract_strided_slice %116 {offsets = [0, 256], sizes = [32, 64], strides = [1, 1]} : vector<32x384xbf16> to vector<32x64xbf16>
    %120 = vector.extract_strided_slice %117 {offsets = [0, 0], sizes = [32, 16], strides = [1, 1]} : vector<32x64xbf16> to vector<32x16xbf16>
    %121 = vector.shape_cast %120 : vector<32x16xbf16> to vector<2x16x16xbf16>
    %122 = vector.extract_strided_slice %118 {offsets = [0, 0], sizes = [32, 16], strides = [1, 1]} : vector<32x64xbf16> to vector<32x16xbf16>
    %123 = vector.shape_cast %122 : vector<32x16xbf16> to vector<2x16x16xbf16>
    %124 = vector.extract_strided_slice %119 {offsets = [0, 0], sizes = [32, 16], strides = [1, 1]} : vector<32x64xbf16> to vector<32x16xbf16>
    %125 = vector.shape_cast %124 : vector<32x16xbf16> to vector<2x16x16xbf16>
    "tpu.trace_start"() <{level = 10 : i32, message = "bqd,bkd->bqk"}> : () -> ()
    %cst_43 = arith.constant dense<0.000000e+00> : vector<2x16x16xf32>
    %126 = tpu.matmul %121, %123, %cst_43 {dimension_numbers = #tpu.dot_dimension_numbers<[2], [2], [1], [1], [0, 0, 0, 1, 1, 1], [0], [0]>} : vector<2x16x16xbf16>, vector<2x16x16xbf16>, vector<2x16x16xf32> -> vector<2x16x16xf32>
    "tpu.trace_stop"() : () -> ()
    %cst_44 = arith.constant 2.500000e-01 : f32
    %127 = vector.broadcast %cst_44 : f32 to vector<2x16x16xf32>
    %128 = arith.mulf %126, %127 : vector<2x16x16xf32>
    %cst_45 = arith.constant dense<0xFF800000> : vector<2x16xf32>
    %129 = vector.multi_reduction <maximumf>, %128, %cst_45 [2] : vector<2x16x16xf32> to vector<2x16xf32>
    %130 = vector.shape_cast %129 : vector<2x16xf32> to vector<2x16x1xf32>
    %131 = vector.broadcast %130 : vector<2x16x1xf32> to vector<2x16x16xf32>
    %132 = arith.subf %128, %131 : vector<2x16x16xf32>
    %133 = math.exp %132 : vector<2x16x16xf32>
    %cst_46 = arith.constant dense<0.000000e+00> : vector<2x16xf32>
    %134 = vector.multi_reduction <add>, %133, %cst_46 [2] : vector<2x16x16xf32> to vector<2x16xf32>
    %135 = vector.shape_cast %134 : vector<2x16xf32> to vector<2x16x1xf32>
    %136 = tpu.reciprocal %135 {approx = true} : vector<2x16x1xf32> -> vector<2x16x1xf32>
    %137 = vector.broadcast %136 : vector<2x16x1xf32> to vector<2x16x16xf32>
    %138 = arith.mulf %133, %137 : vector<2x16x16xf32>
    %139 = arith.truncf %138 : vector<2x16x16xf32> to vector<2x16x16xbf16>
    "tpu.trace_start"() <{level = 10 : i32, message = "bqk,bkd->bqd"}> : () -> ()
    %cst_47 = arith.constant dense<0.000000e+00> : vector<2x16x16xf32>
    %140 = tpu.matmul %139, %125, %cst_47 {dimension_numbers = #tpu.dot_dimension_numbers<[2], [1], [1], [2], [0, 0, 0, 1, 1, 2], [0], [0]>} : vector<2x16x16xbf16>, vector<2x16x16xbf16>, vector<2x16x16xf32> -> vector<2x16x16xf32>
    "tpu.trace_stop"() : () -> ()
    %141 = vector.extract_strided_slice %117 {offsets = [0, 16], sizes = [32, 16], strides = [1, 1]} : vector<32x64xbf16> to vector<32x16xbf16>
    %142 = vector.shape_cast %141 : vector<32x16xbf16> to vector<2x16x16xbf16>
    %143 = vector.extract_strided_slice %118 {offsets = [0, 16], sizes = [32, 16], strides = [1, 1]} : vector<32x64xbf16> to vector<32x16xbf16>
    %144 = vector.shape_cast %143 : vector<32x16xbf16> to vector<2x16x16xbf16>
    %145 = vector.extract_strided_slice %119 {offsets = [0, 16], sizes = [32, 16], strides = [1, 1]} : vector<32x64xbf16> to vector<32x16xbf16>
    %146 = vector.shape_cast %145 : vector<32x16xbf16> to vector<2x16x16xbf16>
    "tpu.trace_start"() <{level = 10 : i32, message = "bqd,bkd->bqk"}> : () -> ()
    %cst_48 = arith.constant dense<0.000000e+00> : vector<2x16x16xf32>
    %147 = tpu.matmul %142, %144, %cst_48 {dimension_numbers = #tpu.dot_dimension_numbers<[2], [2], [1], [1], [0, 0, 0, 1, 1, 1], [0], [0]>} : vector<2x16x16xbf16>, vector<2x16x16xbf16>, vector<2x16x16xf32> -> vector<2x16x16xf32>
    "tpu.trace_stop"() : () -> ()
    %cst_49 = arith.constant 2.500000e-01 : f32
    %148 = vector.broadcast %cst_49 : f32 to vector<2x16x16xf32>
    %149 = arith.mulf %147, %148 : vector<2x16x16xf32>
    %cst_50 = arith.constant dense<0xFF800000> : vector<2x16xf32>
    %150 = vector.multi_reduction <maximumf>, %149, %cst_50 [2] : vector<2x16x16xf32> to vector<2x16xf32>
    %151 = vector.shape_cast %150 : vector<2x16xf32> to vector<2x16x1xf32>
    %152 = vector.broadcast %151 : vector<2x16x1xf32> to vector<2x16x16xf32>
    %153 = arith.subf %149, %152 : vector<2x16x16xf32>
    %154 = math.exp %153 : vector<2x16x16xf32>
    %cst_51 = arith.constant dense<0.000000e+00> : vector<2x16xf32>
    %155 = vector.multi_reduction <add>, %154, %cst_51 [2] : vector<2x16x16xf32> to vector<2x16xf32>
    %156 = vector.shape_cast %155 : vector<2x16xf32> to vector<2x16x1xf32>
    %157 = tpu.reciprocal %156 {approx = true} : vector<2x16x1xf32> -> vector<2x16x1xf32>
    %158 = vector.broadcast %157 : vector<2x16x1xf32> to vector<2x16x16xf32>
    %159 = arith.mulf %154, %158 : vector<2x16x16xf32>
    %160 = arith.truncf %159 : vector<2x16x16xf32> to vector<2x16x16xbf16>
    "tpu.trace_start"() <{level = 10 : i32, message = "bqk,bkd->bqd"}> : () -> ()
    %cst_52 = arith.constant dense<0.000000e+00> : vector<2x16x16xf32>
    %161 = tpu.matmul %160, %146, %cst_52 {dimension_numbers = #tpu.dot_dimension_numbers<[2], [1], [1], [2], [0, 0, 0, 1, 1, 2], [0], [0]>} : vector<2x16x16xbf16>, vector<2x16x16xbf16>, vector<2x16x16xf32> -> vector<2x16x16xf32>
    "tpu.trace_stop"() : () -> ()
    %162 = vector.extract_strided_slice %117 {offsets = [0, 32], sizes = [32, 16], strides = [1, 1]} : vector<32x64xbf16> to vector<32x16xbf16>
    %163 = vector.shape_cast %162 : vector<32x16xbf16> to vector<2x16x16xbf16>
    %164 = vector.extract_strided_slice %118 {offsets = [0, 32], sizes = [32, 16], strides = [1, 1]} : vector<32x64xbf16> to vector<32x16xbf16>
    %165 = vector.shape_cast %164 : vector<32x16xbf16> to vector<2x16x16xbf16>
    %166 = vector.extract_strided_slice %119 {offsets = [0, 32], sizes = [32, 16], strides = [1, 1]} : vector<32x64xbf16> to vector<32x16xbf16>
    %167 = vector.shape_cast %166 : vector<32x16xbf16> to vector<2x16x16xbf16>
    "tpu.trace_start"() <{level = 10 : i32, message = "bqd,bkd->bqk"}> : () -> ()
    %cst_53 = arith.constant dense<0.000000e+00> : vector<2x16x16xf32>
    %168 = tpu.matmul %163, %165, %cst_53 {dimension_numbers = #tpu.dot_dimension_numbers<[2], [2], [1], [1], [0, 0, 0, 1, 1, 1], [0], [0]>} : vector<2x16x16xbf16>, vector<2x16x16xbf16>, vector<2x16x16xf32> -> vector<2x16x16xf32>
    "tpu.trace_stop"() : () -> ()
    %cst_54 = arith.constant 2.500000e-01 : f32
    %169 = vector.broadcast %cst_54 : f32 to vector<2x16x16xf32>
    %170 = arith.mulf %168, %169 : vector<2x16x16xf32>
    %cst_55 = arith.constant dense<0xFF800000> : vector<2x16xf32>
    %171 = vector.multi_reduction <maximumf>, %170, %cst_55 [2] : vector<2x16x16xf32> to vector<2x16xf32>
    %172 = vector.shape_cast %171 : vector<2x16xf32> to vector<2x16x1xf32>
    %173 = vector.broadcast %172 : vector<2x16x1xf32> to vector<2x16x16xf32>
    %174 = arith.subf %170, %173 : vector<2x16x16xf32>
    %175 = math.exp %174 : vector<2x16x16xf32>
    %cst_56 = arith.constant dense<0.000000e+00> : vector<2x16xf32>
    %176 = vector.multi_reduction <add>, %175, %cst_56 [2] : vector<2x16x16xf32> to vector<2x16xf32>
    %177 = vector.shape_cast %176 : vector<2x16xf32> to vector<2x16x1xf32>
    %178 = tpu.reciprocal %177 {approx = true} : vector<2x16x1xf32> -> vector<2x16x1xf32>
    %179 = vector.broadcast %178 : vector<2x16x1xf32> to vector<2x16x16xf32>
    %180 = arith.mulf %175, %179 : vector<2x16x16xf32>
    %181 = arith.truncf %180 : vector<2x16x16xf32> to vector<2x16x16xbf16>
    "tpu.trace_start"() <{level = 10 : i32, message = "bqk,bkd->bqd"}> : () -> ()
    %cst_57 = arith.constant dense<0.000000e+00> : vector<2x16x16xf32>
    %182 = tpu.matmul %181, %167, %cst_57 {dimension_numbers = #tpu.dot_dimension_numbers<[2], [1], [1], [2], [0, 0, 0, 1, 1, 2], [0], [0]>} : vector<2x16x16xbf16>, vector<2x16x16xbf16>, vector<2x16x16xf32> -> vector<2x16x16xf32>
    "tpu.trace_stop"() : () -> ()
    %183 = vector.extract_strided_slice %117 {offsets = [0, 48], sizes = [32, 16], strides = [1, 1]} : vector<32x64xbf16> to vector<32x16xbf16>
    %184 = vector.shape_cast %183 : vector<32x16xbf16> to vector<2x16x16xbf16>
    %185 = vector.extract_strided_slice %118 {offsets = [0, 48], sizes = [32, 16], strides = [1, 1]} : vector<32x64xbf16> to vector<32x16xbf16>
    %186 = vector.shape_cast %185 : vector<32x16xbf16> to vector<2x16x16xbf16>
    %187 = vector.extract_strided_slice %119 {offsets = [0, 48], sizes = [32, 16], strides = [1, 1]} : vector<32x64xbf16> to vector<32x16xbf16>
    %188 = vector.shape_cast %187 : vector<32x16xbf16> to vector<2x16x16xbf16>
    "tpu.trace_start"() <{level = 10 : i32, message = "bqd,bkd->bqk"}> : () -> ()
    %cst_58 = arith.constant dense<0.000000e+00> : vector<2x16x16xf32>
    %189 = tpu.matmul %184, %186, %cst_58 {dimension_numbers = #tpu.dot_dimension_numbers<[2], [2], [1], [1], [0, 0, 0, 1, 1, 1], [0], [0]>} : vector<2x16x16xbf16>, vector<2x16x16xbf16>, vector<2x16x16xf32> -> vector<2x16x16xf32>
    "tpu.trace_stop"() : () -> ()
    %cst_59 = arith.constant 2.500000e-01 : f32
    %190 = vector.broadcast %cst_59 : f32 to vector<2x16x16xf32>
    %191 = arith.mulf %189, %190 : vector<2x16x16xf32>
    %cst_60 = arith.constant dense<0xFF800000> : vector<2x16xf32>
    %192 = vector.multi_reduction <maximumf>, %191, %cst_60 [2] : vector<2x16x16xf32> to vector<2x16xf32>
    %193 = vector.shape_cast %192 : vector<2x16xf32> to vector<2x16x1xf32>
    %194 = vector.broadcast %193 : vector<2x16x1xf32> to vector<2x16x16xf32>
    %195 = arith.subf %191, %194 : vector<2x16x16xf32>
    %196 = math.exp %195 : vector<2x16x16xf32>
    %cst_61 = arith.constant dense<0.000000e+00> : vector<2x16xf32>
    %197 = vector.multi_reduction <add>, %196, %cst_61 [2] : vector<2x16x16xf32> to vector<2x16xf32>
    %198 = vector.shape_cast %197 : vector<2x16xf32> to vector<2x16x1xf32>
    %199 = tpu.reciprocal %198 {approx = true} : vector<2x16x1xf32> -> vector<2x16x1xf32>
    %200 = vector.broadcast %199 : vector<2x16x1xf32> to vector<2x16x16xf32>
    %201 = arith.mulf %196, %200 : vector<2x16x16xf32>
    %202 = arith.truncf %201 : vector<2x16x16xf32> to vector<2x16x16xbf16>
    "tpu.trace_start"() <{level = 10 : i32, message = "bqk,bkd->bqd"}> : () -> ()
    %cst_62 = arith.constant dense<0.000000e+00> : vector<2x16x16xf32>
    %203 = tpu.matmul %202, %188, %cst_62 {dimension_numbers = #tpu.dot_dimension_numbers<[2], [1], [1], [2], [0, 0, 0, 1, 1, 2], [0], [0]>} : vector<2x16x16xbf16>, vector<2x16x16xbf16>, vector<2x16x16xf32> -> vector<2x16x16xf32>
    "tpu.trace_stop"() : () -> ()
    %204 = tpu.concatenate %140, %161, %182, %203 in 2 : vector<2x16x16xf32>, vector<2x16x16xf32>, vector<2x16x16xf32>, vector<2x16x16xf32> -> vector<2x16x64xf32>
    %205 = vector.shape_cast %204 : vector<2x16x64xf32> to vector<32x64xf32>
    %206 = arith.truncf %205 : vector<32x64xf32> to vector<32x64xbf16>
    %cst_63 = arith.constant dense<0.000000e+00> : vector<32x64xf32>
    %207 = tpu.matmul %206, %77, %cst_63 {dimension_numbers = #tpu.dot_dimension_numbers<[1], [0], [0], [1], [0, 0, 1, 1], [], []>} : vector<32x64xbf16>, vector<64x64xbf16>, vector<32x64xf32> -> vector<32x64xf32>
    %208 = vector.broadcast %83 : vector<1x64xf32> to vector<32x64xf32>
    %209 = arith.addf %207, %208 : vector<32x64xf32>
    %210 = arith.addf %73, %209 : vector<32x64xf32>
    %cst_64 = arith.constant dense<0.000000e+00> : vector<32xf32>
    %211 = vector.multi_reduction <add>, %210, %cst_64 [1] : vector<32x64xf32> to vector<32xf32>
    %212 = vector.shape_cast %211 : vector<32xf32> to vector<32x1xf32>
    %cst_65 = arith.constant 6.400000e+01 : f32
    %213 = vector.broadcast %cst_65 : f32 to vector<32x1xf32>
    %214 = arith.divf %212, %213 : vector<32x1xf32>
    %215 = vector.broadcast %214 : vector<32x1xf32> to vector<32x64xf32>
    %216 = arith.subf %210, %215 : vector<32x64xf32>
    %217 = arith.mulf %216, %216 : vector<32x64xf32>
    %cst_66 = arith.constant dense<0.000000e+00> : vector<32xf32>
    %218 = vector.multi_reduction <add>, %217, %cst_66 [1] : vector<32x64xf32> to vector<32xf32>
    %219 = vector.shape_cast %218 : vector<32xf32> to vector<32x1xf32>
    %cst_67 = arith.constant 6.400000e+01 : f32
    %220 = vector.broadcast %cst_67 : f32 to vector<32x1xf32>
    %221 = arith.divf %219, %220 : vector<32x1xf32>
    %222 = vector.broadcast %214 : vector<32x1xf32> to vector<32x64xf32>
    %223 = arith.subf %210, %222 : vector<32x64xf32>
    %cst_68 = arith.constant 9.99999974E-6 : f32
    %224 = vector.broadcast %cst_68 : f32 to vector<32x1xf32>
    %225 = arith.addf %221, %224 : vector<32x1xf32>
    %226 = math.rsqrt %225 : vector<32x1xf32>
    %227 = vector.broadcast %226 : vector<32x1xf32> to vector<32x64xf32>
    %228 = arith.mulf %223, %227 : vector<32x64xf32>
    %229 = vector.broadcast %88 : vector<1x64xf32> to vector<32x64xf32>
    %230 = arith.mulf %228, %229 : vector<32x64xf32>
    %231 = vector.broadcast %89 : vector<1x64xf32> to vector<32x64xf32>
    %232 = arith.addf %230, %231 : vector<32x64xf32>
    %233 = arith.truncf %232 : vector<32x64xf32> to vector<32x64xbf16>
    %cst_69 = arith.constant dense<0.000000e+00> : vector<32x128xf32>
    %234 = tpu.matmul %233, %79, %cst_69 {dimension_numbers = #tpu.dot_dimension_numbers<[1], [0], [0], [1], [0, 0, 1, 1], [], []>} : vector<32x64xbf16>, vector<64x128xbf16>, vector<32x128xf32> -> vector<32x128xf32>
    %235 = vector.broadcast %86 : vector<1x128xf32> to vector<32x128xf32>
    %236 = arith.addf %234, %235 : vector<32x128xf32>
    %cst_70 = arith.constant 0.000000e+00 : f32
    %237 = vector.broadcast %cst_70 : f32 to vector<32x128xf32>
    %238 = arith.maximumf %236, %237 : vector<32x128xf32>
    %239 = arith.truncf %238 : vector<32x128xf32> to vector<32x128xbf16>
    %cst_71 = arith.constant dense<0.000000e+00> : vector<32x64xf32>
    %240 = tpu.matmul %239, %81, %cst_71 {dimension_numbers = #tpu.dot_dimension_numbers<[1], [0], [0], [1], [0, 0, 1, 1], [], []>} : vector<32x128xbf16>, vector<128x64xbf16>, vector<32x64xf32> -> vector<32x64xf32>
    %241 = vector.broadcast %87 : vector<1x64xf32> to vector<32x64xf32>
    %242 = arith.addf %240, %241 : vector<32x64xf32>
    %243 = arith.addf %210, %242 : vector<32x64xf32>
    %c11 = arith.constant 11 : index
    %c0_72 = arith.constant 0 : index
    %244 = vector.load %arg2[%c11, %c0_72] : memref<16x384xf32, #tpu.memory_space<vmem>>, vector<1x64xf32>
    %c12 = arith.constant 12 : index
    %c0_73 = arith.constant 0 : index
    %245 = vector.load %arg2[%c12, %c0_73] : memref<16x384xf32, #tpu.memory_space<vmem>>, vector<1x64xf32>
    %cst_74 = arith.constant dense<0.000000e+00> : vector<32xf32>
    %246 = vector.multi_reduction <add>, %243, %cst_74 [1] : vector<32x64xf32> to vector<32xf32>
    %247 = vector.shape_cast %246 : vector<32xf32> to vector<32x1xf32>
    %cst_75 = arith.constant 6.400000e+01 : f32
    %248 = vector.broadcast %cst_75 : f32 to vector<32x1xf32>
    %249 = arith.divf %247, %248 : vector<32x1xf32>
    %250 = vector.broadcast %249 : vector<32x1xf32> to vector<32x64xf32>
    %251 = arith.subf %243, %250 : vector<32x64xf32>
    %252 = arith.mulf %251, %251 : vector<32x64xf32>
    %cst_76 = arith.constant dense<0.000000e+00> : vector<32xf32>
    %253 = vector.multi_reduction <add>, %252, %cst_76 [1] : vector<32x64xf32> to vector<32xf32>
    %254 = vector.shape_cast %253 : vector<32xf32> to vector<32x1xf32>
    %cst_77 = arith.constant 6.400000e+01 : f32
    %255 = vector.broadcast %cst_77 : f32 to vector<32x1xf32>
    %256 = arith.divf %254, %255 : vector<32x1xf32>
    %257 = vector.broadcast %249 : vector<32x1xf32> to vector<32x64xf32>
    %258 = arith.subf %243, %257 : vector<32x64xf32>
    %cst_78 = arith.constant 9.99999974E-6 : f32
    %259 = vector.broadcast %cst_78 : f32 to vector<32x1xf32>
    %260 = arith.addf %256, %259 : vector<32x1xf32>
    %261 = math.rsqrt %260 : vector<32x1xf32>
    %262 = vector.broadcast %261 : vector<32x1xf32> to vector<32x64xf32>
    %263 = arith.mulf %258, %262 : vector<32x64xf32>
    %264 = vector.broadcast %244 : vector<1x64xf32> to vector<32x64xf32>
    %265 = arith.mulf %263, %264 : vector<32x64xf32>
    %266 = vector.broadcast %245 : vector<1x64xf32> to vector<32x64xf32>
    %267 = arith.addf %265, %266 : vector<32x64xf32>
    %268 = vector.shape_cast %267 : vector<32x64xf32> to vector<2x16x64xf32>
    %269 = tpu.concatenate %72, %268 in 2 : vector<2x16x64xf32>, vector<2x16x64xf32> -> vector<2x16x128xf32>
    %c0_79 = arith.constant 0 : index
    %c0_80 = arith.constant 0 : index
    %c0_81 = arith.constant 0 : index
    %270 = vector.load %arg10[%c0_79, %c0_80, %c0_81] : memref<2x16x128xf32, #tpu.memory_space<vmem>>, vector<2x16x128xf32>
    tpu.vector_store %arg10[%c0_79, %c0_80, %c0_81], %269 {strides = array<i32>} : memref<2x16x128xf32, #tpu.memory_space<vmem>>, vector<2x16x128xf32>,
    return
  }
  func.func @transform_0(%arg0: i32) -> (i32, i32, i32) {
    %c0_i32 = arith.constant 0 : i32
    %c0_i32_0 = arith.constant 0 : i32
    %c0_i32_1 = arith.constant 0 : i32
    return %arg0, %c0_i32, %c0_i32_0 : i32, i32, i32
  }
  func.func @transform_1(%arg0: i32) -> (i32, i32) {
    %c0_i32 = arith.constant 0 : i32
    %c0_i32_0 = arith.constant 0 : i32
    %c0_i32_1 = arith.constant 0 : i32
    return %c0_i32, %c0_i32_0 : i32, i32
  }
  func.func @transform_2(%arg0: i32) -> (i32, i32) {
    %c0_i32 = arith.constant 0 : i32
    %c0_i32_0 = arith.constant 0 : i32
    %c0_i32_1 = arith.constant 0 : i32
    return %c0_i32, %c0_i32_0 : i32, i32
  }
  func.func @transform_3(%arg0: i32) -> (i32, i32) {
    %c0_i32 = arith.constant 0 : i32
    %c0_i32_0 = arith.constant 0 : i32
    %c0_i32_1 = arith.constant 0 : i32
    return %c0_i32, %c0_i32_0 : i32, i32
  }
  func.func @transform_4(%arg0: i32) -> (i32, i32) {
    %c0_i32 = arith.constant 0 : i32
    %c0_i32_0 = arith.constant 0 : i32
    %c0_i32_1 = arith.constant 0 : i32
    return %c0_i32, %c0_i32_0 : i32, i32
  }
  func.func @transform_5(%arg0: i32) -> (i32, i32, i32) {
    %c0_i32 = arith.constant 0 : i32
    %c0_i32_0 = arith.constant 0 : i32
    %c0_i32_1 = arith.constant 0 : i32
    %c0_i32_2 = arith.constant 0 : i32
    return %c0_i32, %c0_i32_0, %c0_i32_1 : i32, i32, i32
  }
  func.func @transform_6(%arg0: i32) -> (i32, i32, i32) {
    %c0_i32 = arith.constant 0 : i32
    %c0_i32_0 = arith.constant 0 : i32
    %c0_i32_1 = arith.constant 0 : i32
    %c0_i32_2 = arith.constant 0 : i32
    return %c0_i32, %c0_i32_0, %c0_i32_1 : i32, i32, i32
  }
  func.func @transform_7(%arg0: i32) -> (i32, i32, i32) {
    %c0_i32 = arith.constant 0 : i32
    %c0_i32_0 = arith.constant 0 : i32
    %c0_i32_1 = arith.constant 0 : i32
    %c0_i32_2 = arith.constant 0 : i32
    return %c0_i32, %c0_i32_0, %c0_i32_1 : i32, i32, i32
  }
  func.func @transform_8(%arg0: i32) -> (i32, i32, i32) {
    %c0_i32 = arith.constant 0 : i32
    %c0_i32_0 = arith.constant 0 : i32
    %c0_i32_1 = arith.constant 0 : i32
    %c0_i32_2 = arith.constant 0 : i32
    return %c0_i32, %c0_i32_0, %c0_i32_1 : i32, i32, i32
  }
  func.func @transform_9(%arg0: i32) -> (i32, i32, i32) {
    %c0_i32 = arith.constant 0 : i32
    %c0_i32_0 = arith.constant 0 : i32
    %c0_i32_1 = arith.constant 0 : i32
    return %arg0, %c0_i32, %c0_i32_0 : i32, i32, i32
  }
}

module attributes {stable_mosaic.version = 11 : i64} {
  func.func @kernel(%arg0: i32, %arg1: memref<2x128x6xbf16, #tpu.memory_space<vmem>>, %arg2: memref<16x384xf32, #tpu.memory_space<vmem>>, %arg3: memref<6x32xbf16, #tpu.memory_space<vmem>>, %arg4: memref<32x32xbf16, #tpu.memory_space<vmem>>, %arg5: memref<32x64xbf16, #tpu.memory_space<vmem>>, %arg6: memref<1x64x384xbf16, #tpu.memory_space<vmem>>, %arg7: memref<1x64x64xbf16, #tpu.memory_space<vmem>>, %arg8: memref<1x64x128xbf16, #tpu.memory_space<vmem>>, %arg9: memref<1x128x64xbf16, #tpu.memory_space<vmem>>, %arg10: memref<2x16x128xf32, #tpu.memory_space<vmem>>) attributes {dimension_semantics = [#tpu.dimension_semantics<parallel>], iteration_bounds = array<i64: 1>, scalar_prefetch = 0 : i64, scratch_operands = 0 : i64, tpu.core_type = #tpu.core_type<tc>, window_params = [{transform_indices = @transform_0, window_bounds = array<i64: 2, 128, 6>}, {pipeline_mode = #tpu.pipeline_mode<synchronous>, transform_indices = @transform_1, window_bounds = array<i64: 16, 384>}, {pipeline_mode = #tpu.pipeline_mode<synchronous>, transform_indices = @transform_2, window_bounds = array<i64: 6, 32>}, {pipeline_mode = #tpu.pipeline_mode<synchronous>, transform_indices = @transform_3, window_bounds = array<i64: 32, 32>}, {pipeline_mode = #tpu.pipeline_mode<synchronous>, transform_indices = @transform_4, window_bounds = array<i64: 32, 64>}, {pipeline_mode = #tpu.pipeline_mode<synchronous>, transform_indices = @transform_5, window_bounds = array<i64: 1, 64, 384>}, {pipeline_mode = #tpu.pipeline_mode<synchronous>, transform_indices = @transform_6, window_bounds = array<i64: 1, 64, 64>}, {pipeline_mode = #tpu.pipeline_mode<synchronous>, transform_indices = @transform_7, window_bounds = array<i64: 1, 64, 128>}, {pipeline_mode = #tpu.pipeline_mode<synchronous>, transform_indices = @transform_8, window_bounds = array<i64: 1, 128, 64>}, {transform_indices = @transform_9, window_bounds = array<i64: 2, 16, 128>}]} {
    %c0 = arith.constant 0 : index
    %c0_0 = arith.constant 0 : index
    %c0_1 = arith.constant 0 : index
    %0 = vector.load %arg1[%c0, %c0_0, %c0_1] : memref<2x128x6xbf16, #tpu.memory_space<vmem>>, vector<2x128x6xbf16>
    %1 = vector.shape_cast %0 : vector<2x128x6xbf16> to vector<256x6xbf16>
    %c0_2 = arith.constant 0 : index
    %c0_3 = arith.constant 0 : index
    %2 = vector.load %arg3[%c0_2, %c0_3] : memref<6x32xbf16, #tpu.memory_space<vmem>>, vector<6x32xbf16>
    %c0_4 = arith.constant 0 : index
    %c0_5 = arith.constant 0 : index
    %3 = vector.load %arg2[%c0_4, %c0_5] : memref<16x384xf32, #tpu.memory_space<vmem>>, vector<1x32xf32>
    %cst = arith.constant dense<0.000000e+00> : vector<256x32xf32>
    %4 = tpu.matmul %1, %2, %cst {dimension_numbers = #tpu.dot_dimension_numbers<[1], [0], [0], [1], [0, 0, 1, 1], [], []>} : vector<256x6xbf16>, vector<6x32xbf16>, vector<256x32xf32> -> vector<256x32xf32>
    %5 = vector.broadcast %3 : vector<1x32xf32> to vector<256x32xf32>
    %6 = arith.addf %4, %5 : vector<256x32xf32>
    %cst_6 = arith.constant 0.000000e+00 : f32
    %7 = vector.broadcast %cst_6 : f32 to vector<256x32xf32>
    %8 = arith.maximumf %6, %7 : vector<256x32xf32>
    %9 = arith.truncf %8 : vector<256x32xf32> to vector<256x32xbf16>
    %c0_7 = arith.constant 0 : index
    %c0_8 = arith.constant 0 : index
    %10 = vector.load %arg4[%c0_7, %c0_8] : memref<32x32xbf16, #tpu.memory_space<vmem>>, vector<32x32xbf16>
    %c1 = arith.constant 1 : index
    %c0_9 = arith.constant 0 : index
    %11 = vector.load %arg2[%c1, %c0_9] : memref<16x384xf32, #tpu.memory_space<vmem>>, vector<1x32xf32>
    %cst_10 = arith.constant dense<0.000000e+00> : vector<256x32xf32>
    %12 = tpu.matmul %9, %10, %cst_10 {dimension_numbers = #tpu.dot_dimension_numbers<[1], [0], [0], [1], [0, 0, 1, 1], [], []>} : vector<256x32xbf16>, vector<32x32xbf16>, vector<256x32xf32> -> vector<256x32xf32>
    %13 = vector.broadcast %11 : vector<1x32xf32> to vector<256x32xf32>
    %14 = arith.addf %12, %13 : vector<256x32xf32>
    %cst_11 = arith.constant 0.000000e+00 : f32
    %15 = vector.broadcast %cst_11 : f32 to vector<256x32xf32>
    %16 = arith.maximumf %14, %15 : vector<256x32xf32>
    %17 = arith.truncf %16 : vector<256x32xf32> to vector<256x32xbf16>
    %c0_12 = arith.constant 0 : index
    %c0_13 = arith.constant 0 : index
    %18 = vector.load %arg5[%c0_12, %c0_13] : memref<32x64xbf16, #tpu.memory_space<vmem>>, vector<32x64xbf16>
    %c2 = arith.constant 2 : index
    %c0_14 = arith.constant 0 : index
    %19 = vector.load %arg2[%c2, %c0_14] : memref<16x384xf32, #tpu.memory_space<vmem>>, vector<1x64xf32>
    %cst_15 = arith.constant dense<0.000000e+00> : vector<256x64xf32>
    %20 = tpu.matmul %17, %18, %cst_15 {dimension_numbers = #tpu.dot_dimension_numbers<[1], [0], [0], [1], [0, 0, 1, 1], [], []>} : vector<256x32xbf16>, vector<32x64xbf16>, vector<256x64xf32> -> vector<256x64xf32>
    %21 = vector.broadcast %19 : vector<1x64xf32> to vector<256x64xf32>
    %22 = arith.addf %20, %21 : vector<256x64xf32>
    %cst_16 = arith.constant 0.000000e+00 : f32
    %23 = vector.broadcast %cst_16 : f32 to vector<256x64xf32>
    %24 = arith.maximumf %22, %23 : vector<256x64xf32>
    %25 = vector.shape_cast %24 : vector<256x64xf32> to vector<2x8x16x64xf32>
    %26 = vector.extract_strided_slice %25 {offsets = [0, 0, 0, 0], sizes = [2, 1, 16, 64], strides = [1, 1, 1, 1]} : vector<2x8x16x64xf32> to vector<2x1x16x64xf32>
    %27 = vector.shape_cast %26 : vector<2x1x16x64xf32> to vector<2x16x64xf32>
    %28 = vector.extract_strided_slice %25 {offsets = [0, 1, 0, 0], sizes = [2, 1, 16, 64], strides = [1, 1, 1, 1]} : vector<2x8x16x64xf32> to vector<2x1x16x64xf32>
    %29 = vector.shape_cast %28 : vector<2x1x16x64xf32> to vector<2x16x64xf32>
    %30 = vector.extract_strided_slice %25 {offsets = [0, 2, 0, 0], sizes = [2, 1, 16, 64], strides = [1, 1, 1, 1]} : vector<2x8x16x64xf32> to vector<2x1x16x64xf32>
    %31 = vector.shape_cast %30 : vector<2x1x16x64xf32> to vector<2x16x64xf32>
    %32 = vector.extract_strided_slice %25 {offsets = [0, 3, 0, 0], sizes = [2, 1, 16, 64], strides = [1, 1, 1, 1]} : vector<2x8x16x64xf32> to vector<2x1x16x64xf32>
    %33 = vector.shape_cast %32 : vector<2x1x16x64xf32> to vector<2x16x64xf32>
    %34 = vector.extract_strided_slice %25 {offsets = [0, 4, 0, 0], sizes = [2, 1, 16, 64], strides = [1, 1, 1, 1]} : vector<2x8x16x64xf32> to vector<2x1x16x64xf32>
    %35 = vector.shape_cast %34 : vector<2x1x16x64xf32> to vector<2x16x64xf32>
    %36 = vector.extract_strided_slice %25 {offsets = [0, 5, 0, 0], sizes = [2, 1, 16, 64], strides = [1, 1, 1, 1]} : vector<2x8x16x64xf32> to vector<2x1x16x64xf32>
    %37 = vector.shape_cast %36 : vector<2x1x16x64xf32> to vector<2x16x64xf32>
    %38 = vector.extract_strided_slice %25 {offsets = [0, 6, 0, 0], sizes = [2, 1, 16, 64], strides = [1, 1, 1, 1]} : vector<2x8x16x64xf32> to vector<2x1x16x64xf32>
    %39 = vector.shape_cast %38 : vector<2x1x16x64xf32> to vector<2x16x64xf32>
    %40 = vector.extract_strided_slice %25 {offsets = [0, 7, 0, 0], sizes = [2, 1, 16, 64], strides = [1, 1, 1, 1]} : vector<2x8x16x64xf32> to vector<2x1x16x64xf32>
    %41 = vector.shape_cast %40 : vector<2x1x16x64xf32> to vector<2x16x64xf32>
    %42 = arith.maximumf %27, %29 : vector<2x16x64xf32>
    %43 = arith.maximumf %31, %33 : vector<2x16x64xf32>
    %44 = arith.maximumf %35, %37 : vector<2x16x64xf32>
    %45 = arith.maximumf %39, %41 : vector<2x16x64xf32>
    %46 = arith.maximumf %42, %43 : vector<2x16x64xf32>
    %47 = arith.maximumf %44, %45 : vector<2x16x64xf32>
    %48 = arith.maximumf %46, %47 : vector<2x16x64xf32>
    %49 = vector.shape_cast %48 : vector<2x16x64xf32> to vector<32x64xf32>
    %c0_17 = arith.constant 0 : index
    %c0_18 = arith.constant 0 : index
    %c0_19 = arith.constant 0 : index
    %50 = vector.load %arg6[%c0_17, %c0_18, %c0_19] : memref<1x64x384xbf16, #tpu.memory_space<vmem>>, vector<1x64x384xbf16>
    %51 = vector.shape_cast %50 : vector<1x64x384xbf16> to vector<64x384xbf16>
    %c0_20 = arith.constant 0 : index
    %c0_21 = arith.constant 0 : index
    %c0_22 = arith.constant 0 : index
    %52 = vector.load %arg7[%c0_20, %c0_21, %c0_22] : memref<1x64x64xbf16, #tpu.memory_space<vmem>>, vector<1x64x64xbf16>
    %53 = vector.shape_cast %52 : vector<1x64x64xbf16> to vector<64x64xbf16>
    %c0_23 = arith.constant 0 : index
    %c0_24 = arith.constant 0 : index
    %c0_25 = arith.constant 0 : index
    %54 = vector.load %arg8[%c0_23, %c0_24, %c0_25] : memref<1x64x128xbf16, #tpu.memory_space<vmem>>, vector<1x64x128xbf16>
    %55 = vector.shape_cast %54 : vector<1x64x128xbf16> to vector<64x128xbf16>
    %c0_26 = arith.constant 0 : index
    %c0_27 = arith.constant 0 : index
    %c0_28 = arith.constant 0 : index
    %56 = vector.load %arg9[%c0_26, %c0_27, %c0_28] : memref<1x128x64xbf16, #tpu.memory_space<vmem>>, vector<1x128x64xbf16>
    %57 = vector.shape_cast %56 : vector<1x128x64xbf16> to vector<128x64xbf16>
    %c3 = arith.constant 3 : index
    %c0_29 = arith.constant 0 : index
    %58 = vector.load %arg2[%c3, %c0_29] : memref<16x384xf32, #tpu.memory_space<vmem>>, vector<1x384xf32>
    %c4 = arith.constant 4 : index
    %c0_30 = arith.constant 0 : index
    %59 = vector.load %arg2[%c4, %c0_30] : memref<16x384xf32, #tpu.memory_space<vmem>>, vector<1x64xf32>
    %c5 = arith.constant 5 : index
    %c0_31 = arith.constant 0 : index
    %60 = vector.load %arg2[%c5, %c0_31] : memref<16x384xf32, #tpu.memory_space<vmem>>, vector<1x64xf32>
    %c6 = arith.constant 6 : index
    %c0_32 = arith.constant 0 : index
    %61 = vector.load %arg2[%c6, %c0_32] : memref<16x384xf32, #tpu.memory_space<vmem>>, vector<1x64xf32>
    %c7 = arith.constant 7 : index
    %c0_33 = arith.constant 0 : index
    %62 = vector.load %arg2[%c7, %c0_33] : memref<16x384xf32, #tpu.memory_space<vmem>>, vector<1x128xf32>
    %c8 = arith.constant 8 : index
    %c0_34 = arith.constant 0 : index
    %63 = vector.load %arg2[%c8, %c0_34] : memref<16x384xf32, #tpu.memory_space<vmem>>, vector<1x64xf32>
    %c9 = arith.constant 9 : index
    %c0_35 = arith.constant 0 : index
    %64 = vector.load %arg2[%c9, %c0_35] : memref<16x384xf32, #tpu.memory_space<vmem>>, vector<1x64xf32>
    %c10 = arith.constant 10 : index
    %c0_36 = arith.constant 0 : index
    %65 = vector.load %arg2[%c10, %c0_36] : memref<16x384xf32, #tpu.memory_space<vmem>>, vector<1x64xf32>
    %cst_37 = arith.constant dense<0.000000e+00> : vector<32xf32>
    %66 = vector.multi_reduction <add>, %49, %cst_37 [1] : vector<32x64xf32> to vector<32xf32>
    %67 = vector.shape_cast %66 : vector<32xf32> to vector<32x1xf32>
    %cst_38 = arith.constant 6.400000e+01 : f32
    %68 = vector.broadcast %cst_38 : f32 to vector<32x1xf32>
    %69 = arith.divf %67, %68 : vector<32x1xf32>
    %70 = vector.broadcast %69 : vector<32x1xf32> to vector<32x64xf32>
    %71 = arith.subf %49, %70 : vector<32x64xf32>
    %72 = arith.mulf %71, %71 : vector<32x64xf32>
    %cst_39 = arith.constant dense<0.000000e+00> : vector<32xf32>
    %73 = vector.multi_reduction <add>, %72, %cst_39 [1] : vector<32x64xf32> to vector<32xf32>
    %74 = vector.shape_cast %73 : vector<32xf32> to vector<32x1xf32>
    %cst_40 = arith.constant 6.400000e+01 : f32
    %75 = vector.broadcast %cst_40 : f32 to vector<32x1xf32>
    %76 = arith.divf %74, %75 : vector<32x1xf32>
    %77 = vector.broadcast %69 : vector<32x1xf32> to vector<32x64xf32>
    %78 = arith.subf %49, %77 : vector<32x64xf32>
    %cst_41 = arith.constant 9.99999974E-6 : f32
    %79 = vector.broadcast %cst_41 : f32 to vector<32x1xf32>
    %80 = arith.addf %76, %79 : vector<32x1xf32>
    %81 = math.rsqrt %80 : vector<32x1xf32>
    %82 = vector.broadcast %81 : vector<32x1xf32> to vector<32x64xf32>
    %83 = arith.mulf %78, %82 : vector<32x64xf32>
    %84 = vector.broadcast %60 : vector<1x64xf32> to vector<32x64xf32>
    %85 = arith.mulf %83, %84 : vector<32x64xf32>
    %86 = vector.broadcast %61 : vector<1x64xf32> to vector<32x64xf32>
    %87 = arith.addf %85, %86 : vector<32x64xf32>
    %88 = arith.truncf %87 : vector<32x64xf32> to vector<32x64xbf16>
    %cst_42 = arith.constant dense<0.000000e+00> : vector<32x384xf32>
    %89 = tpu.matmul %88, %51, %cst_42 {dimension_numbers = #tpu.dot_dimension_numbers<[1], [0], [0], [1], [0, 0, 1, 1], [], []>} : vector<32x64xbf16>, vector<64x384xbf16>, vector<32x384xf32> -> vector<32x384xf32>
    %90 = vector.broadcast %58 : vector<1x384xf32> to vector<32x384xf32>
    %91 = arith.addf %89, %90 : vector<32x384xf32>
    %92 = arith.truncf %91 : vector<32x384xf32> to vector<32x384xbf16>
    %93 = vector.extract_strided_slice %92 {offsets = [0, 0], sizes = [32, 64], strides = [1, 1]} : vector<32x384xbf16> to vector<32x64xbf16>
    %94 = vector.extract_strided_slice %92 {offsets = [0, 128], sizes = [32, 64], strides = [1, 1]} : vector<32x384xbf16> to vector<32x64xbf16>
    %95 = vector.extract_strided_slice %92 {offsets = [0, 256], sizes = [32, 64], strides = [1, 1]} : vector<32x384xbf16> to vector<32x64xbf16>
    %96 = vector.extract_strided_slice %93 {offsets = [0, 0], sizes = [32, 16], strides = [1, 1]} : vector<32x64xbf16> to vector<32x16xbf16>
    %97 = vector.shape_cast %96 : vector<32x16xbf16> to vector<2x16x16xbf16>
    %98 = vector.extract_strided_slice %94 {offsets = [0, 0], sizes = [32, 16], strides = [1, 1]} : vector<32x64xbf16> to vector<32x16xbf16>
    %99 = vector.shape_cast %98 : vector<32x16xbf16> to vector<2x16x16xbf16>
    %100 = vector.extract_strided_slice %95 {offsets = [0, 0], sizes = [32, 16], strides = [1, 1]} : vector<32x64xbf16> to vector<32x16xbf16>
    %101 = vector.shape_cast %100 : vector<32x16xbf16> to vector<2x16x16xbf16>
    "tpu.trace_start"() <{level = 10 : i32, message = "bqd,bkd->bqk"}> : () -> ()
    %cst_43 = arith.constant dense<0.000000e+00> : vector<2x16x16xf32>
    %102 = tpu.matmul %97, %99, %cst_43 {dimension_numbers = #tpu.dot_dimension_numbers<[2], [2], [1], [1], [0, 0, 0, 1, 1, 1], [0], [0]>} : vector<2x16x16xbf16>, vector<2x16x16xbf16>, vector<2x16x16xf32> -> vector<2x16x16xf32>
    "tpu.trace_stop"() : () -> ()
    %cst_44 = arith.constant 2.500000e-01 : f32
    %103 = vector.broadcast %cst_44 : f32 to vector<2x16x16xf32>
    %104 = arith.mulf %102, %103 : vector<2x16x16xf32>
    %cst_45 = arith.constant dense<0xFF800000> : vector<2x16xf32>
    %105 = vector.multi_reduction <maximumf>, %104, %cst_45 [2] : vector<2x16x16xf32> to vector<2x16xf32>
    %106 = vector.shape_cast %105 : vector<2x16xf32> to vector<2x16x1xf32>
    %107 = vector.broadcast %106 : vector<2x16x1xf32> to vector<2x16x16xf32>
    %108 = arith.subf %104, %107 : vector<2x16x16xf32>
    %109 = math.exp %108 : vector<2x16x16xf32>
    %cst_46 = arith.constant dense<0.000000e+00> : vector<2x16xf32>
    %110 = vector.multi_reduction <add>, %109, %cst_46 [2] : vector<2x16x16xf32> to vector<2x16xf32>
    %111 = vector.shape_cast %110 : vector<2x16xf32> to vector<2x16x1xf32>
    %112 = tpu.reciprocal %111 {approx = true} : vector<2x16x1xf32> -> vector<2x16x1xf32>
    %113 = vector.broadcast %112 : vector<2x16x1xf32> to vector<2x16x16xf32>
    %114 = arith.mulf %109, %113 : vector<2x16x16xf32>
    %115 = arith.truncf %114 : vector<2x16x16xf32> to vector<2x16x16xbf16>
    "tpu.trace_start"() <{level = 10 : i32, message = "bqk,bkd->bqd"}> : () -> ()
    %cst_47 = arith.constant dense<0.000000e+00> : vector<2x16x16xf32>
    %116 = tpu.matmul %115, %101, %cst_47 {dimension_numbers = #tpu.dot_dimension_numbers<[2], [1], [1], [2], [0, 0, 0, 1, 1, 2], [0], [0]>} : vector<2x16x16xbf16>, vector<2x16x16xbf16>, vector<2x16x16xf32> -> vector<2x16x16xf32>
    "tpu.trace_stop"() : () -> ()
    %117 = vector.extract_strided_slice %93 {offsets = [0, 16], sizes = [32, 16], strides = [1, 1]} : vector<32x64xbf16> to vector<32x16xbf16>
    %118 = vector.shape_cast %117 : vector<32x16xbf16> to vector<2x16x16xbf16>
    %119 = vector.extract_strided_slice %94 {offsets = [0, 16], sizes = [32, 16], strides = [1, 1]} : vector<32x64xbf16> to vector<32x16xbf16>
    %120 = vector.shape_cast %119 : vector<32x16xbf16> to vector<2x16x16xbf16>
    %121 = vector.extract_strided_slice %95 {offsets = [0, 16], sizes = [32, 16], strides = [1, 1]} : vector<32x64xbf16> to vector<32x16xbf16>
    %122 = vector.shape_cast %121 : vector<32x16xbf16> to vector<2x16x16xbf16>
    "tpu.trace_start"() <{level = 10 : i32, message = "bqd,bkd->bqk"}> : () -> ()
    %cst_48 = arith.constant dense<0.000000e+00> : vector<2x16x16xf32>
    %123 = tpu.matmul %118, %120, %cst_48 {dimension_numbers = #tpu.dot_dimension_numbers<[2], [2], [1], [1], [0, 0, 0, 1, 1, 1], [0], [0]>} : vector<2x16x16xbf16>, vector<2x16x16xbf16>, vector<2x16x16xf32> -> vector<2x16x16xf32>
    "tpu.trace_stop"() : () -> ()
    %cst_49 = arith.constant 2.500000e-01 : f32
    %124 = vector.broadcast %cst_49 : f32 to vector<2x16x16xf32>
    %125 = arith.mulf %123, %124 : vector<2x16x16xf32>
    %cst_50 = arith.constant dense<0xFF800000> : vector<2x16xf32>
    %126 = vector.multi_reduction <maximumf>, %125, %cst_50 [2] : vector<2x16x16xf32> to vector<2x16xf32>
    %127 = vector.shape_cast %126 : vector<2x16xf32> to vector<2x16x1xf32>
    %128 = vector.broadcast %127 : vector<2x16x1xf32> to vector<2x16x16xf32>
    %129 = arith.subf %125, %128 : vector<2x16x16xf32>
    %130 = math.exp %129 : vector<2x16x16xf32>
    %cst_51 = arith.constant dense<0.000000e+00> : vector<2x16xf32>
    %131 = vector.multi_reduction <add>, %130, %cst_51 [2] : vector<2x16x16xf32> to vector<2x16xf32>
    %132 = vector.shape_cast %131 : vector<2x16xf32> to vector<2x16x1xf32>
    %133 = tpu.reciprocal %132 {approx = true} : vector<2x16x1xf32> -> vector<2x16x1xf32>
    %134 = vector.broadcast %133 : vector<2x16x1xf32> to vector<2x16x16xf32>
    %135 = arith.mulf %130, %134 : vector<2x16x16xf32>
    %136 = arith.truncf %135 : vector<2x16x16xf32> to vector<2x16x16xbf16>
    "tpu.trace_start"() <{level = 10 : i32, message = "bqk,bkd->bqd"}> : () -> ()
    %cst_52 = arith.constant dense<0.000000e+00> : vector<2x16x16xf32>
    %137 = tpu.matmul %136, %122, %cst_52 {dimension_numbers = #tpu.dot_dimension_numbers<[2], [1], [1], [2], [0, 0, 0, 1, 1, 2], [0], [0]>} : vector<2x16x16xbf16>, vector<2x16x16xbf16>, vector<2x16x16xf32> -> vector<2x16x16xf32>
    "tpu.trace_stop"() : () -> ()
    %138 = vector.extract_strided_slice %93 {offsets = [0, 32], sizes = [32, 16], strides = [1, 1]} : vector<32x64xbf16> to vector<32x16xbf16>
    %139 = vector.shape_cast %138 : vector<32x16xbf16> to vector<2x16x16xbf16>
    %140 = vector.extract_strided_slice %94 {offsets = [0, 32], sizes = [32, 16], strides = [1, 1]} : vector<32x64xbf16> to vector<32x16xbf16>
    %141 = vector.shape_cast %140 : vector<32x16xbf16> to vector<2x16x16xbf16>
    %142 = vector.extract_strided_slice %95 {offsets = [0, 32], sizes = [32, 16], strides = [1, 1]} : vector<32x64xbf16> to vector<32x16xbf16>
    %143 = vector.shape_cast %142 : vector<32x16xbf16> to vector<2x16x16xbf16>
    "tpu.trace_start"() <{level = 10 : i32, message = "bqd,bkd->bqk"}> : () -> ()
    %cst_53 = arith.constant dense<0.000000e+00> : vector<2x16x16xf32>
    %144 = tpu.matmul %139, %141, %cst_53 {dimension_numbers = #tpu.dot_dimension_numbers<[2], [2], [1], [1], [0, 0, 0, 1, 1, 1], [0], [0]>} : vector<2x16x16xbf16>, vector<2x16x16xbf16>, vector<2x16x16xf32> -> vector<2x16x16xf32>
    "tpu.trace_stop"() : () -> ()
    %cst_54 = arith.constant 2.500000e-01 : f32
    %145 = vector.broadcast %cst_54 : f32 to vector<2x16x16xf32>
    %146 = arith.mulf %144, %145 : vector<2x16x16xf32>
    %cst_55 = arith.constant dense<0xFF800000> : vector<2x16xf32>
    %147 = vector.multi_reduction <maximumf>, %146, %cst_55 [2] : vector<2x16x16xf32> to vector<2x16xf32>
    %148 = vector.shape_cast %147 : vector<2x16xf32> to vector<2x16x1xf32>
    %149 = vector.broadcast %148 : vector<2x16x1xf32> to vector<2x16x16xf32>
    %150 = arith.subf %146, %149 : vector<2x16x16xf32>
    %151 = math.exp %150 : vector<2x16x16xf32>
    %cst_56 = arith.constant dense<0.000000e+00> : vector<2x16xf32>
    %152 = vector.multi_reduction <add>, %151, %cst_56 [2] : vector<2x16x16xf32> to vector<2x16xf32>
    %153 = vector.shape_cast %152 : vector<2x16xf32> to vector<2x16x1xf32>
    %154 = tpu.reciprocal %153 {approx = true} : vector<2x16x1xf32> -> vector<2x16x1xf32>
    %155 = vector.broadcast %154 : vector<2x16x1xf32> to vector<2x16x16xf32>
    %156 = arith.mulf %151, %155 : vector<2x16x16xf32>
    %157 = arith.truncf %156 : vector<2x16x16xf32> to vector<2x16x16xbf16>
    "tpu.trace_start"() <{level = 10 : i32, message = "bqk,bkd->bqd"}> : () -> ()
    %cst_57 = arith.constant dense<0.000000e+00> : vector<2x16x16xf32>
    %158 = tpu.matmul %157, %143, %cst_57 {dimension_numbers = #tpu.dot_dimension_numbers<[2], [1], [1], [2], [0, 0, 0, 1, 1, 2], [0], [0]>} : vector<2x16x16xbf16>, vector<2x16x16xbf16>, vector<2x16x16xf32> -> vector<2x16x16xf32>
    "tpu.trace_stop"() : () -> ()
    %159 = vector.extract_strided_slice %93 {offsets = [0, 48], sizes = [32, 16], strides = [1, 1]} : vector<32x64xbf16> to vector<32x16xbf16>
    %160 = vector.shape_cast %159 : vector<32x16xbf16> to vector<2x16x16xbf16>
    %161 = vector.extract_strided_slice %94 {offsets = [0, 48], sizes = [32, 16], strides = [1, 1]} : vector<32x64xbf16> to vector<32x16xbf16>
    %162 = vector.shape_cast %161 : vector<32x16xbf16> to vector<2x16x16xbf16>
    %163 = vector.extract_strided_slice %95 {offsets = [0, 48], sizes = [32, 16], strides = [1, 1]} : vector<32x64xbf16> to vector<32x16xbf16>
    %164 = vector.shape_cast %163 : vector<32x16xbf16> to vector<2x16x16xbf16>
    "tpu.trace_start"() <{level = 10 : i32, message = "bqd,bkd->bqk"}> : () -> ()
    %cst_58 = arith.constant dense<0.000000e+00> : vector<2x16x16xf32>
    %165 = tpu.matmul %160, %162, %cst_58 {dimension_numbers = #tpu.dot_dimension_numbers<[2], [2], [1], [1], [0, 0, 0, 1, 1, 1], [0], [0]>} : vector<2x16x16xbf16>, vector<2x16x16xbf16>, vector<2x16x16xf32> -> vector<2x16x16xf32>
    "tpu.trace_stop"() : () -> ()
    %cst_59 = arith.constant 2.500000e-01 : f32
    %166 = vector.broadcast %cst_59 : f32 to vector<2x16x16xf32>
    %167 = arith.mulf %165, %166 : vector<2x16x16xf32>
    %cst_60 = arith.constant dense<0xFF800000> : vector<2x16xf32>
    %168 = vector.multi_reduction <maximumf>, %167, %cst_60 [2] : vector<2x16x16xf32> to vector<2x16xf32>
    %169 = vector.shape_cast %168 : vector<2x16xf32> to vector<2x16x1xf32>
    %170 = vector.broadcast %169 : vector<2x16x1xf32> to vector<2x16x16xf32>
    %171 = arith.subf %167, %170 : vector<2x16x16xf32>
    %172 = math.exp %171 : vector<2x16x16xf32>
    %cst_61 = arith.constant dense<0.000000e+00> : vector<2x16xf32>
    %173 = vector.multi_reduction <add>, %172, %cst_61 [2] : vector<2x16x16xf32> to vector<2x16xf32>
    %174 = vector.shape_cast %173 : vector<2x16xf32> to vector<2x16x1xf32>
    %175 = tpu.reciprocal %174 {approx = true} : vector<2x16x1xf32> -> vector<2x16x1xf32>
    %176 = vector.broadcast %175 : vector<2x16x1xf32> to vector<2x16x16xf32>
    %177 = arith.mulf %172, %176 : vector<2x16x16xf32>
    %178 = arith.truncf %177 : vector<2x16x16xf32> to vector<2x16x16xbf16>
    "tpu.trace_start"() <{level = 10 : i32, message = "bqk,bkd->bqd"}> : () -> ()
    %cst_62 = arith.constant dense<0.000000e+00> : vector<2x16x16xf32>
    %179 = tpu.matmul %178, %164, %cst_62 {dimension_numbers = #tpu.dot_dimension_numbers<[2], [1], [1], [2], [0, 0, 0, 1, 1, 2], [0], [0]>} : vector<2x16x16xbf16>, vector<2x16x16xbf16>, vector<2x16x16xf32> -> vector<2x16x16xf32>
    "tpu.trace_stop"() : () -> ()
    %180 = tpu.concatenate %116, %137, %158, %179 in 2 : vector<2x16x16xf32>, vector<2x16x16xf32>, vector<2x16x16xf32>, vector<2x16x16xf32> -> vector<2x16x64xf32>
    %181 = vector.shape_cast %180 : vector<2x16x64xf32> to vector<32x64xf32>
    %182 = arith.truncf %181 : vector<32x64xf32> to vector<32x64xbf16>
    %cst_63 = arith.constant dense<0.000000e+00> : vector<32x64xf32>
    %183 = tpu.matmul %182, %53, %cst_63 {dimension_numbers = #tpu.dot_dimension_numbers<[1], [0], [0], [1], [0, 0, 1, 1], [], []>} : vector<32x64xbf16>, vector<64x64xbf16>, vector<32x64xf32> -> vector<32x64xf32>
    %184 = vector.broadcast %59 : vector<1x64xf32> to vector<32x64xf32>
    %185 = arith.addf %183, %184 : vector<32x64xf32>
    %186 = arith.addf %49, %185 : vector<32x64xf32>
    %cst_64 = arith.constant dense<0.000000e+00> : vector<32xf32>
    %187 = vector.multi_reduction <add>, %186, %cst_64 [1] : vector<32x64xf32> to vector<32xf32>
    %188 = vector.shape_cast %187 : vector<32xf32> to vector<32x1xf32>
    %cst_65 = arith.constant 6.400000e+01 : f32
    %189 = vector.broadcast %cst_65 : f32 to vector<32x1xf32>
    %190 = arith.divf %188, %189 : vector<32x1xf32>
    %191 = vector.broadcast %190 : vector<32x1xf32> to vector<32x64xf32>
    %192 = arith.subf %186, %191 : vector<32x64xf32>
    %193 = arith.mulf %192, %192 : vector<32x64xf32>
    %cst_66 = arith.constant dense<0.000000e+00> : vector<32xf32>
    %194 = vector.multi_reduction <add>, %193, %cst_66 [1] : vector<32x64xf32> to vector<32xf32>
    %195 = vector.shape_cast %194 : vector<32xf32> to vector<32x1xf32>
    %cst_67 = arith.constant 6.400000e+01 : f32
    %196 = vector.broadcast %cst_67 : f32 to vector<32x1xf32>
    %197 = arith.divf %195, %196 : vector<32x1xf32>
    %198 = vector.broadcast %190 : vector<32x1xf32> to vector<32x64xf32>
    %199 = arith.subf %186, %198 : vector<32x64xf32>
    %cst_68 = arith.constant 9.99999974E-6 : f32
    %200 = vector.broadcast %cst_68 : f32 to vector<32x1xf32>
    %201 = arith.addf %197, %200 : vector<32x1xf32>
    %202 = math.rsqrt %201 : vector<32x1xf32>
    %203 = vector.broadcast %202 : vector<32x1xf32> to vector<32x64xf32>
    %204 = arith.mulf %199, %203 : vector<32x64xf32>
    %205 = vector.broadcast %64 : vector<1x64xf32> to vector<32x64xf32>
    %206 = arith.mulf %204, %205 : vector<32x64xf32>
    %207 = vector.broadcast %65 : vector<1x64xf32> to vector<32x64xf32>
    %208 = arith.addf %206, %207 : vector<32x64xf32>
    %209 = arith.truncf %208 : vector<32x64xf32> to vector<32x64xbf16>
    %cst_69 = arith.constant dense<0.000000e+00> : vector<32x128xf32>
    %210 = tpu.matmul %209, %55, %cst_69 {dimension_numbers = #tpu.dot_dimension_numbers<[1], [0], [0], [1], [0, 0, 1, 1], [], []>} : vector<32x64xbf16>, vector<64x128xbf16>, vector<32x128xf32> -> vector<32x128xf32>
    %211 = vector.broadcast %62 : vector<1x128xf32> to vector<32x128xf32>
    %212 = arith.addf %210, %211 : vector<32x128xf32>
    %cst_70 = arith.constant 0.000000e+00 : f32
    %213 = vector.broadcast %cst_70 : f32 to vector<32x128xf32>
    %214 = arith.maximumf %212, %213 : vector<32x128xf32>
    %215 = arith.truncf %214 : vector<32x128xf32> to vector<32x128xbf16>
    %cst_71 = arith.constant dense<0.000000e+00> : vector<32x64xf32>
    %216 = tpu.matmul %215, %57, %cst_71 {dimension_numbers = #tpu.dot_dimension_numbers<[1], [0], [0], [1], [0, 0, 1, 1], [], []>} : vector<32x128xbf16>, vector<128x64xbf16>, vector<32x64xf32> -> vector<32x64xf32>
    %217 = vector.broadcast %63 : vector<1x64xf32> to vector<32x64xf32>
    %218 = arith.addf %216, %217 : vector<32x64xf32>
    %219 = arith.addf %186, %218 : vector<32x64xf32>
    %c11 = arith.constant 11 : index
    %c0_72 = arith.constant 0 : index
    %220 = vector.load %arg2[%c11, %c0_72] : memref<16x384xf32, #tpu.memory_space<vmem>>, vector<1x64xf32>
    %c12 = arith.constant 12 : index
    %c0_73 = arith.constant 0 : index
    %221 = vector.load %arg2[%c12, %c0_73] : memref<16x384xf32, #tpu.memory_space<vmem>>, vector<1x64xf32>
    %cst_74 = arith.constant dense<0.000000e+00> : vector<32xf32>
    %222 = vector.multi_reduction <add>, %219, %cst_74 [1] : vector<32x64xf32> to vector<32xf32>
    %223 = vector.shape_cast %222 : vector<32xf32> to vector<32x1xf32>
    %cst_75 = arith.constant 6.400000e+01 : f32
    %224 = vector.broadcast %cst_75 : f32 to vector<32x1xf32>
    %225 = arith.divf %223, %224 : vector<32x1xf32>
    %226 = vector.broadcast %225 : vector<32x1xf32> to vector<32x64xf32>
    %227 = arith.subf %219, %226 : vector<32x64xf32>
    %228 = arith.mulf %227, %227 : vector<32x64xf32>
    %cst_76 = arith.constant dense<0.000000e+00> : vector<32xf32>
    %229 = vector.multi_reduction <add>, %228, %cst_76 [1] : vector<32x64xf32> to vector<32xf32>
    %230 = vector.shape_cast %229 : vector<32xf32> to vector<32x1xf32>
    %cst_77 = arith.constant 6.400000e+01 : f32
    %231 = vector.broadcast %cst_77 : f32 to vector<32x1xf32>
    %232 = arith.divf %230, %231 : vector<32x1xf32>
    %233 = vector.broadcast %225 : vector<32x1xf32> to vector<32x64xf32>
    %234 = arith.subf %219, %233 : vector<32x64xf32>
    %cst_78 = arith.constant 9.99999974E-6 : f32
    %235 = vector.broadcast %cst_78 : f32 to vector<32x1xf32>
    %236 = arith.addf %232, %235 : vector<32x1xf32>
    %237 = math.rsqrt %236 : vector<32x1xf32>
    %238 = vector.broadcast %237 : vector<32x1xf32> to vector<32x64xf32>
    %239 = arith.mulf %234, %238 : vector<32x64xf32>
    %240 = vector.broadcast %220 : vector<1x64xf32> to vector<32x64xf32>
    %241 = arith.mulf %239, %240 : vector<32x64xf32>
    %242 = vector.broadcast %221 : vector<1x64xf32> to vector<32x64xf32>
    %243 = arith.addf %241, %242 : vector<32x64xf32>
    %244 = vector.shape_cast %243 : vector<32x64xf32> to vector<2x16x64xf32>
    %245 = tpu.concatenate %48, %244 in 2 : vector<2x16x64xf32>, vector<2x16x64xf32> -> vector<2x16x128xf32>
    %c0_79 = arith.constant 0 : index
    %c0_80 = arith.constant 0 : index
    %c0_81 = arith.constant 0 : index
    %246 = vector.load %arg10[%c0_79, %c0_80, %c0_81] : memref<2x16x128xf32, #tpu.memory_space<vmem>>, vector<2x16x128xf32>
    tpu.vector_store %arg10[%c0_79, %c0_80, %c0_81], %245 {strides = array<i32>} : memref<2x16x128xf32, #tpu.memory_space<vmem>>, vector<2x16x128xf32>,
    return
  }
  func.func @transform_0(%arg0: i32) -> (i32, i32, i32) {
    %c0_i32 = arith.constant 0 : i32
    %c0_i32_0 = arith.constant 0 : i32
    %c0_i32_1 = arith.constant 0 : i32
    return %arg0, %c0_i32, %c0_i32_0 : i32, i32, i32
  }
  func.func @transform_1(%arg0: i32) -> (i32, i32) {
    %c0_i32 = arith.constant 0 : i32
    %c0_i32_0 = arith.constant 0 : i32
    %c0_i32_1 = arith.constant 0 : i32
    return %c0_i32, %c0_i32_0 : i32, i32
  }
  func.func @transform_2(%arg0: i32) -> (i32, i32) {
    %c0_i32 = arith.constant 0 : i32
    %c0_i32_0 = arith.constant 0 : i32
    %c0_i32_1 = arith.constant 0 : i32
    return %c0_i32, %c0_i32_0 : i32, i32
  }
  func.func @transform_3(%arg0: i32) -> (i32, i32) {
    %c0_i32 = arith.constant 0 : i32
    %c0_i32_0 = arith.constant 0 : i32
    %c0_i32_1 = arith.constant 0 : i32
    return %c0_i32, %c0_i32_0 : i32, i32
  }
  func.func @transform_4(%arg0: i32) -> (i32, i32) {
    %c0_i32 = arith.constant 0 : i32
    %c0_i32_0 = arith.constant 0 : i32
    %c0_i32_1 = arith.constant 0 : i32
    return %c0_i32, %c0_i32_0 : i32, i32
  }
  func.func @transform_5(%arg0: i32) -> (i32, i32, i32) {
    %c0_i32 = arith.constant 0 : i32
    %c0_i32_0 = arith.constant 0 : i32
    %c0_i32_1 = arith.constant 0 : i32
    %c0_i32_2 = arith.constant 0 : i32
    return %c0_i32, %c0_i32_0, %c0_i32_1 : i32, i32, i32
  }
  func.func @transform_6(%arg0: i32) -> (i32, i32, i32) {
    %c0_i32 = arith.constant 0 : i32
    %c0_i32_0 = arith.constant 0 : i32
    %c0_i32_1 = arith.constant 0 : i32
    %c0_i32_2 = arith.constant 0 : i32
    return %c0_i32, %c0_i32_0, %c0_i32_1 : i32, i32, i32
  }
  func.func @transform_7(%arg0: i32) -> (i32, i32, i32) {
    %c0_i32 = arith.constant 0 : i32
    %c0_i32_0 = arith.constant 0 : i32
    %c0_i32_1 = arith.constant 0 : i32
    %c0_i32_2 = arith.constant 0 : i32
    return %c0_i32, %c0_i32_0, %c0_i32_1 : i32, i32, i32
  }
  func.func @transform_8(%arg0: i32) -> (i32, i32, i32) {
    %c0_i32 = arith.constant 0 : i32
    %c0_i32_0 = arith.constant 0 : i32
    %c0_i32_1 = arith.constant 0 : i32
    %c0_i32_2 = arith.constant 0 : i32
    return %c0_i32, %c0_i32_0, %c0_i32_1 : i32, i32, i32
  }
  func.func @transform_9(%arg0: i32) -> (i32, i32, i32) {
    %c0_i32 = arith.constant 0 : i32
    %c0_i32_0 = arith.constant 0 : i32
    %c0_i32_1 = arith.constant 0 : i32
    return %arg0, %c0_i32, %c0_i32_0 : i32, i32, i32
  }
}

</mosaic_0001>

<llo_original>
// kernel: custom-call.12
$region0: #{custom-call.12}
  %s0 = inlined_call_operand.vmem [shape: f32[2,64], index: 0, kind: output, shape index: {}]

// kernel: transformer_pointnet_sa_msg.2
$region0: #{transformer_pointnet_sa_msg.2}
  #allocation0 [shape = 'u32[]', space=smem, size = 0x4, offset = 0x4, fixed_abs, tag = 'smem constant byte address 0x4 - core index']
  #allocation1 [shape = 'u32[72,128]{1,0:T(1,128)}', space=vmem, size = 0x9000, scoped, tag = 'internal scratch']
  %s0 = inlined_call_operand.vmem [shape: bf16[2,128,6], index: 0, kind: input, shape index: {}]
  %s1 = inlined_call_operand.vmem [shape: f32[16,384], index: 1, kind: input, shape index: {}]
  %s2 = inlined_call_operand.vmem [shape: bf16[6,32], index: 2, kind: input, shape index: {}]
  %s3 = inlined_call_operand.vmem [shape: bf16[32,32], index: 3, kind: input, shape index: {}]
  %s4 = inlined_call_operand.vmem [shape: bf16[32,64], index: 4, kind: input, shape index: {}]
  %s5 = inlined_call_operand.vmem [shape: bf16[1,64,384], index: 5, kind: input, shape index: {}]
  %s6 = inlined_call_operand.vmem [shape: bf16[1,64,64], index: 6, kind: input, shape index: {}]
  %s7 = inlined_call_operand.vmem [shape: bf16[1,64,128], index: 7, kind: input, shape index: {}]
  %s8 = inlined_call_operand.vmem [shape: bf16[1,128,64], index: 8, kind: input, shape index: {}]
  %s9 = inlined_call_operand.vmem [shape: f32[2,16,128], index: 9, kind: output, shape index: {}]
  %s10 = sld [smem:[#allocation0]]
  $region46: #{transformer_pointnet_sa_msg.2} parent=0
    _
  %s12 = ssub.s32 1, %s10
  %s13 = scalar_select 0, %s12, %s10
  // Predicated region
  $region2: #{transformer_pointnet_sa_msg.2} parent=0 // pred_check
    _
  $region3: #{transformer_pointnet_sa_msg.2} parent=0 // pred_check_branch
    %15 = sbr.rel (0) target = $region5
  $region4: #{transformer_pointnet_sa_msg.2} parent=0 // pred_region
    _
  $region5: #{transformer_pointnet_sa_msg.2} parent=0 // pred_fallthru
    _
  // Predicated region
  $region6: #{transformer_pointnet_sa_msg.2} parent=0 // pred_check
    _
  $region7: #{transformer_pointnet_sa_msg.2} parent=0 // pred_check_branch
    %17 = sbr.rel (0) target = $region9
  $region8: #{transformer_pointnet_sa_msg.2} parent=0 // pred_region
    _
  $region9: #{transformer_pointnet_sa_msg.2} parent=0 // pred_fallthru
    _
  // Predicated region
  $region10: #{transformer_pointnet_sa_msg.2} parent=0 // pred_check
    _
  $region11: #{transformer_pointnet_sa_msg.2} parent=0 // pred_check_branch
    %19 = sbr.rel (0) target = $region13
  $region12: #{transformer_pointnet_sa_msg.2} parent=0 // pred_region
    _
  $region13: #{transformer_pointnet_sa_msg.2} parent=0 // pred_fallthru
    _
  // Predicated region
  $region14: #{transformer_pointnet_sa_msg.2} parent=0 // pred_check
    _
  $region15: #{transformer_pointnet_sa_msg.2} parent=0 // pred_check_branch
    %21 = sbr.rel (0) target = $region17
  $region16: #{transformer_pointnet_sa_msg.2} parent=0 // pred_region
    _
  $region17: #{transformer_pointnet_sa_msg.2} parent=0 // pred_fallthru
    _
  // Predicated region
  $region18: #{transformer_pointnet_sa_msg.2} parent=0 // pred_check
    _
  $region19: #{transformer_pointnet_sa_msg.2} parent=0 // pred_check_branch
    %23 = sbr.rel (0) target = $region21
  $region20: #{transformer_pointnet_sa_msg.2} parent=0 // pred_region
    _
  $region21: #{transformer_pointnet_sa_msg.2} parent=0 // pred_fallthru
    _
  // Predicated region
  $region22: #{transformer_pointnet_sa_msg.2} parent=0 // pred_check
    _
  $region23: #{transformer_pointnet_sa_msg.2} parent=0 // pred_check_branch
    %25 = sbr.rel (0) target = $region25
  $region24: #{transformer_pointnet_sa_msg.2} parent=0 // pred_region
    _
  $region25: #{transformer_pointnet_sa_msg.2} parent=0 // pred_fallthru
    _
  // Predicated region
  $region26: #{transformer_pointnet_sa_msg.2} parent=0 // pred_check
    _
  $region27: #{transformer_pointnet_sa_msg.2} parent=0 // pred_check_branch
    %27 = sbr.rel (0) target = $region29
  $region28: #{transformer_pointnet_sa_msg.2} parent=0 // pred_region
    _
  $region29: #{transformer_pointnet_sa_msg.2} parent=0 // pred_fallthru
    _
  // Predicated region
  $region30: #{transformer_pointnet_sa_msg.2} parent=0 // pred_check
    _
  $region31: #{transformer_pointnet_sa_msg.2} parent=0 // pred_check_branch
    %29 = sbr.rel (0) target = $region33
  $region32: #{transformer_pointnet_sa_msg.2} parent=0 // pred_region
    _
  $region33: #{transformer_pointnet_sa_msg.2} parent=0 // pred_fallthru
    _
  // Predicated region
  $region34: #{transformer_pointnet_sa_msg.2} parent=0 // pred_check
    _
  $region35: #{transformer_pointnet_sa_msg.2} parent=0 // pred_check_branch
    %31 = sbr.rel (0) target = $region37
  $region36: #{transformer_pointnet_sa_msg.2} parent=0 // pred_region
    _
  $region37: #{transformer_pointnet_sa_msg.2} parent=0 // pred_fallthru
    _
  %v33 = vld [vmem:[%s0] sm:$0xf]
  %v34 = vld [vmem:[%s0 + $0x4] sm:$0xf]
  %v35 = vld [vmem:[%s0 + $0x8] sm:$0xf]
  %v36 = vld [vmem:[%s0 + $0xc] sm:$0xf]
  %v37 = vld [vmem:[%s0 + $0x10] sm:$0xf]
  %v38 = vld [vmem:[%s0 + $0x14] sm:$0xf]
  %v39 = vld [vmem:[%s0 + $0x18] sm:$0xf]
  %v40 = vld [vmem:[%s0 + $0x1c] sm:$0xf]
  %v41 = vld [vmem:[%s0 + $0x20] sm:$0xf]
  %v42 = vld [vmem:[%s0 + $0x24] sm:$0xf]
  %v43 = vld [vmem:[%s0 + $0x28] sm:$0xf]
  %v44 = vld [vmem:[%s0 + $0x2c] sm:$0xf]
  %v45 = vld [vmem:[%s0 + $0x30] sm:$0xf]
  %v46 = vld [vmem:[%s0 + $0x34] sm:$0xf]
  %v47 = vld [vmem:[%s0 + $0x38] sm:$0xf]
  %v48 = vld [vmem:[%s0 + $0x3c] sm:$0xf]
  %v49 = vld [vmem:[%s0 + $0x40] sm:$0xf]
  %v50 = vld [vmem:[%s0 + $0x44] sm:$0xf]
  %v51 = vld [vmem:[%s0 + $0x48] sm:$0xf]
  %v52 = vld [vmem:[%s0 + $0x4c] sm:$0xf]
  %v53 = vld [vmem:[%s0 + $0x50] sm:$0xf]
  %v54 = vld [vmem:[%s0 + $0x54] sm:$0xf]
  %v55 = vld [vmem:[%s0 + $0x58] sm:$0xf]
  %v56 = vld [vmem:[%s0 + $0x5c] sm:$0xf]
  %v57 = vld [vmem:[%s0 + $0x60] sm:$0xf]
  %v58 = vld [vmem:[%s0 + $0x64] sm:$0xf]
  %v59 = vld [vmem:[%s0 + $0x68] sm:$0xf]
  %v60 = vld [vmem:[%s0 + $0x6c] sm:$0xf]
  %v61 = vld [vmem:[%s0 + $0x70] sm:$0xf]
  %v62 = vld [vmem:[%s0 + $0x74] sm:$0xf]
  %v63 = vld [vmem:[%s0 + $0x78] sm:$0xf]
  %v64 = vld [vmem:[%s0 + $0x7c] sm:$0xf]
  %v65 = vld [vmem:[%s2] sm:$0x7]
  %v66 = vld [vmem:[%s1] ss:$0 sm:$0xff]
  %v99 = vunpack.c.l.b16 %v33
  %v100 = vunpack.c.l.b16 %v34
  %v101 = vunpack.c.l.b16 %v35
  %v102 = vunpack.c.l.b16 %v36
  %v103 = vunpack.c.l.b16 %v37
  %v104 = vunpack.c.l.b16 %v38
  %v105 = vunpack.c.l.b16 %v39
  %v106 = vunpack.c.l.b16 %v40
  %v107 = vunpack.c.l.b16 %v41
  %v108 = vunpack.c.l.b16 %v42
  %v109 = vunpack.c.l.b16 %v43
  %v110 = vunpack.c.l.b16 %v44
  %v111 = vunpack.c.l.b16 %v45
  %v112 = vunpack.c.l.b16 %v46
  %v113 = vunpack.c.l.b16 %v47
  %v114 = vunpack.c.l.b16 %v48
  %v115 = vunpack.c.l.b16 %v49
  %v116 = vunpack.c.l.b16 %v50
  %v117 = vunpack.c.l.b16 %v51
  %v118 = vunpack.c.l.b16 %v52
  %v119 = vunpack.c.l.b16 %v53
  %v120 = vunpack.c.l.b16 %v54
  %v121 = vunpack.c.l.b16 %v55
  %v122 = vunpack.c.l.b16 %v56
  %v123 = vunpack.c.l.b16 %v57
  %v124 = vunpack.c.l.b16 %v58
  %v125 = vunpack.c.l.b16 %v59
  %v126 = vunpack.c.l.b16 %v60
  %v127 = vunpack.c.l.b16 %v61
  %v128 = vunpack.c.l.b16 %v62
  %v129 = vunpack.c.l.b16 %v63
  %v130 = vunpack.c.l.b16 %v64
  %v131 = vpack.c.b16 %v100, %v99
  %v132 = vpack.c.b16 %v102, %v101
  %v133 = vpack.c.b16 %v104, %v103
  %v134 = vpack.c.b16 %v106, %v105
  %v135 = vpack.c.b16 %v108, %v107
  %v136 = vpack.c.b16 %v110, %v109
  %v137 = vpack.c.b16 %v112, %v111
  %v138 = vpack.c.b16 %v114, %v113
  %v139 = vpack.c.b16 %v116, %v115
  %v140 = vpack.c.b16 %v118, %v117
  %v141 = vpack.c.b16 %v120, %v119
  %v142 = vpack.c.b16 %v122, %v121
  %v143 = vpack.c.b16 %v124, %v123
  %v144 = vpack.c.b16 %v126, %v125
  %v145 = vpack.c.b16 %v128, %v127
  %v146 = vpack.c.b16 %v130, %v129
  %vm147 = vcmask 48128
  %v149 = vsel %vm147, %v131, 0
  %v152 = vsel %vm147, %v132, 0
  %v155 = vsel %vm147, %v133, 0
  %v158 = vsel %vm147, %v134, 0
  %v161 = vsel %vm147, %v135, 0
  %v164 = vsel %vm147, %v136, 0
  %v167 = vsel %vm147, %v137, 0
  %v170 = vsel %vm147, %v138, 0
  %v173 = vsel %vm147, %v139, 0
  %v176 = vsel %vm147, %v140, 0
  %v179 = vsel %vm147, %v141, 0
  %v182 = vsel %vm147, %v142, 0
  %v185 = vsel %vm147, %v143, 0
  %v188 = vsel %vm147, %v144, 0
  %v191 = vsel %vm147, %v145, 0
  %v194 = vsel %vm147, %v146, 0
  %vm196 = vcmask 1042432
  %v198 = vsel %vm196, %v65, 0
  %200 = vmatpush.bf16.msra.mxu0 0
  %201 = vmatpush.bf16.msra.mxu0 0
  %202 = vmatpush.bf16.msra.mxu0 0
  %203 = vmatpush.bf16.msra.mxu0 0
  %204 = vmatpush.bf16.msra.mxu0 0
  %205 = vmatpush.bf16.msra.mxu0 0
  %206 = vmatpush.bf16.msra.mxu0 0
  %207 = vmatpush.bf16.msra.mxu0 %v198
  %208 = vmatmul.bf16.gmra.mxu0 %v149
  %v209 = vpop.f32.mrf.mxu0
  %v210 = vadd.f32 %v66, %v209
  %v211 = vpop.f32.mrf.mxu0
  %v212 = vadd.f32 %v66, %v211
  %213 = vmatmul.bf16.gmra.mxu0 %v152
  %v214 = vpop.f32.mrf.mxu0
  %v215 = vadd.f32 %v66, %v214
  %v216 = vpop.f32.mrf.mxu0
  %v217 = vadd.f32 %v66, %v216
  %218 = vmatmul.bf16.gmra.mxu0 %v155
  %v219 = vpop.f32.mrf.mxu0
  %v220 = vadd.f32 %v66, %v219
  %v221 = vpop.f32.mrf.mxu0
  %v222 = vadd.f32 %v66, %v221
  %223 = vmatmul.bf16.gmra.mxu0 %v158
  %v224 = vpop.f32.mrf.mxu0
  %v225 = vadd.f32 %v66, %v224
  %v226 = vpop.f32.mrf.mxu0
  %v227 = vadd.f32 %v66, %v226
  %228 = vmatmul.bf16.gmra.mxu0 %v161
  %v229 = vpop.f32.mrf.mxu0
  %v230 = vadd.f32 %v66, %v229
  %v231 = vpop.f32.mrf.mxu0
  %v232 = vadd.f32 %v66, %v231
  %233 = vmatmul.bf16.gmra.mxu0 %v164
  %v234 = vpop.f32.mrf.mxu0
  %v235 = vadd.f32 %v66, %v234
  %v236 = vpop.f32.mrf.mxu0
  %v237 = vadd.f32 %v66, %v236
  %238 = vmatmul.bf16.gmra.mxu0 %v167
  %v239 = vpop.f32.mrf.mxu0
  %v240 = vadd.f32 %v66, %v239
  %v241 = vpop.f32.mrf.mxu0
  %v242 = vadd.f32 %v66, %v241
  %243 = vmatmul.bf16.gmra.mxu0 %v170
  %v244 = vpop.f32.mrf.mxu0
  %v245 = vadd.f32 %v66, %v244
  %v246 = vpop.f32.mrf.mxu0
  %v247 = vadd.f32 %v66, %v246
  %248 = vmatmul.bf16.gmra.mxu0 %v173
  %v249 = vpop.f32.mrf.mxu0
  %v250 = vadd.f32 %v66, %v249
  %v251 = vpop.f32.mrf.mxu0
  %v252 = vadd.f32 %v66, %v251
  %253 = vmatmul.bf16.gmra.mxu0 %v176
  %v254 = vpop.f32.mrf.mxu0
  %v255 = vadd.f32 %v66, %v254
  %v256 = vpop.f32.mrf.mxu0
  %v257 = vadd.f32 %v66, %v256
  %258 = vmatmul.bf16.gmra.mxu0 %v179
  %v259 = vpop.f32.mrf.mxu0
  %v260 = vadd.f32 %v66, %v259
  %v261 = vpop.f32.mrf.mxu0
  %v262 = vadd.f32 %v66, %v261
  %263 = vmatmul.bf16.gmra.mxu0 %v182
  %v264 = vpop.f32.mrf.mxu0
  %v265 = vadd.f32 %v66, %v264
  %v266 = vpop.f32.mrf.mxu0
  %v267 = vadd.f32 %v66, %v266
  %268 = vmatmul.bf16.gmra.mxu0 %v185
  %v269 = vpop.f32.mrf.mxu0
  %v270 = vadd.f32 %v66, %v269
  %v271 = vpop.f32.mrf.mxu0
  %v272 = vadd.f32 %v66, %v271
  %273 = vmatmul.bf16.gmra.mxu0 %v188
  %v274 = vpop.f32.mrf.mxu0
  %v275 = vadd.f32 %v66, %v274
  %v276 = vpop.f32.mrf.mxu0
  %v277 = vadd.f32 %v66, %v276
  %278 = vmatmul.bf16.gmra.mxu0 %v191
  %v279 = vpop.f32.mrf.mxu0
  %v280 = vadd.f32 %v66, %v279
  %v281 = vpop.f32.mrf.mxu0
  %v282 = vadd.f32 %v66, %v281
  %283 = vmatmul.bf16.gmra.mxu0 %v194
  %v284 = vpop.f32.mrf.mxu0
  %v285 = vadd.f32 %v66, %v284
  %v286 = vpop.f32.mrf.mxu0
  %v287 = vadd.f32 %v66, %v286
  %288 = vdwg.mxu0
  %v289 = vmax.f32 %v210, 0.0
  %v290 = vmax.f32 %v212, 0.0
  %v291 = vmax.f32 %v215, 0.0
  %v292 = vmax.f32 %v217, 0.0
  %v293 = vmax.f32 %v220, 0.0
  %v294 = vmax.f32 %v222, 0.0
  %v295 = vmax.f32 %v225, 0.0
  %v296 = vmax.f32 %v227, 0.0
  %v297 = vmax.f32 %v230, 0.0
  %v298 = vmax.f32 %v232, 0.0
  %v299 = vmax.f32 %v235, 0.0
  %v300 = vmax.f32 %v237, 0.0
  %v301 = vmax.f32 %v240, 0.0
  %v302 = vmax.f32 %v242, 0.0
  %v303 = vmax.f32 %v245, 0.0
  %v304 = vmax.f32 %v247, 0.0
  %v305 = vmax.f32 %v250, 0.0
  %v306 = vmax.f32 %v252, 0.0
  %v307 = vmax.f32 %v255, 0.0
  %v308 = vmax.f32 %v257, 0.0
  %v309 = vmax.f32 %v260, 0.0
  %v310 = vmax.f32 %v262, 0.0
  %v311 = vmax.f32 %v265, 0.0
  %v312 = vmax.f32 %v267, 0.0
  %v313 = vmax.f32 %v270, 0.0
  %v314 = vmax.f32 %v272, 0.0
  %v315 = vmax.f32 %v275, 0.0
  %v316 = vmax.f32 %v277, 0.0
  %v317 = vmax.f32 %v280, 0.0
  %v318 = vmax.f32 %v282, 0.0
  %v319 = vmax.f32 %v285, 0.0
  %v320 = vmax.f32 %v287, 0.0
  %v321 = vpack.c.bf16 %v290, %v289
  %v322 = vpack.c.bf16 %v292, %v291
  %v323 = vpack.c.bf16 %v294, %v293
  %v324 = vpack.c.bf16 %v296, %v295
  %v325 = vpack.c.bf16 %v298, %v297
  %v326 = vpack.c.bf16 %v300, %v299
  %v327 = vpack.c.bf16 %v302, %v301
  %v328 = vpack.c.bf16 %v304, %v303
  %v329 = vpack.c.bf16 %v306, %v305
  %v330 = vpack.c.bf16 %v308, %v307
  %v331 = vpack.c.bf16 %v310, %v309
  %v332 = vpack.c.bf16 %v312, %v311
  %v333 = vpack.c.bf16 %v314, %v313
  %v334 = vpack.c.bf16 %v316, %v315
  %v335 = vpack.c.bf16 %v318, %v317
  %v336 = vpack.c.bf16 %v320, %v319
  %v337 = vld [vmem:[%s3] sm:$0xf]
  %v338 = vld [vmem:[%s3 + $0x4] sm:$0xf]
  %v339 = vld [vmem:[%s3 + $0x8] sm:$0xf]
  %v340 = vld [vmem:[%s3 + $0xc] sm:$0xf]
  %v341 = vld [vmem:[%s1 + $0x1] ss:$0 sm:$0xff]
  %v346 = vunpack.c.l.b16 %v337
  %v347 = vunpack.c.l.b16 %v338
  %v348 = vunpack.c.l.b16 %v339
  %v349 = vunpack.c.l.b16 %v340
  %v350 = vpack.c.b16 %v347, %v346
  %v351 = vpack.c.b16 %v349, %v348
  %vm354 = vcmask 261120
  %v356 = vsel %vm354, %v321, 0
  %v359 = vsel %vm354, %v322, 0
  %v362 = vsel %vm354, %v323, 0
  %v365 = vsel %vm354, %v324, 0
  %v368 = vsel %vm354, %v325, 0
  %v371 = vsel %vm354, %v326, 0
  %v374 = vsel %vm354, %v327, 0
  %v377 = vsel %vm354, %v328, 0
  %v380 = vsel %vm354, %v329, 0
  %v383 = vsel %vm354, %v330, 0
  %v386 = vsel %vm354, %v331, 0
  %v389 = vsel %vm354, %v332, 0
  %v392 = vsel %vm354, %v333, 0
  %v395 = vsel %vm354, %v334, 0
  %v398 = vsel %vm354, %v335, 0
  %v401 = vsel %vm354, %v336, 0
  %403 = vmatpush.bf16.msra.mxu0 0
  %404 = vmatpush.bf16.msra.mxu0 0
  %405 = vmatpush.bf16.msra.mxu0 0
  %406 = vmatpush.bf16.msra.mxu0 0
  %407 = vmatpush.bf16.msra.mxu0 0
  %408 = vmatpush.bf16.msra.mxu0 0
  %409 = vmatpush.bf16.msra.mxu0 %v351
  %410 = vmatpush.bf16.msra.mxu0 %v350
  %411 = vmatmul.bf16.gmra.mxu0 %v356
  %v412 = vpop.f32.mrf.mxu0
  %v413 = vadd.f32 %v341, %v412
  %v414 = vpop.f32.mrf.mxu0
  %v415 = vadd.f32 %v341, %v414
  %416 = vmatmul.bf16.gmra.mxu0 %v359
  %v417 = vpop.f32.mrf.mxu0
  %v418 = vadd.f32 %v341, %v417
  %v419 = vpop.f32.mrf.mxu0
  %v420 = vadd.f32 %v341, %v419
  %421 = vmatmul.bf16.gmra.mxu0 %v362
  %v422 = vpop.f32.mrf.mxu0
  %v423 = vadd.f32 %v341, %v422
  %v424 = vpop.f32.mrf.mxu0
  %v425 = vadd.f32 %v341, %v424
  %426 = vmatmul.bf16.gmra.mxu0 %v365
  %v427 = vpop.f32.mrf.mxu0
  %v428 = vadd.f32 %v341, %v427
  %v429 = vpop.f32.mrf.mxu0
  %v430 = vadd.f32 %v341, %v429
  %431 = vmatmul.bf16.gmra.mxu0 %v368
  %v432 = vpop.f32.mrf.mxu0
  %v433 = vadd.f32 %v341, %v432
  %v434 = vpop.f32.mrf.mxu0
  %v435 = vadd.f32 %v341, %v434
  %436 = vmatmul.bf16.gmra.mxu0 %v371
  %v437 = vpop.f32.mrf.mxu0
  %v438 = vadd.f32 %v341, %v437
  %v439 = vpop.f32.mrf.mxu0
  %v440 = vadd.f32 %v341, %v439
  %441 = vmatmul.bf16.gmra.mxu0 %v374
  %v442 = vpop.f32.mrf.mxu0
  %v443 = vadd.f32 %v341, %v442
  %v444 = vpop.f32.mrf.mxu0
  %v445 = vadd.f32 %v341, %v444
  %446 = vmatmul.bf16.gmra.mxu0 %v377
  %v447 = vpop.f32.mrf.mxu0
  %v448 = vadd.f32 %v341, %v447
  %v449 = vpop.f32.mrf.mxu0
  %v450 = vadd.f32 %v341, %v449
  %451 = vmatmul.bf16.gmra.mxu0 %v380
  %v452 = vpop.f32.mrf.mxu0
  %v453 = vadd.f32 %v341, %v452
  %v454 = vpop.f32.mrf.mxu0
  %v455 = vadd.f32 %v341, %v454
  %456 = vmatmul.bf16.gmra.mxu0 %v383
  %v457 = vpop.f32.mrf.mxu0
  %v458 = vadd.f32 %v341, %v457
  %v459 = vpop.f32.mrf.mxu0
  %v460 = vadd.f32 %v341, %v459
  %461 = vmatmul.bf16.gmra.mxu0 %v386
  %v462 = vpop.f32.mrf.mxu0
  %v463 = vadd.f32 %v341, %v462
  %v464 = vpop.f32.mrf.mxu0
  %v465 = vadd.f32 %v341, %v464
  %466 = vmatmul.bf16.gmra.mxu0 %v389
  %v467 = vpop.f32.mrf.mxu0
  %v468 = vadd.f32 %v341, %v467
  %v469 = vpop.f32.mrf.mxu0
  %v470 = vadd.f32 %v341, %v469
  %471 = vmatmul.bf16.gmra.mxu0 %v392
  %v472 = vpop.f32.mrf.mxu0
  %v473 = vadd.f32 %v341, %v472
  %v474 = vpop.f32.mrf.mxu0
  %v475 = vadd.f32 %v341, %v474
  %476 = vmatmul.bf16.gmra.mxu0 %v395
  %v477 = vpop.f32.mrf.mxu0
  %v478 = vadd.f32 %v341, %v477
  %v479 = vpop.f32.mrf.mxu0
  %v480 = vadd.f32 %v341, %v479
  %481 = vmatmul.bf16.gmra.mxu0 %v398
  %v482 = vpop.f32.mrf.mxu0
  %v483 = vadd.f32 %v341, %v482
  %v484 = vpop.f32.mrf.mxu0
  %v485 = vadd.f32 %v341, %v484
  %486 = vmatmul.bf16.gmra.mxu0 %v401
  %v487 = vpop.f32.mrf.mxu0
  %v488 = vadd.f32 %v341, %v487
  %v489 = vpop.f32.mrf.mxu0
  %v490 = vadd.f32 %v341, %v489
  %491 = vdwg.mxu0
  %v492 = vmax.f32 %v413, 0.0
  %v493 = vmax.f32 %v415, 0.0
  %v494 = vmax.f32 %v418, 0.0
  %v495 = vmax.f32 %v420, 0.0
  %v496 = vmax.f32 %v423, 0.0
  %v497 = vmax.f32 %v425, 0.0
  %v498 = vmax.f32 %v428, 0.0
  %v499 = vmax.f32 %v430, 0.0
  %v500 = vmax.f32 %v433, 0.0
  %v501 = vmax.f32 %v435, 0.0
  %v502 = vmax.f32 %v438, 0.0
  %v503 = vmax.f32 %v440, 0.0
  %v504 = vmax.f32 %v443, 0.0
  %v505 = vmax.f32 %v445, 0.0
  %v506 = vmax.f32 %v448, 0.0
  %v507 = vmax.f32 %v450, 0.0
  %v508 = vmax.f32 %v453, 0.0
  %v509 = vmax.f32 %v455, 0.0
  %v510 = vmax.f32 %v458, 0.0
  %v511 = vmax.f32 %v460, 0.0
  %v512 = vmax.f32 %v463, 0.0
  %v513 = vmax.f32 %v465, 0.0
  %v514 = vmax.f32 %v468, 0.0
  %v515 = vmax.f32 %v470, 0.0
  %v516 = vmax.f32 %v473, 0.0
  %v517 = vmax.f32 %v475, 0.0
  %v518 = vmax.f32 %v478, 0.0
  %v519 = vmax.f32 %v480, 0.0
  %v520 = vmax.f32 %v483, 0.0
  %v521 = vmax.f32 %v485, 0.0
  %v522 = vmax.f32 %v488, 0.0
  %v523 = vmax.f32 %v490, 0.0
  %v524 = vpack.c.bf16 %v493, %v492
  %v525 = vpack.c.bf16 %v495, %v494
  %v526 = vpack.c.bf16 %v497, %v496
  %v527 = vpack.c.bf16 %v499, %v498
  %v528 = vpack.c.bf16 %v501, %v500
  %v529 = vpack.c.bf16 %v503, %v502
  %v530 = vpack.c.bf16 %v505, %v504
  %v531 = vpack.c.bf16 %v507, %v506
  %v532 = vpack.c.bf16 %v509, %v508
  %v533 = vpack.c.bf16 %v511, %v510
  %v534 = vpack.c.bf16 %v513, %v512
  %v535 = vpack.c.bf16 %v515, %v514
  %v536 = vpack.c.bf16 %v517, %v516
  %v537 = vpack.c.bf16 %v519, %v518
  %v538 = vpack.c.bf16 %v521, %v520
  %v539 = vpack.c.bf16 %v523, %v522
  %v540 = vld [vmem:[%s4] sm:$0xf]
  %v541 = vld [vmem:[%s4 + $0x4] sm:$0xf]
  %v542 = vld [vmem:[%s4 + $0x8] sm:$0xf]
  %v543 = vld [vmem:[%s4 + $0xc] sm:$0xf]
  %v544 = vld [vmem:[%s1 + $0x2] ss:$0 sm:$0xff]
  %v549 = vunpack.c.l.b16 %v540
  %v550 = vunpack.c.l.b16 %v541
  %v551 = vunpack.c.l.b16 %v542
  %v552 = vunpack.c.l.b16 %v543
  %v553 = vpack.c.b16 %v550, %v549
  %v554 = vpack.c.b16 %v552, %v551
  %v558 = vsel %vm354, %v524, 0
  %v561 = vsel %vm354, %v525, 0
  %v564 = vsel %vm354, %v526, 0
  %v567 = vsel %vm354, %v527, 0
  %v570 = vsel %vm354, %v528, 0
  %v573 = vsel %vm354, %v529, 0
  %v576 = vsel %vm354, %v530, 0
  %v579 = vsel %vm354, %v531, 0
  %v582 = vsel %vm354, %v532, 0
  %v585 = vsel %vm354, %v533, 0
  %v588 = vsel %vm354, %v534, 0
  %v591 = vsel %vm354, %v535, 0
  %v594 = vsel %vm354, %v536, 0
  %v597 = vsel %vm354, %v537, 0
  %v600 = vsel %vm354, %v538, 0
  %v603 = vsel %vm354, %v539, 0
  %605 = vmatpush.bf16.msra.mxu0 0
  %606 = vmatpush.bf16.msra.mxu0 0
  %607 = vmatpush.bf16.msra.mxu0 0
  %608 = vmatpush.bf16.msra.mxu0 0
  %609 = vmatpush.bf16.msra.mxu0 0
  %610 = vmatpush.bf16.msra.mxu0 0
  %611 = vmatpush.bf16.msra.mxu0 %v554
  %612 = vmatpush.bf16.msra.mxu0 %v553
  %613 = vmatmul.bf16.gmra.mxu0 %v558
  %v614 = vpop.f32.mrf.mxu0
  %v615 = vadd.f32 %v544, %v614
  %v616 = vpop.f32.mrf.mxu0
  %v617 = vadd.f32 %v544, %v616
  %618 = vmatmul.bf16.gmra.mxu0 %v561
  %v619 = vpop.f32.mrf.mxu0
  %v620 = vadd.f32 %v544, %v619
  %v621 = vpop.f32.mrf.mxu0
  %v622 = vadd.f32 %v544, %v621
  %623 = vmatmul.bf16.gmra.mxu0 %v564
  %v624 = vpop.f32.mrf.mxu0
  %v625 = vadd.f32 %v544, %v624
  %v626 = vpop.f32.mrf.mxu0
  %v627 = vadd.f32 %v544, %v626
  %628 = vmatmul.bf16.gmra.mxu0 %v567
  %v629 = vpop.f32.mrf.mxu0
  %v630 = vadd.f32 %v544, %v629
  %v631 = vpop.f32.mrf.mxu0
  %v632 = vadd.f32 %v544, %v631
  %633 = vmatmul.bf16.gmra.mxu0 %v570
  %v634 = vpop.f32.mrf.mxu0
  %v635 = vadd.f32 %v544, %v634
  %v636 = vpop.f32.mrf.mxu0
  %v637 = vadd.f32 %v544, %v636
  %638 = vmatmul.bf16.gmra.mxu0 %v573
  %v639 = vpop.f32.mrf.mxu0
  %v640 = vadd.f32 %v544, %v639
  %v641 = vpop.f32.mrf.mxu0
  %v642 = vadd.f32 %v544, %v641
  %643 = vmatmul.bf16.gmra.mxu0 %v576
  %v644 = vpop.f32.mrf.mxu0
  %v645 = vadd.f32 %v544, %v644
  %v646 = vpop.f32.mrf.mxu0
  %v647 = vadd.f32 %v544, %v646
  %648 = vmatmul.bf16.gmra.mxu0 %v579
  %v649 = vpop.f32.mrf.mxu0
  %v650 = vadd.f32 %v544, %v649
  %v651 = vpop.f32.mrf.mxu0
  %v652 = vadd.f32 %v544, %v651
  %653 = vmatmul.bf16.gmra.mxu0 %v582
  %v654 = vpop.f32.mrf.mxu0
  %v655 = vadd.f32 %v544, %v654
  %v656 = vpop.f32.mrf.mxu0
  %v657 = vadd.f32 %v544, %v656
  %658 = vmatmul.bf16.gmra.mxu0 %v585
  %v659 = vpop.f32.mrf.mxu0
  %v660 = vadd.f32 %v544, %v659
  %v661 = vpop.f32.mrf.mxu0
  %v662 = vadd.f32 %v544, %v661
  %663 = vmatmul.bf16.gmra.mxu0 %v588
  %v664 = vpop.f32.mrf.mxu0
  %v665 = vadd.f32 %v544, %v664
  %v666 = vpop.f32.mrf.mxu0
  %v667 = vadd.f32 %v544, %v666
  %668 = vmatmul.bf16.gmra.mxu0 %v591
  %v669 = vpop.f32.mrf.mxu0
  %v670 = vadd.f32 %v544, %v669
  %v671 = vpop.f32.mrf.mxu0
  %v672 = vadd.f32 %v544, %v671
  %673 = vmatmul.bf16.gmra.mxu0 %v594
  %v674 = vpop.f32.mrf.mxu0
  %v675 = vadd.f32 %v544, %v674
  %v676 = vpop.f32.mrf.mxu0
  %v677 = vadd.f32 %v544, %v676
  %678 = vmatmul.bf16.gmra.mxu0 %v597
  %v679 = vpop.f32.mrf.mxu0
  %v680 = vadd.f32 %v544, %v679
  %v681 = vpop.f32.mrf.mxu0
  %v682 = vadd.f32 %v544, %v681
  %683 = vmatmul.bf16.gmra.mxu0 %v600
  %v684 = vpop.f32.mrf.mxu0
  %v685 = vadd.f32 %v544, %v684
  %v686 = vpop.f32.mrf.mxu0
  %v687 = vadd.f32 %v544, %v686
  %688 = vmatmul.bf16.gmra.mxu0 %v603
  %v689 = vpop.f32.mrf.mxu0
  %v690 = vadd.f32 %v544, %v689
  %v691 = vpop.f32.mrf.mxu0
  %v692 = vadd.f32 %v544, %v691
  %693 = vdwg.mxu0
  %v694 = vmax.f32 %v615, 0.0
  %v695 = vmax.f32 %v617, 0.0
  %v696 = vmax.f32 %v620, 0.0
  %v697 = vmax.f32 %v622, 0.0
  %v698 = vmax.f32 %v625, 0.0
  %v699 = vmax.f32 %v627, 0.0
  %v700 = vmax.f32 %v630, 0.0
  %v701 = vmax.f32 %v632, 0.0
  %v702 = vmax.f32 %v635, 0.0
  %v703 = vmax.f32 %v637, 0.0
  %v704 = vmax.f32 %v640, 0.0
  %v705 = vmax.f32 %v642, 0.0
  %v706 = vmax.f32 %v645, 0.0
  %v707 = vmax.f32 %v647, 0.0
  %v708 = vmax.f32 %v650, 0.0
  %v709 = vmax.f32 %v652, 0.0
  %v710 = vmax.f32 %v655, 0.0
  %v711 = vmax.f32 %v657, 0.0
  %v712 = vmax.f32 %v660, 0.0
  %v713 = vmax.f32 %v662, 0.0
  %v714 = vmax.f32 %v665, 0.0
  %v715 = vmax.f32 %v667, 0.0
  %v716 = vmax.f32 %v670, 0.0
  %v717 = vmax.f32 %v672, 0.0
  %v718 = vmax.f32 %v675, 0.0
  %v719 = vmax.f32 %v677, 0.0
  %v720 = vmax.f32 %v680, 0.0
  %v721 = vmax.f32 %v682, 0.0
  %v722 = vmax.f32 %v685, 0.0
  %v723 = vmax.f32 %v687, 0.0
  %v724 = vmax.f32 %v690, 0.0
  %v725 = vmax.f32 %v692, 0.0
  %v726 = vmax.f32 %v694, %v696
  %v727 = vmax.f32 %v695, %v697
  %v728 = vmax.f32 %v710, %v712
  %v729 = vmax.f32 %v711, %v713
  %v730 = vmax.f32 %v698, %v700
  %v731 = vmax.f32 %v699, %v701
  %v732 = vmax.f32 %v714, %v716
  %v733 = vmax.f32 %v715, %v717
  %v734 = vmax.f32 %v702, %v704
  %v735 = vmax.f32 %v703, %v705
  %v736 = vmax.f32 %v718, %v720
  %v737 = vmax.f32 %v719, %v721
  %v738 = vmax.f32 %v706, %v708
  %v739 = vmax.f32 %v707, %v709
  %v740 = vmax.f32 %v722, %v724
  %v741 = vmax.f32 %v723, %v725
  %v742 = vmax.f32 %v726, %v730
  %v743 = vmax.f32 %v727, %v731
  %v744 = vmax.f32 %v728, %v732
  %v745 = vmax.f32 %v729, %v733
  %v746 = vmax.f32 %v734, %v738
  %v747 = vmax.f32 %v735, %v739
  %v748 = vmax.f32 %v736, %v740
  %v749 = vmax.f32 %v737, %v741
  %v750 = vmax.f32 %v742, %v746
  %v751 = vmax.f32 %v743, %v747
  %v752 = vmax.f32 %v744, %v748
  %v753 = vmax.f32 %v745, %v749
  %v754 = vld [vmem:[%s5] sm:$0xff]
  %v755 = vld [vmem:[%s5 + $0x8] sm:$0xf]
  %v756 = vld [vmem:[%s5 + $0xc] sm:$0xff]
  %v757 = vld [vmem:[%s5 + $0x14] sm:$0xf]
  %v758 = vld [vmem:[%s5 + $0x18] sm:$0xff]
  %v759 = vld [vmem:[%s5 + $0x20] sm:$0xf]
  %v760 = vld [vmem:[%s5 + $0x24] sm:$0xff]
  %v761 = vld [vmem:[%s5 + $0x2c] sm:$0xf]
  %v762 = vld [vmem:[%s5 + $0x30] sm:$0xff]
  %v763 = vld [vmem:[%s5 + $0x38] sm:$0xf]
  %v764 = vld [vmem:[%s5 + $0x3c] sm:$0xff]
  %v765 = vld [vmem:[%s5 + $0x44] sm:$0xf]
  %v766 = vld [vmem:[%s5 + $0x48] sm:$0xff]
  %v767 = vld [vmem:[%s5 + $0x50] sm:$0xf]
  %v768 = vld [vmem:[%s5 + $0x54] sm:$0xff]
  %v769 = vld [vmem:[%s5 + $0x5c] sm:$0xf]
  %v770 = vld [vmem:[%s6] sm:$0xf]
  %v771 = vld [vmem:[%s6 + $0x4] sm:$0xf]
  %v772 = vld [vmem:[%s6 + $0x8] sm:$0xf]
  %v773 = vld [vmem:[%s6 + $0xc] sm:$0xf]
  %v774 = vld [vmem:[%s6 + $0x10] sm:$0xf]
  %v775 = vld [vmem:[%s6 + $0x14] sm:$0xf]
  %v776 = vld [vmem:[%s6 + $0x18] sm:$0xf]
  %v777 = vld [vmem:[%s6 + $0x1c] sm:$0xf]
  %v778 = vld [vmem:[%s7] sm:$0xf]
  %v779 = vld [vmem:[%s7 + $0x4] sm:$0xf]
  %v780 = vld [vmem:[%s7 + $0x8] sm:$0xf]
  %v781 = vld [vmem:[%s7 + $0xc] sm:$0xf]
  %v782 = vld [vmem:[%s7 + $0x10] sm:$0xf]
  %v783 = vld [vmem:[%s7 + $0x14] sm:$0xf]
  %v784 = vld [vmem:[%s7 + $0x18] sm:$0xf]
  %v785 = vld [vmem:[%s7 + $0x1c] sm:$0xf]
  %v786 = vld [vmem:[%s8] sm:$0xf]
  %v787 = vld [vmem:[%s8 + $0x4] sm:$0xf]
  %v788 = vld [vmem:[%s8 + $0x8] sm:$0xf]
  %v789 = vld [vmem:[%s8 + $0xc] sm:$0xf]
  %v790 = vld [vmem:[%s8 + $0x10] sm:$0xf]
  %v791 = vld [vmem:[%s8 + $0x14] sm:$0xf]
  %v792 = vld [vmem:[%s8 + $0x18] sm:$0xf]
  %v793 = vld [vmem:[%s8 + $0x1c] sm:$0xf]
  %v794 = vld [vmem:[%s8 + $0x20] sm:$0xf]
  %v795 = vld [vmem:[%s8 + $0x24] sm:$0xf]
  %v796 = vld [vmem:[%s8 + $0x28] sm:$0xf]
  %v797 = vld [vmem:[%s8 + $0x2c] sm:$0xf]
  %v798 = vld [vmem:[%s8 + $0x30] sm:$0xf]
  %v799 = vld [vmem:[%s8 + $0x34] sm:$0xf]
  %v800 = vld [vmem:[%s8 + $0x38] sm:$0xf]
  %v801 = vld [vmem:[%s8 + $0x3c] sm:$0xf]
  %s802 = scalar_lea.vmem %s1, 3
  %v803 = vld [vmem:[%s802] ss:$8 sm:$0x7]
  %v804 = vld [vmem:[%s1 + $0x4] ss:$0 sm:$0xff]
  %v805 = vld [vmem:[%s1 + $0x5] ss:$0 sm:$0xff]
  %v806 = vld [vmem:[%s1 + $0x6] ss:$0 sm:$0xff]
  %v807 = vld [vmem:[%s1 + $0x7] ss:$0 sm:$0xff]
  %v808 = vld [vmem:[%s1 + $0x18] ss:$0 sm:$0xff]
  %v809 = vld [vmem:[%s1 + $0x19] ss:$0 sm:$0xff]
  %v810 = vld [vmem:[%s1 + $0x1a] ss:$0 sm:$0xff]
  %vm811 = vcmask 523264
  %v812 = vsel %vm811, %v750, 0.0
  %813 = vadd.xlane.f32.xlu0 %v812
  %v814 = vpop.xlane.xlu0 %813
  %v815 = vsel %vm811, %v751, 0.0
  %816 = vadd.xlane.f32.xlu0 %v815
  %v817 = vpop.xlane.xlu0 %816
  %v818 = vsel %vm811, %v752, 0.0
  %819 = vadd.xlane.f32.xlu0 %v818
  %v820 = vpop.xlane.xlu0 %819
  %v821 = vsel %vm811, %v753, 0.0
  %822 = vadd.xlane.f32.xlu0 %v821
  %v823 = vpop.xlane.xlu0 %822
  %v824 = vrcp.pop 64.0
  %v825 = vmul.f32 64.0, %v824
  %v826 = vsub.f32 1.0, %v825
  %v827 = vmul.f32 %v824, %v826
  %v828 = vadd.f32 %v824, %v827
  %vm829 = vweird.f32 %v824
  %v830 = vsel %vm829, %v824, %v828
  %v831 = vmul.f32 %v814, %v830
  %v832 = vmul.f32 %v817, %v830
  %v833 = vmul.f32 %v820, %v830
  %v834 = vmul.f32 %v823, %v830
  %v835 = vsub.f32 %v750, %v831
  %v836 = vsub.f32 %v751, %v832
  %v837 = vsub.f32 %v752, %v833
  %v838 = vsub.f32 %v753, %v834
  %v839 = vmul.f32 %v835, %v835
  %v840 = vmul.f32 %v836, %v836
  %v841 = vmul.f32 %v837, %v837
  %v842 = vmul.f32 %v838, %v838
  %v843 = vsel %vm811, %v839, 0.0
  %844 = vadd.xlane.f32.xlu0 %v843
  %v845 = vpop.xlane.xlu0 %844
  %v846 = vsel %vm811, %v840, 0.0
  %847 = vadd.xlane.f32.xlu0 %v846
  %v848 = vpop.xlane.xlu0 %847
  %v849 = vsel %vm811, %v841, 0.0
  %850 = vadd.xlane.f32.xlu0 %v849
  %v851 = vpop.xlane.xlu0 %850
  %v852 = vsel %vm811, %v842, 0.0
  %853 = vadd.xlane.f32.xlu0 %v852
  %v854 = vpop.xlane.xlu0 %853
  %v855 = vmul.f32 %v845, %v830
  %v856 = vmul.f32 %v848, %v830
  %v857 = vmul.f32 %v851, %v830
  %v858 = vmul.f32 %v854, %v830
  %v859 = vadd.f32 %v855, 1e-05
  %v860 = vadd.f32 %v856, 1e-05
  %v861 = vadd.f32 %v857, 1e-05
  %v862 = vadd.f32 %v858, 1e-05
  %v863 = vrsqrt.pop %v859
  %v864 = vmul.f32 %v863, %v859
  %v865 = vmul.f32 %v864, %v863
  %v866 = vmul.f32 0.5, %v865
  %v867 = vsub.f32 1.5, %v866
  %v868 = vmul.f32 %v863, %v867
  %vm869 = vweird.f32 %v859
  %vm870 = vweird.f32 %v863
  %vm871 = vmor %vm869, %vm870
  %v872 = vsel %vm871, %v863, %v868
  %v873 = vrsqrt.pop %v860
  %v874 = vmul.f32 %v873, %v860
  %v875 = vmul.f32 %v874, %v873
  %v876 = vmul.f32 0.5, %v875
  %v877 = vsub.f32 1.5, %v876
  %v878 = vmul.f32 %v873, %v877
  %vm879 = vweird.f32 %v860
  %vm880 = vweird.f32 %v873
  %vm881 = vmor %vm879, %vm880
  %v882 = vsel %vm881, %v873, %v878
  %v883 = vrsqrt.pop %v861
  %v884 = vmul.f32 %v883, %v861
  %v885 = vmul.f32 %v884, %v883
  %v886 = vmul.f32 0.5, %v885
  %v887 = vsub.f32 1.5, %v886
  %v888 = vmul.f32 %v883, %v887
  %vm889 = vweird.f32 %v861
  %vm890 = vweird.f32 %v883
  %vm891 = vmor %vm889, %vm890
  %v892 = vsel %vm891, %v883, %v888
  %v893 = vrsqrt.pop %v862
  %v894 = vmul.f32 %v893, %v862
  %v895 = vmul.f32 %v894, %v893
  %v896 = vmul.f32 0.5, %v895
  %v897 = vsub.f32 1.5, %v896
  %v898 = vmul.f32 %v893, %v897
  %vm899 = vweird.f32 %v862
  %vm900 = vweird.f32 %v893
  %vm901 = vmor %vm899, %vm900
  %v902 = vsel %vm901, %v893, %v898
  %v903 = vmul.f32 %v835, %v872
  %v904 = vmul.f32 %v836, %v882
  %v905 = vmul.f32 %v837, %v892
  %v906 = vmul.f32 %v838, %v902
  %v907 = vmul.f32 %v903, %v805
  %v908 = vmul.f32 %v904, %v805
  %v909 = vmul.f32 %v905, %v805
  %v910 = vmul.f32 %v906, %v805
  %v911 = vadd.f32 %v907, %v806
  %v912 = vadd.f32 %v908, %v806
  %v913 = vadd.f32 %v909, %v806
  %v914 = vadd.f32 %v910, %v806
  %v915 = vpack.c.bf16 %v912, %v911
  %v916 = vpack.c.bf16 %v914, %v913
  %v918 = vperm.slane %v803, 0
  %v919 = vperm.slane %v803, 1
  %v920 = vperm.slane %v803, 2
  %v940 = vunpack.c.l.b16 %v754
  %v941 = vunpack.c.h.b16 %v754
  %v942 = vunpack.c.l.b16 %v755
  %v943 = vunpack.c.l.b16 %v756
  %v944 = vunpack.c.h.b16 %v756
  %v945 = vunpack.c.l.b16 %v757
  %v946 = vunpack.c.l.b16 %v758
  %v947 = vunpack.c.h.b16 %v758
  %v948 = vunpack.c.l.b16 %v759
  %v949 = vunpack.c.l.b16 %v760
  %v950 = vunpack.c.h.b16 %v760
  %v951 = vunpack.c.l.b16 %v761
  %v952 = vunpack.c.l.b16 %v762
  %v953 = vunpack.c.h.b16 %v762
  %v954 = vunpack.c.l.b16 %v763
  %v955 = vunpack.c.l.b16 %v764
  %v956 = vunpack.c.h.b16 %v764
  %v957 = vunpack.c.l.b16 %v765
  %v958 = vunpack.c.l.b16 %v766
  %v959 = vunpack.c.h.b16 %v766
  %v960 = vunpack.c.l.b16 %v767
  %v961 = vunpack.c.l.b16 %v768
  %v962 = vunpack.c.h.b16 %v768
  %v963 = vunpack.c.l.b16 %v769
  %v964 = vpack.c.b16 %v943, %v940
  %v965 = vpack.c.b16 %v944, %v941
  %v966 = vpack.c.b16 %v945, %v942
  %v967 = vpack.c.b16 %v949, %v946
  %v968 = vpack.c.b16 %v950, %v947
  %v969 = vpack.c.b16 %v951, %v948
  %v970 = vpack.c.b16 %v955, %v952
  %v971 = vpack.c.b16 %v956, %v953
  %v972 = vpack.c.b16 %v957, %v954
  %v973 = vpack.c.b16 %v961, %v958
  %v974 = vpack.c.b16 %v962, %v959
  %v975 = vpack.c.b16 %v963, %v960
  %v989 = vsel %vm811, %v915, 0
  %v992 = vsel %vm811, %v916, 0
  %994 = vmatpush.bf16.msra.mxu0 0
  %995 = vmatpush.bf16.msra.mxu0 0
  %996 = vmatpush.bf16.msra.mxu0 0
  %997 = vmatpush.bf16.msra.mxu0 0
  %998 = vmatpush.bf16.msra.mxu0 %v973
  %999 = vmatpush.bf16.msra.mxu0 %v970
  %1000 = vmatpush.bf16.msra.mxu0 %v967
  %1001 = vmatpush.bf16.msra.mxu0 %v964
  %1002 = vmatmul.bf16.gmra.mxu0 %v989
  %v1003 = vpop.f32.mrf.mxu0
  %v1004 = vadd.f32 %v918, %v1003
  %v1005 = vpop.f32.mrf.mxu0
  %v1006 = vadd.f32 %v918, %v1005
  %1007 = vmatmul.bf16.gmra.mxu0 %v992
  %v1008 = vpop.f32.mrf.mxu0
  %v1009 = vadd.f32 %v918, %v1008
  %v1010 = vpop.f32.mrf.mxu0
  %v1011 = vadd.f32 %v918, %v1010
  %1012 = vdwg.mxu0
  %1013 = vmatpush.bf16.msra.mxu0 0
  %1014 = vmatpush.bf16.msra.mxu0 0
  %1015 = vmatpush.bf16.msra.mxu0 0
  %1016 = vmatpush.bf16.msra.mxu0 0
  %1017 = vmatpush.bf16.msra.mxu0 %v974
  %1018 = vmatpush.bf16.msra.mxu0 %v971
  %1019 = vmatpush.bf16.msra.mxu0 %v968
  %1020 = vmatpush.bf16.msra.mxu0 %v965
  %1021 = vmatmul.bf16.gmra.mxu0 %v989
  %v1022 = vpop.f32.mrf.mxu0
  %v1023 = vadd.f32 %v919, %v1022
  %v1024 = vpop.f32.mrf.mxu0
  %v1025 = vadd.f32 %v919, %v1024
  %1026 = vmatmul.bf16.gmra.mxu0 %v992
  %v1027 = vpop.f32.mrf.mxu0
  %v1028 = vadd.f32 %v919, %v1027
  %v1029 = vpop.f32.mrf.mxu0
  %v1030 = vadd.f32 %v919, %v1029
  %1031 = vdwg.mxu0
  %1032 = vmatpush.bf16.msra.mxu0 0
  %1033 = vmatpush.bf16.msra.mxu0 0
  %1034 = vmatpush.bf16.msra.mxu0 0
  %1035 = vmatpush.bf16.msra.mxu0 0
  %1036 = vmatpush.bf16.msra.mxu0 %v975
  %1037 = vmatpush.bf16.msra.mxu0 %v972
  %1038 = vmatpush.bf16.msra.mxu0 %v969
  %1039 = vmatpush.bf16.msra.mxu0 %v966
  %1040 = vmatmul.bf16.gmra.mxu0 %v989
  %v1041 = vpop.f32.mrf.mxu0
  %v1042 = vadd.f32 %v920, %v1041
  %v1043 = vpop.f32.mrf.mxu0
  %v1044 = vadd.f32 %v920, %v1043
  %1045 = vmatmul.bf16.gmra.mxu0 %v992
  %v1046 = vpop.f32.mrf.mxu0
  %v1047 = vadd.f32 %v920, %v1046
  %v1048 = vpop.f32.mrf.mxu0
  %v1049 = vadd.f32 %v920, %v1048
  %1050 = vdwg.mxu0
  %v1051 = vpack.c.bf16 %v1023, %v1004
  %v1052 = vpack.c.bf16 %v1042, %v1042
  %v1053 = vpack.c.bf16 %v1025, %v1006
  %v1054 = vpack.c.bf16 %v1044, %v1044
  %v1055 = vpack.c.bf16 %v1028, %v1009
  %v1056 = vpack.c.bf16 %v1047, %v1047
  %v1057 = vpack.c.bf16 %v1030, %v1011
  %v1058 = vpack.c.bf16 %v1049, %v1049
  %v1063 = vrot.slane %v1051, 4
  %v1064 = vrot.slane %v1053, 4
  %v1065 = vrot.slane %v1055, 4
  %v1066 = vrot.slane %v1057, 4
  %v1067 = vunpack.c.l.b16 %v1051
  %v1068 = vunpack.c.l.b16 %v1053
  %v1069 = vpack.c.b16 %v1068, %v1067
  %v1070 = vunpack.c.l.b16 %v1063
  %v1071 = vunpack.c.l.b16 %v1064
  %v1072 = vpack.c.b16 %v1071, %v1070
  %vm1073 = vcmask 130048
  %v1075 = vsel %vm1073, %v1069, 0
  %v1078 = vsel %vm1073, %v1072, 0
  %1080 = vmatpush.bf16.xpose.msra.mxu0 0
  %1081 = vmatpush.bf16.xpose.msra.mxu0 0
  %1082 = vmatpush.bf16.xpose.msra.mxu0 0
  %1083 = vmatpush.bf16.xpose.msra.mxu0 0
  %1084 = vmatpush.bf16.xpose.msra.mxu0 0
  %1085 = vmatpush.bf16.xpose.msra.mxu0 0
  %1086 = vmatpush.bf16.xpose.msra.mxu0 0
  %1087 = vmatpush.bf16.xpose.msra.mxu0 %v1078
  %1088 = vmatmul.bf16.gmra.mxu0 %v1075
  %v1089 = vpop.f32.mrf.mxu0
  %v1090 = vadd.f32 0.0, %v1089
  %v1091 = vpop.f32.mrf.mxu0
  %v1092 = vadd.f32 0.0, %v1091
  %1093 = vdwg.mxu0
  %v1094 = vunpack.c.l.b16 %v1055
  %v1095 = vunpack.c.l.b16 %v1057
  %v1096 = vpack.c.b16 %v1095, %v1094
  %v1097 = vunpack.c.l.b16 %v1065
  %v1098 = vunpack.c.l.b16 %v1066
  %v1099 = vpack.c.b16 %v1098, %v1097
  %v1101 = vsel %vm1073, %v1096, 0
  %v1104 = vsel %vm1073, %v1099, 0
  %1106 = vmatpush.bf16.xpose.msra.mxu0 0
  %1107 = vmatpush.bf16.xpose.msra.mxu0 0
  %1108 = vmatpush.bf16.xpose.msra.mxu0 0
  %1109 = vmatpush.bf16.xpose.msra.mxu0 0
  %1110 = vmatpush.bf16.xpose.msra.mxu0 0
  %1111 = vmatpush.bf16.xpose.msra.mxu0 0
  %1112 = vmatpush.bf16.xpose.msra.mxu0 0
  %1113 = vmatpush.bf16.xpose.msra.mxu0 %v1104
  %1114 = vmatmul.bf16.gmra.mxu0 %v1101
  %v1115 = vpop.f32.mrf.mxu0
  %v1116 = vadd.f32 0.0, %v1115
  %v1117 = vpop.f32.mrf.mxu0
  %v1118 = vadd.f32 0.0, %v1117
  %1119 = vdwg.mxu0
  %v1120 = vmul.f32 %v1090, 0.25
  %v1121 = vmul.f32 %v1092, 0.25
  %v1122 = vmul.f32 %v1116, 0.25
  %v1123 = vmul.f32 %v1118, 0.25
  %v1124 = vsel %vm1073, %v1120, -inf
  %1125 = vmax.xlane.f32.xlu0 %v1124
  %v1126 = vpop.xlane.xlu0 %1125
  %v1127 = vsel %vm1073, %v1121, -inf
  %1128 = vmax.xlane.f32.xlu0 %v1127
  %v1129 = vpop.xlane.xlu0 %1128
  %v1130 = vsel %vm1073, %v1122, -inf
  %1131 = vmax.xlane.f32.xlu0 %v1130
  %v1132 = vpop.xlane.xlu0 %1131
  %v1133 = vsel %vm1073, %v1123, -inf
  %1134 = vmax.xlane.f32.xlu0 %v1133
  %v1135 = vpop.xlane.xlu0 %1134
  %v1136 = vsub.f32 %v1120, %v1126
  %v1137 = vsub.f32 %v1121, %v1129
  %v1138 = vsub.f32 %v1122, %v1132
  %v1139 = vsub.f32 %v1123, %v1135
  %v1140 = vmul.f32 %v1136, 1.442695
  %v1141 = vpow.pop %v1140
  %v1142 = vmul.f32 %v1137, 1.442695
  %v1143 = vpow.pop %v1142
  %v1144 = vmul.f32 %v1138, 1.442695
  %v1145 = vpow.pop %v1144
  %v1146 = vmul.f32 %v1139, 1.442695
  %v1147 = vpow.pop %v1146
  %v1148 = vsel %vm1073, %v1141, 0.0
  %1149 = vadd.xlane.f32.xlu0 %v1148
  %v1150 = vpop.xlane.xlu0 %1149
  %v1151 = vsel %vm1073, %v1143, 0.0
  %1152 = vadd.xlane.f32.xlu0 %v1151
  %v1153 = vpop.xlane.xlu0 %1152
  %v1154 = vsel %vm1073, %v1145, 0.0
  %1155 = vadd.xlane.f32.xlu0 %v1154
  %v1156 = vpop.xlane.xlu0 %1155
  %v1157 = vsel %vm1073, %v1147, 0.0
  %1158 = vadd.xlane.f32.xlu0 %v1157
  %v1159 = vpop.xlane.xlu0 %1158
  %v1160 = vrcp.pop %v1150
  %v1161 = vrcp.pop %v1153
  %v1162 = vrcp.pop %v1156
  %v1163 = vrcp.pop %v1159
  %v1164 = vmul.f32 %v1141, %v1160
  %v1165 = vmul.f32 %v1143, %v1161
  %v1166 = vmul.f32 %v1145, %v1162
  %v1167 = vmul.f32 %v1147, %v1163
  %v1168 = vpack.c.bf16 %v1164, %v1164
  %v1169 = vpack.c.bf16 %v1165, %v1165
  %v1170 = vpack.c.bf16 %v1166, %v1166
  %v1171 = vpack.c.bf16 %v1167, %v1167
  %v1174 = vunpack.c.l.b16 %v1168
  %v1175 = vunpack.c.l.b16 %v1169
  %v1176 = vpack.c.b16 %v1175, %v1174
  %v1179 = vunpack.c.l.b16 %v1052
  %v1180 = vunpack.c.l.b16 %v1054
  %v1181 = vpack.c.b16 %v1180, %v1179
  %v1184 = vsel %vm1073, %v1176, 0
  %1186 = vmatpush.bf16.msra.mxu0 0
  %1187 = vmatpush.bf16.msra.mxu0 0
  %1188 = vmatpush.bf16.msra.mxu0 0
  %1189 = vmatpush.bf16.msra.mxu0 0
  %1190 = vmatpush.bf16.msra.mxu0 0
  %1191 = vmatpush.bf16.msra.mxu0 0
  %1192 = vmatpush.bf16.msra.mxu0 0
  %1193 = vmatpush.bf16.msra.mxu0 %v1181
  %1194 = vmatmul.bf16.gmra.mxu0 %v1184
  %v1195 = vpop.f32.mrf.mxu0
  %v1196 = vadd.f32 0.0, %v1195
  %v1197 = vpop.f32.mrf.mxu0
  %v1198 = vadd.f32 0.0, %v1197
  %1199 = vdwg.mxu0
  %v1202 = vunpack.c.l.b16 %v1170
  %v1203 = vunpack.c.l.b16 %v1171
  %v1204 = vpack.c.b16 %v1203, %v1202
  %v1207 = vunpack.c.l.b16 %v1056
  %v1208 = vunpack.c.l.b16 %v1058
  %v1209 = vpack.c.b16 %v1208, %v1207
  %v1212 = vsel %vm1073, %v1204, 0
  %1214 = vmatpush.bf16.msra.mxu0 0
  %1215 = vmatpush.bf16.msra.mxu0 0
  %1216 = vmatpush.bf16.msra.mxu0 0
  %1217 = vmatpush.bf16.msra.mxu0 0
  %1218 = vmatpush.bf16.msra.mxu0 0
  %1219 = vmatpush.bf16.msra.mxu0 0
  %1220 = vmatpush.bf16.msra.mxu0 0
  %1221 = vmatpush.bf16.msra.mxu0 %v1209
  %1222 = vmatmul.bf16.gmra.mxu0 %v1212
  %v1223 = vpop.f32.mrf.mxu0
  %v1224 = vadd.f32 0.0, %v1223
  %v1225 = vpop.f32.mrf.mxu0
  %v1226 = vadd.f32 0.0, %v1225
  %1227 = vdwg.mxu0
  %1228 = vrot.lane.b32.xlu0 %v1051, 112
  %v1229 = vpop.permute.xlu0 %1228
  %1230 = vrot.lane.b32.xlu0 %v1053, 112
  %v1231 = vpop.permute.xlu0 %1230
  %1232 = vrot.lane.b32.xlu0 %v1055, 112
  %v1233 = vpop.permute.xlu0 %1232
  %1234 = vrot.lane.b32.xlu0 %v1057, 112
  %v1235 = vpop.permute.xlu0 %1234
  %v1236 = vrot.slane %v1229, 4
  %v1237 = vrot.slane %v1231, 4
  %v1238 = vrot.slane %v1233, 4
  %v1239 = vrot.slane %v1235, 4
  %1240 = vrot.lane.b32.xlu0 %v1069, 112
  %v1241 = vpop.permute.xlu0 %1240
  %v1242 = vunpack.c.l.b16 %v1236
  %v1243 = vunpack.c.l.b16 %v1237
  %v1244 = vpack.c.b16 %v1243, %v1242
  %v1246 = vsel %vm1073, %v1241, 0
  %v1249 = vsel %vm1073, %v1244, 0
  %1251 = vmatpush.bf16.xpose.msra.mxu0 0
  %1252 = vmatpush.bf16.xpose.msra.mxu0 0
  %1253 = vmatpush.bf16.xpose.msra.mxu0 0
  %1254 = vmatpush.bf16.xpose.msra.mxu0 0
  %1255 = vmatpush.bf16.xpose.msra.mxu0 0
  %1256 = vmatpush.bf16.xpose.msra.mxu0 0
  %1257 = vmatpush.bf16.xpose.msra.mxu0 0
  %1258 = vmatpush.bf16.xpose.msra.mxu0 %v1249
  %1259 = vmatmul.bf16.gmra.mxu0 %v1246
  %v1260 = vpop.f32.mrf.mxu0
  %v1261 = vadd.f32 0.0, %v1260
  %v1262 = vpop.f32.mrf.mxu0
  %v1263 = vadd.f32 0.0, %v1262
  %1264 = vdwg.mxu0
  %1265 = vrot.lane.b32.xlu0 %v1096, 112
  %v1266 = vpop.permute.xlu0 %1265
  %v1267 = vunpack.c.l.b16 %v1238
  %v1268 = vunpack.c.l.b16 %v1239
  %v1269 = vpack.c.b16 %v1268, %v1267
  %v1271 = vsel %vm1073, %v1266, 0
  %v1274 = vsel %vm1073, %v1269, 0
  %1276 = vmatpush.bf16.xpose.msra.mxu0 0
  %1277 = vmatpush.bf16.xpose.msra.mxu0 0
  %1278 = vmatpush.bf16.xpose.msra.mxu0 0
  %1279 = vmatpush.bf16.xpose.msra.mxu0 0
  %1280 = vmatpush.bf16.xpose.msra.mxu0 0
  %1281 = vmatpush.bf16.xpose.msra.mxu0 0
  %1282 = vmatpush.bf16.xpose.msra.mxu0 0
  %1283 = vmatpush.bf16.xpose.msra.mxu0 %v1274
  %1284 = vmatmul.bf16.gmra.mxu0 %v1271
  %v1285 = vpop.f32.mrf.mxu0
  %v1286 = vadd.f32 0.0, %v1285
  %v1287 = vpop.f32.mrf.mxu0
  %v1288 = vadd.f32 0.0, %v1287
  %1289 = vdwg.mxu0
  %v1290 = vmul.f32 %v1261, 0.25
  %v1291 = vmul.f32 %v1263, 0.25
  %v1292 = vmul.f32 %v1286, 0.25
  %v1293 = vmul.f32 %v1288, 0.25
  %v1294 = vsel %vm1073, %v1290, -inf
  %1295 = vmax.xlane.f32.xlu0 %v1294
  %v1296 = vpop.xlane.xlu0 %1295
  %v1297 = vsel %vm1073, %v1291, -inf
  %1298 = vmax.xlane.f32.xlu0 %v1297
  %v1299 = vpop.xlane.xlu0 %1298
  %v1300 = vsel %vm1073, %v1292, -inf
  %1301 = vmax.xlane.f32.xlu0 %v1300
  %v1302 = vpop.xlane.xlu0 %1301
  %v1303 = vsel %vm1073, %v1293, -inf
  %1304 = vmax.xlane.f32.xlu0 %v1303
  %v1305 = vpop.xlane.xlu0 %1304
  %v1306 = vsub.f32 %v1290, %v1296
  %v1307 = vsub.f32 %v1291, %v1299
  %v1308 = vsub.f32 %v1292, %v1302
  %v1309 = vsub.f32 %v1293, %v1305
  %v1310 = vmul.f32 %v1306, 1.442695
  %v1311 = vpow.pop %v1310
  %v1312 = vmul.f32 %v1307, 1.442695
  %v1313 = vpow.pop %v1312
  %v1314 = vmul.f32 %v1308, 1.442695
  %v1315 = vpow.pop %v1314
  %v1316 = vmul.f32 %v1309, 1.442695
  %v1317 = vpow.pop %v1316
  %v1318 = vsel %vm1073, %v1311, 0.0
  %1319 = vadd.xlane.f32.xlu0 %v1318
  %v1320 = vpop.xlane.xlu0 %1319
  %v1321 = vsel %vm1073, %v1313, 0.0
  %1322 = vadd.xlane.f32.xlu0 %v1321
  %v1323 = vpop.xlane.xlu0 %1322
  %v1324 = vsel %vm1073, %v1315, 0.0
  %1325 = vadd.xlane.f32.xlu0 %v1324
  %v1326 = vpop.xlane.xlu0 %1325
  %v1327 = vsel %vm1073, %v1317, 0.0
  %1328 = vadd.xlane.f32.xlu0 %v1327
  %v1329 = vpop.xlane.xlu0 %1328
  %v1330 = vrcp.pop %v1320
  %v1331 = vrcp.pop %v1323
  %v1332 = vrcp.pop %v1326
  %v1333 = vrcp.pop %v1329
  %v1334 = vmul.f32 %v1311, %v1330
  %v1335 = vmul.f32 %v1313, %v1331
  %v1336 = vmul.f32 %v1315, %v1332
  %v1337 = vmul.f32 %v1317, %v1333
  %v1338 = vpack.c.bf16 %v1334, %v1334
  %v1339 = vpack.c.bf16 %v1335, %v1335
  %v1340 = vpack.c.bf16 %v1336, %v1336
  %v1341 = vpack.c.bf16 %v1337, %v1337
  %v1344 = vunpack.c.l.b16 %v1338
  %v1345 = vunpack.c.l.b16 %v1339
  %v1346 = vpack.c.b16 %v1345, %v1344
  %1347 = vrot.lane.b32.xlu0 %v1181, 112
  %v1348 = vpop.permute.xlu0 %1347
  %v1351 = vsel %vm1073, %v1346, 0
  %1353 = vmatpush.bf16.msra.mxu0 0
  %1354 = vmatpush.bf16.msra.mxu0 0
  %1355 = vmatpush.bf16.msra.mxu0 0
  %1356 = vmatpush.bf16.msra.mxu0 0
  %1357 = vmatpush.bf16.msra.mxu0 0
  %1358 = vmatpush.bf16.msra.mxu0 0
  %1359 = vmatpush.bf16.msra.mxu0 0
  %1360 = vmatpush.bf16.msra.mxu0 %v1348
  %1361 = vmatmul.bf16.gmra.mxu0 %v1351
  %v1362 = vpop.f32.mrf.mxu0
  %v1363 = vadd.f32 0.0, %v1362
  %v1364 = vpop.f32.mrf.mxu0
  %v1365 = vadd.f32 0.0, %v1364
  %1366 = vdwg.mxu0
  %v1369 = vunpack.c.l.b16 %v1340
  %v1370 = vunpack.c.l.b16 %v1341
  %v1371 = vpack.c.b16 %v1370, %v1369
  %1372 = vrot.lane.b32.xlu0 %v1209, 112
  %v1373 = vpop.permute.xlu0 %1372
  %v1376 = vsel %vm1073, %v1371, 0
  %1378 = vmatpush.bf16.msra.mxu0 0
  %1379 = vmatpush.bf16.msra.mxu0 0
  %1380 = vmatpush.bf16.msra.mxu0 0
  %1381 = vmatpush.bf16.msra.mxu0 0
  %1382 = vmatpush.bf16.msra.mxu0 0
  %1383 = vmatpush.bf16.msra.mxu0 0
  %1384 = vmatpush.bf16.msra.mxu0 0
  %1385 = vmatpush.bf16.msra.mxu0 %v1373
  %1386 = vmatmul.bf16.gmra.mxu0 %v1376
  %v1387 = vpop.f32.mrf.mxu0
  %v1388 = vadd.f32 0.0, %v1387
  %v1389 = vpop.f32.mrf.mxu0
  %v1390 = vadd.f32 0.0, %v1389
  %1391 = vdwg.mxu0
  %1392 = vrot.lane.b32.xlu0 %v1051, 96
  %v1393 = vpop.permute.xlu0 %1392
  %1394 = vrot.lane.b32.xlu0 %v1053, 96
  %v1395 = vpop.permute.xlu0 %1394
  %1396 = vrot.lane.b32.xlu0 %v1055, 96
  %v1397 = vpop.permute.xlu0 %1396
  %1398 = vrot.lane.b32.xlu0 %v1057, 96
  %v1399 = vpop.permute.xlu0 %1398
  %v1400 = vrot.slane %v1393, 4
  %v1401 = vrot.slane %v1395, 4
  %v1402 = vrot.slane %v1397, 4
  %v1403 = vrot.slane %v1399, 4
  %1404 = vrot.lane.b32.xlu0 %v1069, 96
  %v1405 = vpop.permute.xlu0 %1404
  %v1406 = vunpack.c.l.b16 %v1400
  %v1407 = vunpack.c.l.b16 %v1401
  %v1408 = vpack.c.b16 %v1407, %v1406
  %v1410 = vsel %vm1073, %v1405, 0
  %v1413 = vsel %vm1073, %v1408, 0
  %1415 = vmatpush.bf16.xpose.msra.mxu0 0
  %1416 = vmatpush.bf16.xpose.msra.mxu0 0
  %1417 = vmatpush.bf16.xpose.msra.mxu0 0
  %1418 = vmatpush.bf16.xpose.msra.mxu0 0
  %1419 = vmatpush.bf16.xpose.msra.mxu0 0
  %1420 = vmatpush.bf16.xpose.msra.mxu0 0
  %1421 = vmatpush.bf16.xpose.msra.mxu0 0
  %1422 = vmatpush.bf16.xpose.msra.mxu0 %v1413
  %1423 = vmatmul.bf16.gmra.mxu0 %v1410
  %v1424 = vpop.f32.mrf.mxu0
  %v1425 = vadd.f32 0.0, %v1424
  %v1426 = vpop.f32.mrf.mxu0
  %v1427 = vadd.f32 0.0, %v1426
  %1428 = vdwg.mxu0
  %1429 = vrot.lane.b32.xlu0 %v1096, 96
  %v1430 = vpop.permute.xlu0 %1429
  %v1431 = vunpack.c.l.b16 %v1402
  %v1432 = vunpack.c.l.b16 %v1403
  %v1433 = vpack.c.b16 %v1432, %v1431
  %v1435 = vsel %vm1073, %v1430, 0
  %v1438 = vsel %vm1073, %v1433, 0
  %1440 = vmatpush.bf16.xpose.msra.mxu0 0
  %1441 = vmatpush.bf16.xpose.msra.mxu0 0
  %1442 = vmatpush.bf16.xpose.msra.mxu0 0
  %1443 = vmatpush.bf16.xpose.msra.mxu0 0
  %1444 = vmatpush.bf16.xpose.msra.mxu0 0
  %1445 = vmatpush.bf16.xpose.msra.mxu0 0
  %1446 = vmatpush.bf16.xpose.msra.mxu0 0
  %1447 = vmatpush.bf16.xpose.msra.mxu0 %v1438
  %1448 = vmatmul.bf16.gmra.mxu0 %v1435
  %v1449 = vpop.f32.mrf.mxu0
  %v1450 = vadd.f32 0.0, %v1449
  %v1451 = vpop.f32.mrf.mxu0
  %v1452 = vadd.f32 0.0, %v1451
  %1453 = vdwg.mxu0
  %v1454 = vmul.f32 %v1425, 0.25
  %v1455 = vmul.f32 %v1427, 0.25
  %v1456 = vmul.f32 %v1450, 0.25
  %v1457 = vmul.f32 %v1452, 0.25
  %v1458 = vsel %vm1073, %v1454, -inf
  %1459 = vmax.xlane.f32.xlu0 %v1458
  %v1460 = vpop.xlane.xlu0 %1459
  %v1461 = vsel %vm1073, %v1455, -inf
  %1462 = vmax.xlane.f32.xlu0 %v1461
  %v1463 = vpop.xlane.xlu0 %1462
  %v1464 = vsel %vm1073, %v1456, -inf
  %1465 = vmax.xlane.f32.xlu0 %v1464
  %v1466 = vpop.xlane.xlu0 %1465
  %v1467 = vsel %vm1073, %v1457, -inf
  %1468 = vmax.xlane.f32.xlu0 %v1467
  %v1469 = vpop.xlane.xlu0 %1468
  %v1470 = vsub.f32 %v1454, %v1460
  %v1471 = vsub.f32 %v1455, %v1463
  %v1472 = vsub.f32 %v1456, %v1466
  %v1473 = vsub.f32 %v1457, %v1469
  %v1474 = vmul.f32 %v1470, 1.442695
  %v1475 = vpow.pop %v1474
  %v1476 = vmul.f32 %v1471, 1.442695
  %v1477 = vpow.pop %v1476
  %v1478 = vmul.f32 %v1472, 1.442695
  %v1479 = vpow.pop %v1478
  %v1480 = vmul.f32 %v1473, 1.442695
  %v1481 = vpow.pop %v1480
  %v1482 = vsel %vm1073, %v1475, 0.0
  %1483 = vadd.xlane.f32.xlu0 %v1482
  %v1484 = vpop.xlane.xlu0 %1483
  %v1485 = vsel %vm1073, %v1477, 0.0
  %1486 = vadd.xlane.f32.xlu0 %v1485
  %v1487 = vpop.xlane.xlu0 %1486
  %v1488 = vsel %vm1073, %v1479, 0.0
  %1489 = vadd.xlane.f32.xlu0 %v1488
  %v1490 = vpop.xlane.xlu0 %1489
  %v1491 = vsel %vm1073, %v1481, 0.0
  %1492 = vadd.xlane.f32.xlu0 %v1491
  %v1493 = vpop.xlane.xlu0 %1492
  %v1494 = vrcp.pop %v1484
  %v1495 = vrcp.pop %v1487
  %v1496 = vrcp.pop %v1490
  %v1497 = vrcp.pop %v1493
  %v1498 = vmul.f32 %v1475, %v1494
  %v1499 = vmul.f32 %v1477, %v1495
  %v1500 = vmul.f32 %v1479, %v1496
  %v1501 = vmul.f32 %v1481, %v1497
  %v1502 = vpack.c.bf16 %v1498, %v1498
  %v1503 = vpack.c.bf16 %v1499, %v1499
  %v1504 = vpack.c.bf16 %v1500, %v1500
  %v1505 = vpack.c.bf16 %v1501, %v1501
  %v1508 = vunpack.c.l.b16 %v1502
  %v1509 = vunpack.c.l.b16 %v1503
  %v1510 = vpack.c.b16 %v1509, %v1508
  %1511 = vrot.lane.b32.xlu0 %v1181, 96
  %v1512 = vpop.permute.xlu0 %1511
  %v1515 = vsel %vm1073, %v1510, 0
  %1517 = vmatpush.bf16.msra.mxu0 0
  %1518 = vmatpush.bf16.msra.mxu0 0
  %1519 = vmatpush.bf16.msra.mxu0 0
  %1520 = vmatpush.bf16.msra.mxu0 0
  %1521 = vmatpush.bf16.msra.mxu0 0
  %1522 = vmatpush.bf16.msra.mxu0 0
  %1523 = vmatpush.bf16.msra.mxu0 0
  %1524 = vmatpush.bf16.msra.mxu0 %v1512
  %1525 = vmatmul.bf16.gmra.mxu0 %v1515
  %v1526 = vpop.f32.mrf.mxu0
  %v1527 = vadd.f32 0.0, %v1526
  %v1528 = vpop.f32.mrf.mxu0
  %v1529 = vadd.f32 0.0, %v1528
  %1530 = vdwg.mxu0
  %v1533 = vunpack.c.l.b16 %v1504
  %v1534 = vunpack.c.l.b16 %v1505
  %v1535 = vpack.c.b16 %v1534, %v1533
  %1536 = vrot.lane.b32.xlu0 %v1209, 96
  %v1537 = vpop.permute.xlu0 %1536
  %v1540 = vsel %vm1073, %v1535, 0
  %1542 = vmatpush.bf16.msra.mxu0 0
  %1543 = vmatpush.bf16.msra.mxu0 0
  %1544 = vmatpush.bf16.msra.mxu0 0
  %1545 = vmatpush.bf16.msra.mxu0 0
  %1546 = vmatpush.bf16.msra.mxu0 0
  %1547 = vmatpush.bf16.msra.mxu0 0
  %1548 = vmatpush.bf16.msra.mxu0 0
  %1549 = vmatpush.bf16.msra.mxu0 %v1537
  %1550 = vmatmul.bf16.gmra.mxu0 %v1540
  %v1551 = vpop.f32.mrf.mxu0
  %v1552 = vadd.f32 0.0, %v1551
  %v1553 = vpop.f32.mrf.mxu0
  %v1554 = vadd.f32 0.0, %v1553
  %1555 = vdwg.mxu0
  %1556 = vrot.lane.b32.xlu0 %v1051, 80
  %v1557 = vpop.permute.xlu0 %1556
  %1558 = vrot.lane.b32.xlu0 %v1053, 80
  %v1559 = vpop.permute.xlu0 %1558
  %1560 = vrot.lane.b32.xlu0 %v1055, 80
  %v1561 = vpop.permute.xlu0 %1560
  %1562 = vrot.lane.b32.xlu0 %v1057, 80
  %v1563 = vpop.permute.xlu0 %1562
  %v1564 = vrot.slane %v1557, 4
  %v1565 = vrot.slane %v1559, 4
  %v1566 = vrot.slane %v1561, 4
  %v1567 = vrot.slane %v1563, 4
  %1568 = vrot.lane.b32.xlu0 %v1069, 80
  %v1569 = vpop.permute.xlu0 %1568
  %v1570 = vunpack.c.l.b16 %v1564
  %v1571 = vunpack.c.l.b16 %v1565
  %v1572 = vpack.c.b16 %v1571, %v1570
  %v1574 = vsel %vm1073, %v1569, 0
  %v1577 = vsel %vm1073, %v1572, 0
  %1579 = vmatpush.bf16.xpose.msra.mxu0 0
  %1580 = vmatpush.bf16.xpose.msra.mxu0 0
  %1581 = vmatpush.bf16.xpose.msra.mxu0 0
  %1582 = vmatpush.bf16.xpose.msra.mxu0 0
  %1583 = vmatpush.bf16.xpose.msra.mxu0 0
  %1584 = vmatpush.bf16.xpose.msra.mxu0 0
  %1585 = vmatpush.bf16.xpose.msra.mxu0 0
  %1586 = vmatpush.bf16.xpose.msra.mxu0 %v1577
  %1587 = vmatmul.bf16.gmra.mxu0 %v1574
  %v1588 = vpop.f32.mrf.mxu0
  %v1589 = vadd.f32 0.0, %v1588
  %v1590 = vpop.f32.mrf.mxu0
  %v1591 = vadd.f32 0.0, %v1590
  %1592 = vdwg.mxu0
  %1593 = vrot.lane.b32.xlu0 %v1096, 80
  %v1594 = vpop.permute.xlu0 %1593
  %v1595 = vunpack.c.l.b16 %v1566
  %v1596 = vunpack.c.l.b16 %v1567
  %v1597 = vpack.c.b16 %v1596, %v1595
  %v1599 = vsel %vm1073, %v1594, 0
  %v1602 = vsel %vm1073, %v1597, 0
  %1604 = vmatpush.bf16.xpose.msra.mxu0 0
  %1605 = vmatpush.bf16.xpose.msra.mxu0 0
  %1606 = vmatpush.bf16.xpose.msra.mxu0 0
  %1607 = vmatpush.bf16.xpose.msra.mxu0 0
  %1608 = vmatpush.bf16.xpose.msra.mxu0 0
  %1609 = vmatpush.bf16.xpose.msra.mxu0 0
  %1610 = vmatpush.bf16.xpose.msra.mxu0 0
  %1611 = vmatpush.bf16.xpose.msra.mxu0 %v1602
  %1612 = vmatmul.bf16.gmra.mxu0 %v1599
  %v1613 = vpop.f32.mrf.mxu0
  %v1614 = vadd.f32 0.0, %v1613
  %v1615 = vpop.f32.mrf.mxu0
  %v1616 = vadd.f32 0.0, %v1615
  %1617 = vdwg.mxu0
  %v1618 = vmul.f32 %v1589, 0.25
  %v1619 = vmul.f32 %v1591, 0.25
  %v1620 = vmul.f32 %v1614, 0.25
  %v1621 = vmul.f32 %v1616, 0.25
  %v1622 = vsel %vm1073, %v1618, -inf
  %1623 = vmax.xlane.f32.xlu0 %v1622
  %v1624 = vpop.xlane.xlu0 %1623
  %v1625 = vsel %vm1073, %v1619, -inf
  %1626 = vmax.xlane.f32.xlu0 %v1625
  %v1627 = vpop.xlane.xlu0 %1626
  %v1628 = vsel %vm1073, %v1620, -inf
  %1629 = vmax.xlane.f32.xlu0 %v1628
  %v1630 = vpop.xlane.xlu0 %1629
  %v1631 = vsel %vm1073, %v1621, -inf
  %1632 = vmax.xlane.f32.xlu0 %v1631
  %v1633 = vpop.xlane.xlu0 %1632
  %v1634 = vsub.f32 %v1618, %v1624
  %v1635 = vsub.f32 %v1619, %v1627
  %v1636 = vsub.f32 %v1620, %v1630
  %v1637 = vsub.f32 %v1621, %v1633
  %v1638 = vmul.f32 %v1634, 1.442695
  %v1639 = vpow.pop %v1638
  %v1640 = vmul.f32 %v1635, 1.442695
  %v1641 = vpow.pop %v1640
  %v1642 = vmul.f32 %v1636, 1.442695
  %v1643 = vpow.pop %v1642
  %v1644 = vmul.f32 %v1637, 1.442695
  %v1645 = vpow.pop %v1644
  %v1646 = vsel %vm1073, %v1639, 0.0
  %1647 = vadd.xlane.f32.xlu0 %v1646
  %v1648 = vpop.xlane.xlu0 %1647
  %v1649 = vsel %vm1073, %v1641, 0.0
  %1650 = vadd.xlane.f32.xlu0 %v1649
  %v1651 = vpop.xlane.xlu0 %1650
  %v1652 = vsel %vm1073, %v1643, 0.0
  %1653 = vadd.xlane.f32.xlu0 %v1652
  %v1654 = vpop.xlane.xlu0 %1653
  %v1655 = vsel %vm1073, %v1645, 0.0
  %1656 = vadd.xlane.f32.xlu0 %v1655
  %v1657 = vpop.xlane.xlu0 %1656
  %v1658 = vrcp.pop %v1648
  %v1659 = vrcp.pop %v1651
  %v1660 = vrcp.pop %v1654
  %v1661 = vrcp.pop %v1657
  %v1662 = vmul.f32 %v1639, %v1658
  %v1663 = vmul.f32 %v1641, %v1659
  %v1664 = vmul.f32 %v1643, %v1660
  %v1665 = vmul.f32 %v1645, %v1661
  %v1666 = vpack.c.bf16 %v1662, %v1662
  %v1667 = vpack.c.bf16 %v1663, %v1663
  %v1668 = vpack.c.bf16 %v1664, %v1664
  %v1669 = vpack.c.bf16 %v1665, %v1665
  %v1672 = vunpack.c.l.b16 %v1666
  %v1673 = vunpack.c.l.b16 %v1667
  %v1674 = vpack.c.b16 %v1673, %v1672
  %1675 = vrot.lane.b32.xlu0 %v1181, 80
  %v1676 = vpop.permute.xlu0 %1675
  %v1679 = vsel %vm1073, %v1674, 0
  %1681 = vmatpush.bf16.msra.mxu0 0
  %1682 = vmatpush.bf16.msra.mxu0 0
  %1683 = vmatpush.bf16.msra.mxu0 0
  %1684 = vmatpush.bf16.msra.mxu0 0
  %1685 = vmatpush.bf16.msra.mxu0 0
  %1686 = vmatpush.bf16.msra.mxu0 0
  %1687 = vmatpush.bf16.msra.mxu0 0
  %1688 = vmatpush.bf16.msra.mxu0 %v1676
  %1689 = vmatmul.bf16.gmra.mxu0 %v1679
  %v1690 = vpop.f32.mrf.mxu0
  %v1691 = vadd.f32 0.0, %v1690
  %v1692 = vpop.f32.mrf.mxu0
  %v1693 = vadd.f32 0.0, %v1692
  %1694 = vdwg.mxu0
  %v1697 = vunpack.c.l.b16 %v1668
  %v1698 = vunpack.c.l.b16 %v1669
  %v1699 = vpack.c.b16 %v1698, %v1697
  %1700 = vrot.lane.b32.xlu0 %v1209, 80
  %v1701 = vpop.permute.xlu0 %1700
  %v1704 = vsel %vm1073, %v1699, 0
  %1706 = vmatpush.bf16.msra.mxu0 0
  %1707 = vmatpush.bf16.msra.mxu0 0
  %1708 = vmatpush.bf16.msra.mxu0 0
  %1709 = vmatpush.bf16.msra.mxu0 0
  %1710 = vmatpush.bf16.msra.mxu0 0
  %1711 = vmatpush.bf16.msra.mxu0 0
  %1712 = vmatpush.bf16.msra.mxu0 0
  %1713 = vmatpush.bf16.msra.mxu0 %v1701
  %1714 = vmatmul.bf16.gmra.mxu0 %v1704
  %v1715 = vpop.f32.mrf.mxu0
  %v1716 = vadd.f32 0.0, %v1715
  %v1717 = vpop.f32.mrf.mxu0
  %v1718 = vadd.f32 0.0, %v1717
  %1719 = vdwg.mxu0
  %1724 = vrot.lane.b32.xlu0 %v1363, 16
  %v1725 = vpop.permute.xlu0 %1724
  %1726 = vrot.lane.b32.xlu0 %v1365, 16
  %v1727 = vpop.permute.xlu0 %1726
  %1728 = vrot.lane.b32.xlu0 %v1388, 16
  %v1729 = vpop.permute.xlu0 %1728
  %1730 = vrot.lane.b32.xlu0 %v1390, 16
  %v1731 = vpop.permute.xlu0 %1730
  %1740 = vrot.lane.b32.xlu0 %v1527, 32
  %v1741 = vpop.permute.xlu0 %1740
  %1742 = vrot.lane.b32.xlu0 %v1529, 32
  %v1743 = vpop.permute.xlu0 %1742
  %1744 = vrot.lane.b32.xlu0 %v1552, 32
  %v1745 = vpop.permute.xlu0 %1744
  %1746 = vrot.lane.b32.xlu0 %v1554, 32
  %v1747 = vpop.permute.xlu0 %1746
  %1756 = vrot.lane.b32.xlu0 %v1691, 48
  %v1757 = vpop.permute.xlu0 %1756
  %1758 = vrot.lane.b32.xlu0 %v1693, 48
  %v1759 = vpop.permute.xlu0 %1758
  %1760 = vrot.lane.b32.xlu0 %v1716, 48
  %v1761 = vpop.permute.xlu0 %1760
  %1762 = vrot.lane.b32.xlu0 %v1718, 48
  %v1763 = vpop.permute.xlu0 %1762
  %v1768 = vsel %vm1073, %v1196, %v1725
  %v1769 = vsel %vm1073, %v1198, %v1727
  %v1770 = vsel %vm1073, %v1224, %v1729
  %v1771 = vsel %vm1073, %v1226, %v1731
  %v1772 = vsel %vm354, %v1768, %v1741
  %v1773 = vsel %vm354, %v1769, %v1743
  %v1774 = vsel %vm354, %v1770, %v1745
  %v1775 = vsel %vm354, %v1771, %v1747
  %vm1776 = vcmask 392192
  %v1777 = vsel %vm1776, %v1772, %v1757
  %v1778 = vsel %vm1776, %v1773, %v1759
  %v1779 = vsel %vm1776, %v1774, %v1761
  %v1780 = vsel %vm1776, %v1775, %v1763
  %v1781 = vpack.c.bf16 %v1778, %v1777
  %v1782 = vpack.c.bf16 %v1780, %v1779
  %v1791 = vunpack.c.l.b16 %v770
  %v1792 = vunpack.c.l.b16 %v771
  %v1793 = vunpack.c.l.b16 %v772
  %v1794 = vunpack.c.l.b16 %v773
  %v1795 = vunpack.c.l.b16 %v774
  %v1796 = vunpack.c.l.b16 %v775
  %v1797 = vunpack.c.l.b16 %v776
  %v1798 = vunpack.c.l.b16 %v777
  %v1799 = vpack.c.b16 %v1792, %v1791
  %v1800 = vpack.c.b16 %v1794, %v1793
  %v1801 = vpack.c.b16 %v1796, %v1795
  %v1802 = vpack.c.b16 %v1798, %v1797
  %v1808 = vsel %vm811, %v1781, 0
  %v1811 = vsel %vm811, %v1782, 0
  %1813 = vmatpush.bf16.msra.mxu0 0
  %1814 = vmatpush.bf16.msra.mxu0 0
  %1815 = vmatpush.bf16.msra.mxu0 0
  %1816 = vmatpush.bf16.msra.mxu0 0
  %1817 = vmatpush.bf16.msra.mxu0 %v1802
  %1818 = vmatpush.bf16.msra.mxu0 %v1801
  %1819 = vmatpush.bf16.msra.mxu0 %v1800
  %1820 = vmatpush.bf16.msra.mxu0 %v1799
  %1821 = vmatmul.bf16.gmra.mxu0 %v1808
  %v1822 = vpop.f32.mrf.mxu0
  %v1823 = vadd.f32 %v804, %v1822
  %v1824 = vpop.f32.mrf.mxu0
  %v1825 = vadd.f32 %v804, %v1824
  %1826 = vmatmul.bf16.gmra.mxu0 %v1811
  %v1827 = vpop.f32.mrf.mxu0
  %v1828 = vadd.f32 %v804, %v1827
  %v1829 = vpop.f32.mrf.mxu0
  %v1830 = vadd.f32 %v804, %v1829
  %1831 = vdwg.mxu0
  %v1832 = vadd.f32 %v750, %v1823
  %v1833 = vadd.f32 %v751, %v1825
  %v1834 = vadd.f32 %v752, %v1828
  %v1835 = vadd.f32 %v753, %v1830
  %v1836 = vsel %vm811, %v1832, 0.0
  %1837 = vadd.xlane.f32.xlu0 %v1836
  %v1838 = vpop.xlane.xlu0 %1837
  %v1839 = vsel %vm811, %v1833, 0.0
  %1840 = vadd.xlane.f32.xlu0 %v1839
  %v1841 = vpop.xlane.xlu0 %1840
  %v1842 = vsel %vm811, %v1834, 0.0
  %1843 = vadd.xlane.f32.xlu0 %v1842
  %v1844 = vpop.xlane.xlu0 %1843
  %v1845 = vsel %vm811, %v1835, 0.0
  %1846 = vadd.xlane.f32.xlu0 %v1845
  %v1847 = vpop.xlane.xlu0 %1846
  %v1848 = vmul.f32 %v1838, %v830
  %v1849 = vmul.f32 %v1841, %v830
  %v1850 = vmul.f32 %v1844, %v830
  %v1851 = vmul.f32 %v1847, %v830
  %v1852 = vsub.f32 %v1832, %v1848
  %v1853 = vsub.f32 %v1833, %v1849
  %v1854 = vsub.f32 %v1834, %v1850
  %v1855 = vsub.f32 %v1835, %v1851
  %v1856 = vmul.f32 %v1852, %v1852
  %v1857 = vmul.f32 %v1853, %v1853
  %v1858 = vmul.f32 %v1854, %v1854
  %v1859 = vmul.f32 %v1855, %v1855
  %v1860 = vsel %vm811, %v1856, 0.0
  %1861 = vadd.xlane.f32.xlu0 %v1860
  %v1862 = vpop.xlane.xlu0 %1861
  %v1863 = vsel %vm811, %v1857, 0.0
  %1864 = vadd.xlane.f32.xlu0 %v1863
  %v1865 = vpop.xlane.xlu0 %1864
  %v1866 = vsel %vm811, %v1858, 0.0
  %1867 = vadd.xlane.f32.xlu0 %v1866
  %v1868 = vpop.xlane.xlu0 %1867
  %v1869 = vsel %vm811, %v1859, 0.0
  %1870 = vadd.xlane.f32.xlu0 %v1869
  %v1871 = vpop.xlane.xlu0 %1870
  %v1872 = vmul.f32 %v1862, %v830
  %v1873 = vmul.f32 %v1865, %v830
  %v1874 = vmul.f32 %v1868, %v830
  %v1875 = vmul.f32 %v1871, %v830
  %v1876 = vadd.f32 %v1872, 1e-05
  %v1877 = vadd.f32 %v1873, 1e-05
  %v1878 = vadd.f32 %v1874, 1e-05
  %v1879 = vadd.f32 %v1875, 1e-05
  %v1880 = vrsqrt.pop %v1876
  %v1881 = vmul.f32 %v1880, %v1876
  %v1882 = vmul.f32 %v1881, %v1880
  %v1883 = vmul.f32 0.5, %v1882
  %v1884 = vsub.f32 1.5, %v1883
  %v1885 = vmul.f32 %v1880, %v1884
  %vm1886 = vweird.f32 %v1876
  %vm1887 = vweird.f32 %v1880
  %vm1888 = vmor %vm1886, %vm1887
  %v1889 = vsel %vm1888, %v1880, %v1885
  %v1890 = vrsqrt.pop %v1877
  %v1891 = vmul.f32 %v1890, %v1877
  %v1892 = vmul.f32 %v1891, %v1890
  %v1893 = vmul.f32 0.5, %v1892
  %v1894 = vsub.f32 1.5, %v1893
  %v1895 = vmul.f32 %v1890, %v1894
  %vm1896 = vweird.f32 %v1877
  %vm1897 = vweird.f32 %v1890
  %vm1898 = vmor %vm1896, %vm1897
  %v1899 = vsel %vm1898, %v1890, %v1895
  %v1900 = vrsqrt.pop %v1878
  %v1901 = vmul.f32 %v1900, %v1878
  %v1902 = vmul.f32 %v1901, %v1900
  %v1903 = vmul.f32 0.5, %v1902
  %v1904 = vsub.f32 1.5, %v1903
  %v1905 = vmul.f32 %v1900, %v1904
  %vm1906 = vweird.f32 %v1878
  %vm1907 = vweird.f32 %v1900
  %vm1908 = vmor %vm1906, %vm1907
  %v1909 = vsel %vm1908, %v1900, %v1905
  %v1910 = vrsqrt.pop %v1879
  %v1911 = vmul.f32 %v1910, %v1879
  %v1912 = vmul.f32 %v1911, %v1910
  %v1913 = vmul.f32 0.5, %v1912
  %v1914 = vsub.f32 1.5, %v1913
  %v1915 = vmul.f32 %v1910, %v1914
  %vm1916 = vweird.f32 %v1879
  %vm1917 = vweird.f32 %v1910
  %vm1918 = vmor %vm1916, %vm1917
  %v1919 = vsel %vm1918, %v1910, %v1915
  %v1920 = vmul.f32 %v1852, %v1889
  %v1921 = vmul.f32 %v1853, %v1899
  %v1922 = vmul.f32 %v1854, %v1909
  %v1923 = vmul.f32 %v1855, %v1919
  %v1924 = vmul.f32 %v1920, %v809
  %v1925 = vmul.f32 %v1921, %v809
  %v1926 = vmul.f32 %v1922, %v809
  %v1927 = vmul.f32 %v1923, %v809
  %v1928 = vadd.f32 %v1924, %v810
  %v1929 = vadd.f32 %v1925, %v810
  %v1930 = vadd.f32 %v1926, %v810
  %v1931 = vadd.f32 %v1927, %v810
  %v1932 = vpack.c.bf16 %v1929, %v1928
  %v1933 = vpack.c.bf16 %v1931, %v1930
  %v1942 = vunpack.c.l.b16 %v778
  %v1943 = vunpack.c.l.b16 %v779
  %v1944 = vunpack.c.l.b16 %v780
  %v1945 = vunpack.c.l.b16 %v781
  %v1946 = vunpack.c.l.b16 %v782
  %v1947 = vunpack.c.l.b16 %v783
  %v1948 = vunpack.c.l.b16 %v784
  %v1949 = vunpack.c.l.b16 %v785
  %v1950 = vpack.c.b16 %v1943, %v1942
  %v1951 = vpack.c.b16 %v1945, %v1944
  %v1952 = vpack.c.b16 %v1947, %v1946
  %v1953 = vpack.c.b16 %v1949, %v1948
  %v1959 = vsel %vm811, %v1932, 0
  %v1962 = vsel %vm811, %v1933, 0
  %1964 = vmatpush.bf16.msra.mxu0 0
  %1965 = vmatpush.bf16.msra.mxu0 0
  %1966 = vmatpush.bf16.msra.mxu0 0
  %1967 = vmatpush.bf16.msra.mxu0 0
  %1968 = vmatpush.bf16.msra.mxu0 %v1953
  %1969 = vmatpush.bf16.msra.mxu0 %v1952
  %1970 = vmatpush.bf16.msra.mxu0 %v1951
  %1971 = vmatpush.bf16.msra.mxu0 %v1950
  %1972 = vmatmul.bf16.gmra.mxu0 %v1959
  %v1973 = vpop.f32.mrf.mxu0
  %v1974 = vadd.f32 %v807, %v1973
  %v1975 = vpop.f32.mrf.mxu0
  %v1976 = vadd.f32 %v807, %v1975
  %1977 = vmatmul.bf16.gmra.mxu0 %v1962
  %v1978 = vpop.f32.mrf.mxu0
  %v1979 = vadd.f32 %v807, %v1978
  %v1980 = vpop.f32.mrf.mxu0
  %v1981 = vadd.f32 %v807, %v1980
  %1982 = vdwg.mxu0
  %v1983 = vmax.f32 %v1974, 0.0
  %v1984 = vmax.f32 %v1976, 0.0
  %v1985 = vmax.f32 %v1979, 0.0
  %v1986 = vmax.f32 %v1981, 0.0
  %v1987 = vpack.c.bf16 %v1984, %v1983
  %v1988 = vpack.c.bf16 %v1986, %v1985
  %v2005 = vunpack.c.l.b16 %v786
  %v2006 = vunpack.c.l.b16 %v787
  %v2007 = vunpack.c.l.b16 %v788
  %v2008 = vunpack.c.l.b16 %v789
  %v2009 = vunpack.c.l.b16 %v790
  %v2010 = vunpack.c.l.b16 %v791
  %v2011 = vunpack.c.l.b16 %v792
  %v2012 = vunpack.c.l.b16 %v793
  %v2013 = vunpack.c.l.b16 %v794
  %v2014 = vunpack.c.l.b16 %v795
  %v2015 = vunpack.c.l.b16 %v796
  %v2016 = vunpack.c.l.b16 %v797
  %v2017 = vunpack.c.l.b16 %v798
  %v2018 = vunpack.c.l.b16 %v799
  %v2019 = vunpack.c.l.b16 %v800
  %v2020 = vunpack.c.l.b16 %v801
  %v2021 = vpack.c.b16 %v2006, %v2005
  %v2022 = vpack.c.b16 %v2008, %v2007
  %v2023 = vpack.c.b16 %v2010, %v2009
  %v2024 = vpack.c.b16 %v2012, %v2011
  %v2025 = vpack.c.b16 %v2014, %v2013
  %v2026 = vpack.c.b16 %v2016, %v2015
  %v2027 = vpack.c.b16 %v2018, %v2017
  %v2028 = vpack.c.b16 %v2020, %v2019
  %2037 = vmatpush.bf16.msra.mxu0 %v2028
  %2038 = vmatpush.bf16.msra.mxu0 %v2027
  %2039 = vmatpush.bf16.msra.mxu0 %v2026
  %2040 = vmatpush.bf16.msra.mxu0 %v2025
  %2041 = vmatpush.bf16.msra.mxu0 %v2024
  %2042 = vmatpush.bf16.msra.mxu0 %v2023
  %2043 = vmatpush.bf16.msra.mxu0 %v2022
  %2044 = vmatpush.bf16.msra.mxu0 %v2021
  %2045 = vmatmul.bf16.gmra.mxu0 %v1987
  %v2046 = vpop.f32.mrf.mxu0
  %v2047 = vadd.f32 %v808, %v2046
  %v2048 = vpop.f32.mrf.mxu0
  %v2049 = vadd.f32 %v808, %v2048
  %2050 = vmatmul.bf16.gmra.mxu0 %v1988
  %v2051 = vpop.f32.mrf.mxu0
  %v2052 = vadd.f32 %v808, %v2051
  %v2053 = vpop.f32.mrf.mxu0
  %v2054 = vadd.f32 %v808, %v2053
  %2055 = vdwg.mxu0
  %v2056 = vadd.f32 %v1832, %v2047
  %v2057 = vadd.f32 %v1833, %v2049
  %v2058 = vadd.f32 %v1834, %v2052
  %v2059 = vadd.f32 %v1835, %v2054
  %v2060 = vld [vmem:[%s1 + $0x1b] ss:$0 sm:$0xff]
  %v2061 = vld [vmem:[%s1 + $0x1c] ss:$0 sm:$0xff]
  %v2062 = vsel %vm811, %v2056, 0.0
  %2063 = vadd.xlane.f32.xlu0 %v2062
  %v2064 = vpop.xlane.xlu0 %2063
  %v2065 = vsel %vm811, %v2057, 0.0
  %2066 = vadd.xlane.f32.xlu0 %v2065
  %v2067 = vpop.xlane.xlu0 %2066
  %v2068 = vsel %vm811, %v2058, 0.0
  %2069 = vadd.xlane.f32.xlu0 %v2068
  %v2070 = vpop.xlane.xlu0 %2069
  %v2071 = vsel %vm811, %v2059, 0.0
  %2072 = vadd.xlane.f32.xlu0 %v2071
  %v2073 = vpop.xlane.xlu0 %2072
  %v2074 = vmul.f32 %v2064, %v830
  %v2075 = vmul.f32 %v2067, %v830
  %v2076 = vmul.f32 %v2070, %v830
  %v2077 = vmul.f32 %v2073, %v830
  %v2078 = vsub.f32 %v2056, %v2074
  %v2079 = vsub.f32 %v2057, %v2075
  %v2080 = vsub.f32 %v2058, %v2076
  %v2081 = vsub.f32 %v2059, %v2077
  %v2082 = vmul.f32 %v2078, %v2078
  %v2083 = vmul.f32 %v2079, %v2079
  %v2084 = vmul.f32 %v2080, %v2080
  %v2085 = vmul.f32 %v2081, %v2081
  %v2086 = vsel %vm811, %v2082, 0.0
  %2087 = vadd.xlane.f32.xlu0 %v2086
  %v2088 = vpop.xlane.xlu0 %2087
  %v2089 = vsel %vm811, %v2083, 0.0
  %2090 = vadd.xlane.f32.xlu0 %v2089
  %v2091 = vpop.xlane.xlu0 %2090
  %v2092 = vsel %vm811, %v2084, 0.0
  %2093 = vadd.xlane.f32.xlu0 %v2092
  %v2094 = vpop.xlane.xlu0 %2093
  %v2095 = vsel %vm811, %v2085, 0.0
  %2096 = vadd.xlane.f32.xlu0 %v2095
  %v2097 = vpop.xlane.xlu0 %2096
  %v2098 = vmul.f32 %v2088, %v830
  %v2099 = vmul.f32 %v2091, %v830
  %v2100 = vmul.f32 %v2094, %v830
  %v2101 = vmul.f32 %v2097, %v830
  %v2102 = vadd.f32 %v2098, 1e-05
  %v2103 = vadd.f32 %v2099, 1e-05
  %v2104 = vadd.f32 %v2100, 1e-05
  %v2105 = vadd.f32 %v2101, 1e-05
  %v2106 = vrsqrt.pop %v2102
  %v2107 = vmul.f32 %v2106, %v2102
  %v2108 = vmul.f32 %v2107, %v2106
  %v2109 = vmul.f32 0.5, %v2108
  %v2110 = vsub.f32 1.5, %v2109
  %v2111 = vmul.f32 %v2106, %v2110
  %vm2112 = vweird.f32 %v2102
  %vm2113 = vweird.f32 %v2106
  %vm2114 = vmor %vm2112, %vm2113
  %v2115 = vsel %vm2114, %v2106, %v2111
  %v2116 = vrsqrt.pop %v2103
  %v2117 = vmul.f32 %v2116, %v2103
  %v2118 = vmul.f32 %v2117, %v2116
  %v2119 = vmul.f32 0.5, %v2118
  %v2120 = vsub.f32 1.5, %v2119
  %v2121 = vmul.f32 %v2116, %v2120
  %vm2122 = vweird.f32 %v2103
  %vm2123 = vweird.f32 %v2116
  %vm2124 = vmor %vm2122, %vm2123
  %v2125 = vsel %vm2124, %v2116, %v2121
  %v2126 = vrsqrt.pop %v2104
  %v2127 = vmul.f32 %v2126, %v2104
  %v2128 = vmul.f32 %v2127, %v2126
  %v2129 = vmul.f32 0.5, %v2128
  %v2130 = vsub.f32 1.5, %v2129
  %v2131 = vmul.f32 %v2126, %v2130
  %vm2132 = vweird.f32 %v2104
  %vm2133 = vweird.f32 %v2126
  %vm2134 = vmor %vm2132, %vm2133
  %v2135 = vsel %vm2134, %v2126, %v2131
  %v2136 = vrsqrt.pop %v2105
  %v2137 = vmul.f32 %v2136, %v2105
  %v2138 = vmul.f32 %v2137, %v2136
  %v2139 = vmul.f32 0.5, %v2138
  %v2140 = vsub.f32 1.5, %v2139
  %v2141 = vmul.f32 %v2136, %v2140
  %vm2142 = vweird.f32 %v2105
  %vm2143 = vweird.f32 %v2136
  %vm2144 = vmor %vm2142, %vm2143
  %v2145 = vsel %vm2144, %v2136, %v2141
  %v2146 = vmul.f32 %v2078, %v2115
  %v2147 = vmul.f32 %v2079, %v2125
  %v2148 = vmul.f32 %v2080, %v2135
  %v2149 = vmul.f32 %v2081, %v2145
  %v2150 = vmul.f32 %v2146, %v2060
  %v2151 = vmul.f32 %v2147, %v2060
  %v2152 = vmul.f32 %v2148, %v2060
  %v2153 = vmul.f32 %v2149, %v2060
  %v2154 = vadd.f32 %v2150, %v2061
  %v2155 = vadd.f32 %v2151, %v2061
  %v2156 = vadd.f32 %v2152, %v2061
  %v2157 = vadd.f32 %v2153, %v2061
  %2162 = vrot.lane.b32.xlu0 %v2154, 64
  %v2163 = vpop.permute.xlu0 %2162
  %2164 = vrot.lane.b32.xlu0 %v2155, 64
  %v2165 = vpop.permute.xlu0 %2164
  %2166 = vrot.lane.b32.xlu0 %v2156, 64
  %v2167 = vpop.permute.xlu0 %2166
  %2168 = vrot.lane.b32.xlu0 %v2157, 64
  %v2169 = vpop.permute.xlu0 %2168
  %v2174 = vsel %vm811, %v750, %v2163
  %v2175 = vsel %vm811, %v751, %v2165
  %v2176 = vsel %vm811, %v752, %v2167
  %v2177 = vsel %vm811, %v753, %v2169
  %2178 = vst [vmem:[%s9] sm:$0xff] %v2174
  %2179 = vst [vmem:[%s9 + $0x8] sm:$0xff] %v2175
  %2180 = vst [vmem:[%s9 + $0x10] sm:$0xff] %v2176
  %2181 = vst [vmem:[%s9 + $0x18] sm:$0xff] %v2177
  // Predicated region
  $region38: #{transformer_pointnet_sa_msg.2} parent=0 // pred_check
    _
  $region39: #{transformer_pointnet_sa_msg.2} parent=0 // pred_check_branch
    %2183 = sbr.rel (0) target = $region41
  $region40: #{transformer_pointnet_sa_msg.2} parent=0 // pred_region
    _
  $region41: #{transformer_pointnet_sa_msg.2} parent=0 // pred_fallthru
    _
  // Predicated region
  $region42: #{transformer_pointnet_sa_msg.2} parent=0 // pred_check
    _
  $region43: #{transformer_pointnet_sa_msg.2} parent=0 // pred_check_branch
    %2185 = sbr.rel (0) target = $region45
  $region44: #{transformer_pointnet_sa_msg.2} parent=0 // pred_region
    _
  $region45: #{transformer_pointnet_sa_msg.2} parent=0 // pred_fallthru
    _

// kernel: transformer_pointnet_sa_msg.3
$region0: #{transformer_pointnet_sa_msg.3}
  #allocation0 [shape = 'u32[]', space=smem, size = 0x4, offset = 0x4, fixed_abs, tag = 'smem constant byte address 0x4 - core index']
  #allocation1 [shape = 'u32[72,128]{1,0:T(1,128)}', space=vmem, size = 0x9000, scoped, tag = 'internal scratch']
  %s0 = inlined_call_operand.vmem [shape: bf16[2,256,6], index: 0, kind: input, shape index: {}]
  %s1 = inlined_call_operand.vmem [shape: f32[16,384], index: 1, kind: input, shape index: {}]
  %s2 = inlined_call_operand.vmem [shape: bf16[6,32], index: 2, kind: input, shape index: {}]
  %s3 = inlined_call_operand.vmem [shape: bf16[32,48], index: 3, kind: input, shape index: {}]
  %s4 = inlined_call_operand.vmem [shape: bf16[48,64], index: 4, kind: input, shape index: {}]
  %s5 = inlined_call_operand.vmem [shape: bf16[1,64,384], index: 5, kind: input, shape index: {}]
  %s6 = inlined_call_operand.vmem [shape: bf16[1,64,64], index: 6, kind: input, shape index: {}]
  %s7 = inlined_call_operand.vmem [shape: bf16[1,64,128], index: 7, kind: input, shape index: {}]
  %s8 = inlined_call_operand.vmem [shape: bf16[1,128,64], index: 8, kind: input, shape index: {}]
  %s9 = inlined_call_operand.vmem [shape: f32[2,16,128], index: 9, kind: output, shape index: {}]
  %s10 = sld [smem:[#allocation0]]
  $region46: #{transformer_pointnet_sa_msg.3} parent=0
    _
  %s12 = ssub.s32 1, %s10
  %s13 = scalar_select 0, %s12, %s10
  // Predicated region
  $region2: #{transformer_pointnet_sa_msg.3} parent=0 // pred_check
    _
  $region3: #{transformer_pointnet_sa_msg.3} parent=0 // pred_check_branch
    %15 = sbr.rel (0) target = $region5
  $region4: #{transformer_pointnet_sa_msg.3} parent=0 // pred_region
    _
  $region5: #{transformer_pointnet_sa_msg.3} parent=0 // pred_fallthru
    _
  // Predicated region
  $region6: #{transformer_pointnet_sa_msg.3} parent=0 // pred_check
    _
  $region7: #{transformer_pointnet_sa_msg.3} parent=0 // pred_check_branch
    %17 = sbr.rel (0) target = $region9
  $region8: #{transformer_pointnet_sa_msg.3} parent=0 // pred_region
    _
  $region9: #{transformer_pointnet_sa_msg.3} parent=0 // pred_fallthru
    _
  // Predicated region
  $region10: #{transformer_pointnet_sa_msg.3} parent=0 // pred_check
    _
  $region11: #{transformer_pointnet_sa_msg.3} parent=0 // pred_check_branch
    %19 = sbr.rel (0) target = $region13
  $region12: #{transformer_pointnet_sa_msg.3} parent=0 // pred_region
    _
  $region13: #{transformer_pointnet_sa_msg.3} parent=0 // pred_fallthru
    _
  // Predicated region
  $region14: #{transformer_pointnet_sa_msg.3} parent=0 // pred_check
    _
  $region15: #{transformer_pointnet_sa_msg.3} parent=0 // pred_check_branch
    %21 = sbr.rel (0) target = $region17
  $region16: #{transformer_pointnet_sa_msg.3} parent=0 // pred_region
    _
  $region17: #{transformer_pointnet_sa_msg.3} parent=0 // pred_fallthru
    _
  // Predicated region
  $region18: #{transformer_pointnet_sa_msg.3} parent=0 // pred_check
    _
  $region19: #{transformer_pointnet_sa_msg.3} parent=0 // pred_check_branch
    %23 = sbr.rel (0) target = $region21
  $region20: #{transformer_pointnet_sa_msg.3} parent=0 // pred_region
    _
  $region21: #{transformer_pointnet_sa_msg.3} parent=0 // pred_fallthru
    _
  // Predicated region
  $region22: #{transformer_pointnet_sa_msg.3} parent=0 // pred_check
    _
  $region23: #{transformer_pointnet_sa_msg.3} parent=0 // pred_check_branch
    %25 = sbr.rel (0) target = $region25
  $region24: #{transformer_pointnet_sa_msg.3} parent=0 // pred_region
    _
  $region25: #{transformer_pointnet_sa_msg.3} parent=0 // pred_fallthru
    _
  // Predicated region
  $region26: #{transformer_pointnet_sa_msg.3} parent=0 // pred_check
    _
  $region27: #{transformer_pointnet_sa_msg.3} parent=0 // pred_check_branch
    %27 = sbr.rel (0) target = $region29
  $region28: #{transformer_pointnet_sa_msg.3} parent=0 // pred_region
    _
  $region29: #{transformer_pointnet_sa_msg.3} parent=0 // pred_fallthru
    _
  // Predicated region
  $region30: #{transformer_pointnet_sa_msg.3} parent=0 // pred_check
    _
  $region31: #{transformer_pointnet_sa_msg.3} parent=0 // pred_check_branch
    %29 = sbr.rel (0) target = $region33
  $region32: #{transformer_pointnet_sa_msg.3} parent=0 // pred_region
    _
  $region33: #{transformer_pointnet_sa_msg.3} parent=0 // pred_fallthru
    _
  // Predicated region
  $region34: #{transformer_pointnet_sa_msg.3} parent=0 // pred_check
    _
  $region35: #{transformer_pointnet_sa_msg.3} parent=0 // pred_check_branch
    %31 = sbr.rel (0) target = $region37
  $region36: #{transformer_pointnet_sa_msg.3} parent=0 // pred_region
    _
  $region37: #{transformer_pointnet_sa_msg.3} parent=0 // pred_fallthru
    _
  %v33 = vld [vmem:[%s0] sm:$0xf]
  %v34 = vld [vmem:[%s0 + $0x4] sm:$0xf]
  %v35 = vld [vmem:[%s0 + $0x8] sm:$0xf]
  %v36 = vld [vmem:[%s0 + $0xc] sm:$0xf]
  %v37 = vld [vmem:[%s0 + $0x10] sm:$0xf]
  %v38 = vld [vmem:[%s0 + $0x14] sm:$0xf]
  %v39 = vld [vmem:[%s0 + $0x18] sm:$0xf]
  %v40 = vld [vmem:[%s0 + $0x1c] sm:$0xf]
  %v41 = vld [vmem:[%s0 + $0x20] sm:$0xf]
  %v42 = vld [vmem:[%s0 + $0x24] sm:$0xf]
  %v43 = vld [vmem:[%s0 + $0x28] sm:$0xf]
  %v44 = vld [vmem:[%s0 + $0x2c] sm:$0xf]
  %v45 = vld [vmem:[%s0 + $0x30] sm:$0xf]
  %v46 = vld [vmem:[%s0 + $0x34] sm:$0xf]
  %v47 = vld [vmem:[%s0 + $0x38] sm:$0xf]
  %v48 = vld [vmem:[%s0 + $0x3c] sm:$0xf]
  %v49 = vld [vmem:[%s0 + $0x40] sm:$0xf]
  %v50 = vld [vmem:[%s0 + $0x44] sm:$0xf]
  %v51 = vld [vmem:[%s0 + $0x48] sm:$0xf]
  %v52 = vld [vmem:[%s0 + $0x4c] sm:$0xf]
  %v53 = vld [vmem:[%s0 + $0x50] sm:$0xf]
  %v54 = vld [vmem:[%s0 + $0x54] sm:$0xf]
  %v55 = vld [vmem:[%s0 + $0x58] sm:$0xf]
  %v56 = vld [vmem:[%s0 + $0x5c] sm:$0xf]
  %v57 = vld [vmem:[%s0 + $0x60] sm:$0xf]
  %v58 = vld [vmem:[%s0 + $0x64] sm:$0xf]
  %v59 = vld [vmem:[%s0 + $0x68] sm:$0xf]
  %v60 = vld [vmem:[%s0 + $0x6c] sm:$0xf]
  %v61 = vld [vmem:[%s0 + $0x70] sm:$0xf]
  %v62 = vld [vmem:[%s0 + $0x74] sm:$0xf]
  %v63 = vld [vmem:[%s0 + $0x78] sm:$0xf]
  %v64 = vld [vmem:[%s0 + $0x7c] sm:$0xf]
  %v65 = vld [vmem:[%s0 + $0x80] sm:$0xf]
  %v66 = vld [vmem:[%s0 + $0x84] sm:$0xf]
  %v67 = vld [vmem:[%s0 + $0x88] sm:$0xf]
  %v68 = vld [vmem:[%s0 + $0x8c] sm:$0xf]
  %v69 = vld [vmem:[%s0 + $0x90] sm:$0xf]
  %v70 = vld [vmem:[%s0 + $0x94] sm:$0xf]
  %v71 = vld [vmem:[%s0 + $0x98] sm:$0xf]
  %v72 = vld [vmem:[%s0 + $0x9c] sm:$0xf]
  %v73 = vld [vmem:[%s0 + $0xa0] sm:$0xf]
  %v74 = vld [vmem:[%s0 + $0xa4] sm:$0xf]
  %v75 = vld [vmem:[%s0 + $0xa8] sm:$0xf]
  %v76 = vld [vmem:[%s0 + $0xac] sm:$0xf]
  %v77 = vld [vmem:[%s0 + $0xb0] sm:$0xf]
  %v78 = vld [vmem:[%s0 + $0xb4] sm:$0xf]
  %v79 = vld [vmem:[%s0 + $0xb8] sm:$0xf]
  %v80 = vld [vmem:[%s0 + $0xbc] sm:$0xf]
  %v81 = vld [vmem:[%s0 + $0xc0] sm:$0xf]
  %v82 = vld [vmem:[%s0 + $0xc4] sm:$0xf]
  %v83 = vld [vmem:[%s0 + $0xc8] sm:$0xf]
  %v84 = vld [vmem:[%s0 + $0xcc] sm:$0xf]
  %v85 = vld [vmem:[%s0 + $0xd0] sm:$0xf]
  %v86 = vld [vmem:[%s0 + $0xd4] sm:$0xf]
  %v87 = vld [vmem:[%s0 + $0xd8] sm:$0xf]
  %v88 = vld [vmem:[%s0 + $0xdc] sm:$0xf]
  %v89 = vld [vmem:[%s0 + $0xe0] sm:$0xf]
  %v90 = vld [vmem:[%s0 + $0xe4] sm:$0xf]
  %v91 = vld [vmem:[%s0 + $0xe8] sm:$0xf]
  %v92 = vld [vmem:[%s0 + $0xec] sm:$0xf]
  %v93 = vld [vmem:[%s0 + $0xf0] sm:$0xf]
  %v94 = vld [vmem:[%s0 + $0xf4] sm:$0xf]
  %v95 = vld [vmem:[%s0 + $0xf8] sm:$0xf]
  %v96 = vld [vmem:[%s0 + $0xfc] sm:$0xf]
  %v97 = vld [vmem:[%s2] sm:$0x7]
  %v98 = vld [vmem:[%s1] ss:$0 sm:$0xff]
  %v163 = vunpack.c.l.b16 %v33
  %v164 = vunpack.c.l.b16 %v34
  %v165 = vunpack.c.l.b16 %v35
  %v166 = vunpack.c.l.b16 %v36
  %v167 = vunpack.c.l.b16 %v37
  %v168 = vunpack.c.l.b16 %v38
  %v169 = vunpack.c.l.b16 %v39
  %v170 = vunpack.c.l.b16 %v40
  %v171 = vunpack.c.l.b16 %v41
  %v172 = vunpack.c.l.b16 %v42
  %v173 = vunpack.c.l.b16 %v43
  %v174 = vunpack.c.l.b16 %v44
  %v175 = vunpack.c.l.b16 %v45
  %v176 = vunpack.c.l.b16 %v46
  %v177 = vunpack.c.l.b16 %v47
  %v178 = vunpack.c.l.b16 %v48
  %v179 = vunpack.c.l.b16 %v49
  %v180 = vunpack.c.l.b16 %v50
  %v181 = vunpack.c.l.b16 %v51
  %v182 = vunpack.c.l.b16 %v52
  %v183 = vunpack.c.l.b16 %v53
  %v184 = vunpack.c.l.b16 %v54
  %v185 = vunpack.c.l.b16 %v55
  %v186 = vunpack.c.l.b16 %v56
  %v187 = vunpack.c.l.b16 %v57
  %v188 = vunpack.c.l.b16 %v58
  %v189 = vunpack.c.l.b16 %v59
  %v190 = vunpack.c.l.b16 %v60
  %v191 = vunpack.c.l.b16 %v61
  %v192 = vunpack.c.l.b16 %v62
  %v193 = vunpack.c.l.b16 %v63
  %v194 = vunpack.c.l.b16 %v64
  %v195 = vunpack.c.l.b16 %v65
  %v196 = vunpack.c.l.b16 %v66
  %v197 = vunpack.c.l.b16 %v67
  %v198 = vunpack.c.l.b16 %v68
  %v199 = vunpack.c.l.b16 %v69
  %v200 = vunpack.c.l.b16 %v70
  %v201 = vunpack.c.l.b16 %v71
  %v202 = vunpack.c.l.b16 %v72
  %v203 = vunpack.c.l.b16 %v73
  %v204 = vunpack.c.l.b16 %v74
  %v205 = vunpack.c.l.b16 %v75
  %v206 = vunpack.c.l.b16 %v76
  %v207 = vunpack.c.l.b16 %v77
  %v208 = vunpack.c.l.b16 %v78
  %v209 = vunpack.c.l.b16 %v79
  %v210 = vunpack.c.l.b16 %v80
  %v211 = vunpack.c.l.b16 %v81
  %v212 = vunpack.c.l.b16 %v82
  %v213 = vunpack.c.l.b16 %v83
  %v214 = vunpack.c.l.b16 %v84
  %v215 = vunpack.c.l.b16 %v85
  %v216 = vunpack.c.l.b16 %v86
  %v217 = vunpack.c.l.b16 %v87
  %v218 = vunpack.c.l.b16 %v88
  %v219 = vunpack.c.l.b16 %v89
  %v220 = vunpack.c.l.b16 %v90
  %v221 = vunpack.c.l.b16 %v91
  %v222 = vunpack.c.l.b16 %v92
  %v223 = vunpack.c.l.b16 %v93
  %v224 = vunpack.c.l.b16 %v94
  %v225 = vunpack.c.l.b16 %v95
  %v226 = vunpack.c.l.b16 %v96
  %v227 = vpack.c.b16 %v164, %v163
  %v228 = vpack.c.b16 %v166, %v165
  %v229 = vpack.c.b16 %v168, %v167
  %v230 = vpack.c.b16 %v170, %v169
  %v231 = vpack.c.b16 %v172, %v171
  %v232 = vpack.c.b16 %v174, %v173
  %v233 = vpack.c.b16 %v176, %v175
  %v234 = vpack.c.b16 %v178, %v177
  %v235 = vpack.c.b16 %v180, %v179
  %v236 = vpack.c.b16 %v182, %v181
  %v237 = vpack.c.b16 %v184, %v183
  %v238 = vpack.c.b16 %v186, %v185
  %v239 = vpack.c.b16 %v188, %v187
  %v240 = vpack.c.b16 %v190, %v189
  %v241 = vpack.c.b16 %v192, %v191
  %v242 = vpack.c.b16 %v194, %v193
  %v243 = vpack.c.b16 %v196, %v195
  %v244 = vpack.c.b16 %v198, %v197
  %v245 = vpack.c.b16 %v200, %v199
  %v246 = vpack.c.b16 %v202, %v201
  %v247 = vpack.c.b16 %v204, %v203
  %v248 = vpack.c.b16 %v206, %v205
  %v249 = vpack.c.b16 %v208, %v207
  %v250 = vpack.c.b16 %v210, %v209
  %v251 = vpack.c.b16 %v212, %v211
  %v252 = vpack.c.b16 %v214, %v213
  %v253 = vpack.c.b16 %v216, %v215
  %v254 = vpack.c.b16 %v218, %v217
  %v255 = vpack.c.b16 %v220, %v219
  %v256 = vpack.c.b16 %v222, %v221
  %v257 = vpack.c.b16 %v224, %v223
  %v258 = vpack.c.b16 %v226, %v225
  %vm259 = vcmask 48128
  %v261 = vsel %vm259, %v227, 0
  %v264 = vsel %vm259, %v228, 0
  %v267 = vsel %vm259, %v229, 0
  %v270 = vsel %vm259, %v230, 0
  %v273 = vsel %vm259, %v231, 0
  %v276 = vsel %vm259, %v232, 0
  %v279 = vsel %vm259, %v233, 0
  %v282 = vsel %vm259, %v234, 0
  %v285 = vsel %vm259, %v235, 0
  %v288 = vsel %vm259, %v236, 0
  %v291 = vsel %vm259, %v237, 0
  %v294 = vsel %vm259, %v238, 0
  %v297 = vsel %vm259, %v239, 0
  %v300 = vsel %vm259, %v240, 0
  %v303 = vsel %vm259, %v241, 0
  %v306 = vsel %vm259, %v242, 0
  %v309 = vsel %vm259, %v243, 0
  %v312 = vsel %vm259, %v244, 0
  %v315 = vsel %vm259, %v245, 0
  %v318 = vsel %vm259, %v246, 0
  %v321 = vsel %vm259, %v247, 0
  %v324 = vsel %vm259, %v248, 0
  %v327 = vsel %vm259, %v249, 0
  %v330 = vsel %vm259, %v250, 0
  %v333 = vsel %vm259, %v251, 0
  %v336 = vsel %vm259, %v252, 0
  %v339 = vsel %vm259, %v253, 0
  %v342 = vsel %vm259, %v254, 0
  %v345 = vsel %vm259, %v255, 0
  %v348 = vsel %vm259, %v256, 0
  %v351 = vsel %vm259, %v257, 0
  %v354 = vsel %vm259, %v258, 0
  %vm356 = vcmask 1042432
  %v358 = vsel %vm356, %v97, 0
  %360 = vmatpush.bf16.msra.mxu0 0
  %361 = vmatpush.bf16.msra.mxu0 0
  %362 = vmatpush.bf16.msra.mxu0 0
  %363 = vmatpush.bf16.msra.mxu0 0
  %364 = vmatpush.bf16.msra.mxu0 0
  %365 = vmatpush.bf16.msra.mxu0 0
  %366 = vmatpush.bf16.msra.mxu0 0
  %367 = vmatpush.bf16.msra.mxu0 %v358
  %368 = vmatmul.bf16.gmra.mxu0 %v261
  %v369 = vpop.f32.mrf.mxu0
  %v370 = vadd.f32 %v98, %v369
  %v371 = vpop.f32.mrf.mxu0
  %v372 = vadd.f32 %v98, %v371
  %373 = vmatmul.bf16.gmra.mxu0 %v264
  %v374 = vpop.f32.mrf.mxu0
  %v375 = vadd.f32 %v98, %v374
  %v376 = vpop.f32.mrf.mxu0
  %v377 = vadd.f32 %v98, %v376
  %378 = vmatmul.bf16.gmra.mxu0 %v267
  %v379 = vpop.f32.mrf.mxu0
  %v380 = vadd.f32 %v98, %v379
  %v381 = vpop.f32.mrf.mxu0
  %v382 = vadd.f32 %v98, %v381
  %383 = vmatmul.bf16.gmra.mxu0 %v270
  %v384 = vpop.f32.mrf.mxu0
  %v385 = vadd.f32 %v98, %v384
  %v386 = vpop.f32.mrf.mxu0
  %v387 = vadd.f32 %v98, %v386
  %388 = vmatmul.bf16.gmra.mxu0 %v273
  %v389 = vpop.f32.mrf.mxu0
  %v390 = vadd.f32 %v98, %v389
  %v391 = vpop.f32.mrf.mxu0
  %v392 = vadd.f32 %v98, %v391
  %393 = vmatmul.bf16.gmra.mxu0 %v276
  %v394 = vpop.f32.mrf.mxu0
  %v395 = vadd.f32 %v98, %v394
  %v396 = vpop.f32.mrf.mxu0
  %v397 = vadd.f32 %v98, %v396
  %398 = vmatmul.bf16.gmra.mxu0 %v279
  %v399 = vpop.f32.mrf.mxu0
  %v400 = vadd.f32 %v98, %v399
  %v401 = vpop.f32.mrf.mxu0
  %v402 = vadd.f32 %v98, %v401
  %403 = vmatmul.bf16.gmra.mxu0 %v282
  %v404 = vpop.f32.mrf.mxu0
  %v405 = vadd.f32 %v98, %v404
  %v406 = vpop.f32.mrf.mxu0
  %v407 = vadd.f32 %v98, %v406
  %408 = vmatmul.bf16.gmra.mxu0 %v285
  %v409 = vpop.f32.mrf.mxu0
  %v410 = vadd.f32 %v98, %v409
  %v411 = vpop.f32.mrf.mxu0
  %v412 = vadd.f32 %v98, %v411
  %413 = vmatmul.bf16.gmra.mxu0 %v288
  %v414 = vpop.f32.mrf.mxu0
  %v415 = vadd.f32 %v98, %v414
  %v416 = vpop.f32.mrf.mxu0
  %v417 = vadd.f32 %v98, %v416
  %418 = vmatmul.bf16.gmra.mxu0 %v291
  %v419 = vpop.f32.mrf.mxu0
  %v420 = vadd.f32 %v98, %v419
  %v421 = vpop.f32.mrf.mxu0
  %v422 = vadd.f32 %v98, %v421
  %423 = vmatmul.bf16.gmra.mxu0 %v294
  %v424 = vpop.f32.mrf.mxu0
  %v425 = vadd.f32 %v98, %v424
  %v426 = vpop.f32.mrf.mxu0
  %v427 = vadd.f32 %v98, %v426
  %428 = vmatmul.bf16.gmra.mxu0 %v297
  %v429 = vpop.f32.mrf.mxu0
  %v430 = vadd.f32 %v98, %v429
  %v431 = vpop.f32.mrf.mxu0
  %v432 = vadd.f32 %v98, %v431
  %433 = vmatmul.bf16.gmra.mxu0 %v300
  %v434 = vpop.f32.mrf.mxu0
  %v435 = vadd.f32 %v98, %v434
  %v436 = vpop.f32.mrf.mxu0
  %v437 = vadd.f32 %v98, %v436
  %438 = vmatmul.bf16.gmra.mxu0 %v303
  %v439 = vpop.f32.mrf.mxu0
  %v440 = vadd.f32 %v98, %v439
  %v441 = vpop.f32.mrf.mxu0
  %v442 = vadd.f32 %v98, %v441
  %443 = vmatmul.bf16.gmra.mxu0 %v306
  %v444 = vpop.f32.mrf.mxu0
  %v445 = vadd.f32 %v98, %v444
  %v446 = vpop.f32.mrf.mxu0
  %v447 = vadd.f32 %v98, %v446
  %448 = vmatmul.bf16.gmra.mxu0 %v309
  %v449 = vpop.f32.mrf.mxu0
  %v450 = vadd.f32 %v98, %v449
  %v451 = vpop.f32.mrf.mxu0
  %v452 = vadd.f32 %v98, %v451
  %453 = vmatmul.bf16.gmra.mxu0 %v312
  %v454 = vpop.f32.mrf.mxu0
  %v455 = vadd.f32 %v98, %v454
  %v456 = vpop.f32.mrf.mxu0
  %v457 = vadd.f32 %v98, %v456
  %458 = vmatmul.bf16.gmra.mxu0 %v315
  %v459 = vpop.f32.mrf.mxu0
  %v460 = vadd.f32 %v98, %v459
  %v461 = vpop.f32.mrf.mxu0
  %v462 = vadd.f32 %v98, %v461
  %463 = vmatmul.bf16.gmra.mxu0 %v318
  %v464 = vpop.f32.mrf.mxu0
  %v465 = vadd.f32 %v98, %v464
  %v466 = vpop.f32.mrf.mxu0
  %v467 = vadd.f32 %v98, %v466
  %468 = vmatmul.bf16.gmra.mxu0 %v321
  %v469 = vpop.f32.mrf.mxu0
  %v470 = vadd.f32 %v98, %v469
  %v471 = vpop.f32.mrf.mxu0
  %v472 = vadd.f32 %v98, %v471
  %473 = vmatmul.bf16.gmra.mxu0 %v324
  %v474 = vpop.f32.mrf.mxu0
  %v475 = vadd.f32 %v98, %v474
  %v476 = vpop.f32.mrf.mxu0
  %v477 = vadd.f32 %v98, %v476
  %478 = vmatmul.bf16.gmra.mxu0 %v327
  %v479 = vpop.f32.mrf.mxu0
  %v480 = vadd.f32 %v98, %v479
  %v481 = vpop.f32.mrf.mxu0
  %v482 = vadd.f32 %v98, %v481
  %483 = vmatmul.bf16.gmra.mxu0 %v330
  %v484 = vpop.f32.mrf.mxu0
  %v485 = vadd.f32 %v98, %v484
  %v486 = vpop.f32.mrf.mxu0
  %v487 = vadd.f32 %v98, %v486
  %488 = vmatmul.bf16.gmra.mxu0 %v333
  %v489 = vpop.f32.mrf.mxu0
  %v490 = vadd.f32 %v98, %v489
  %v491 = vpop.f32.mrf.mxu0
  %v492 = vadd.f32 %v98, %v491
  %493 = vmatmul.bf16.gmra.mxu0 %v336
  %v494 = vpop.f32.mrf.mxu0
  %v495 = vadd.f32 %v98, %v494
  %v496 = vpop.f32.mrf.mxu0
  %v497 = vadd.f32 %v98, %v496
  %498 = vmatmul.bf16.gmra.mxu0 %v339
  %v499 = vpop.f32.mrf.mxu0
  %v500 = vadd.f32 %v98, %v499
  %v501 = vpop.f32.mrf.mxu0
  %v502 = vadd.f32 %v98, %v501
  %503 = vmatmul.bf16.gmra.mxu0 %v342
  %v504 = vpop.f32.mrf.mxu0
  %v505 = vadd.f32 %v98, %v504
  %v506 = vpop.f32.mrf.mxu0
  %v507 = vadd.f32 %v98, %v506
  %508 = vmatmul.bf16.gmra.mxu0 %v345
  %v509 = vpop.f32.mrf.mxu0
  %v510 = vadd.f32 %v98, %v509
  %v511 = vpop.f32.mrf.mxu0
  %v512 = vadd.f32 %v98, %v511
  %513 = vmatmul.bf16.gmra.mxu0 %v348
  %v514 = vpop.f32.mrf.mxu0
  %v515 = vadd.f32 %v98, %v514
  %v516 = vpop.f32.mrf.mxu0
  %v517 = vadd.f32 %v98, %v516
  %518 = vmatmul.bf16.gmra.mxu0 %v351
  %v519 = vpop.f32.mrf.mxu0
  %v520 = vadd.f32 %v98, %v519
  %v521 = vpop.f32.mrf.mxu0
  %v522 = vadd.f32 %v98, %v521
  %523 = vmatmul.bf16.gmra.mxu0 %v354
  %v524 = vpop.f32.mrf.mxu0
  %v525 = vadd.f32 %v98, %v524
  %v526 = vpop.f32.mrf.mxu0
  %v527 = vadd.f32 %v98, %v526
  %528 = vdwg.mxu0
  %v529 = vmax.f32 %v370, 0.0
  %v530 = vmax.f32 %v372, 0.0
  %v531 = vmax.f32 %v375, 0.0
  %v532 = vmax.f32 %v377, 0.0
  %v533 = vmax.f32 %v380, 0.0
  %v534 = vmax.f32 %v382, 0.0
  %v535 = vmax.f32 %v385, 0.0
  %v536 = vmax.f32 %v387, 0.0
  %v537 = vmax.f32 %v390, 0.0
  %v538 = vmax.f32 %v392, 0.0
  %v539 = vmax.f32 %v395, 0.0
  %v540 = vmax.f32 %v397, 0.0
  %v541 = vmax.f32 %v400, 0.0
  %v542 = vmax.f32 %v402, 0.0
  %v543 = vmax.f32 %v405, 0.0
  %v544 = vmax.f32 %v407, 0.0
  %v545 = vmax.f32 %v410, 0.0
  %v546 = vmax.f32 %v412, 0.0
  %v547 = vmax.f32 %v415, 0.0
  %v548 = vmax.f32 %v417, 0.0
  %v549 = vmax.f32 %v420, 0.0
  %v550 = vmax.f32 %v422, 0.0
  %v551 = vmax.f32 %v425, 0.0
  %v552 = vmax.f32 %v427, 0.0
  %v553 = vmax.f32 %v430, 0.0
  %v554 = vmax.f32 %v432, 0.0
  %v555 = vmax.f32 %v435, 0.0
  %v556 = vmax.f32 %v437, 0.0
  %v557 = vmax.f32 %v440, 0.0
  %v558 = vmax.f32 %v442, 0.0
  %v559 = vmax.f32 %v445, 0.0
  %v560 = vmax.f32 %v447, 0.0
  %v561 = vmax.f32 %v450, 0.0
  %v562 = vmax.f32 %v452, 0.0
  %v563 = vmax.f32 %v455, 0.0
  %v564 = vmax.f32 %v457, 0.0
  %v565 = vmax.f32 %v460, 0.0
  %v566 = vmax.f32 %v462, 0.0
  %v567 = vmax.f32 %v465, 0.0
  %v568 = vmax.f32 %v467, 0.0
  %v569 = vmax.f32 %v470, 0.0
  %v570 = vmax.f32 %v472, 0.0
  %v571 = vmax.f32 %v475, 0.0
  %v572 = vmax.f32 %v477, 0.0
  %v573 = vmax.f32 %v480, 0.0
  %v574 = vmax.f32 %v482, 0.0
  %v575 = vmax.f32 %v485, 0.0
  %v576 = vmax.f32 %v487, 0.0
  %v577 = vmax.f32 %v490, 0.0
  %v578 = vmax.f32 %v492, 0.0
  %v579 = vmax.f32 %v495, 0.0
  %v580 = vmax.f32 %v497, 0.0
  %v581 = vmax.f32 %v500, 0.0
  %v582 = vmax.f32 %v502, 0.0
  %v583 = vmax.f32 %v505, 0.0
  %v584 = vmax.f32 %v507, 0.0
  %v585 = vmax.f32 %v510, 0.0
  %v586 = vmax.f32 %v512, 0.0
  %v587 = vmax.f32 %v515, 0.0
  %v588 = vmax.f32 %v517, 0.0
  %v589 = vmax.f32 %v520, 0.0
  %v590 = vmax.f32 %v522, 0.0
  %v591 = vmax.f32 %v525, 0.0
  %v592 = vmax.f32 %v527, 0.0
  %v593 = vpack.c.bf16 %v530, %v529
  %v594 = vpack.c.bf16 %v532, %v531
  %v595 = vpack.c.bf16 %v534, %v533
  %v596 = vpack.c.bf16 %v536, %v535
  %v597 = vpack.c.bf16 %v538, %v537
  %v598 = vpack.c.bf16 %v540, %v539
  %v599 = vpack.c.bf16 %v542, %v541
  %v600 = vpack.c.bf16 %v544, %v543
  %v601 = vpack.c.bf16 %v546, %v545
  %v602 = vpack.c.bf16 %v548, %v547
  %v603 = vpack.c.bf16 %v550, %v549
  %v604 = vpack.c.bf16 %v552, %v551
  %v605 = vpack.c.bf16 %v554, %v553
  %v606 = vpack.c.bf16 %v556, %v555
  %v607 = vpack.c.bf16 %v558, %v557
  %v608 = vpack.c.bf16 %v560, %v559
  %v609 = vpack.c.bf16 %v562, %v561
  %v610 = vpack.c.bf16 %v564, %v563
  %v611 = vpack.c.bf16 %v566, %v565
  %v612 = vpack.c.bf16 %v568, %v567
  %v613 = vpack.c.bf16 %v570, %v569
  %v614 = vpack.c.bf16 %v572, %v571
  %v615 = vpack.c.bf16 %v574, %v573
  %v616 = vpack.c.bf16 %v576, %v575
  %v617 = vpack.c.bf16 %v578, %v577
  %v618 = vpack.c.bf16 %v580, %v579
  %v619 = vpack.c.bf16 %v582, %v581
  %v620 = vpack.c.bf16 %v584, %v583
  %v621 = vpack.c.bf16 %v586, %v585
  %v622 = vpack.c.bf16 %v588, %v587
  %v623 = vpack.c.bf16 %v590, %v589
  %v624 = vpack.c.bf16 %v592, %v591
  %v625 = vld [vmem:[%s3] sm:$0xf]
  %v626 = vld [vmem:[%s3 + $0x4] sm:$0xf]
  %v627 = vld [vmem:[%s3 + $0x8] sm:$0xf]
  %v628 = vld [vmem:[%s3 + $0xc] sm:$0xf]
  %v629 = vld [vmem:[%s1 + $0x1] ss:$0 sm:$0xff]
  %v634 = vunpack.c.l.b16 %v625
  %v635 = vunpack.c.l.b16 %v626
  %v636 = vunpack.c.l.b16 %v627
  %v637 = vunpack.c.l.b16 %v628
  %v638 = vpack.c.b16 %v635, %v634
  %v639 = vpack.c.b16 %v637, %v636
  %vm642 = vcmask 261120
  %v644 = vsel %vm642, %v593, 0
  %v647 = vsel %vm642, %v594, 0
  %v650 = vsel %vm642, %v595, 0
  %v653 = vsel %vm642, %v596, 0
  %v656 = vsel %vm642, %v597, 0
  %v659 = vsel %vm642, %v598, 0
  %v662 = vsel %vm642, %v599, 0
  %v665 = vsel %vm642, %v600, 0
  %v668 = vsel %vm642, %v601, 0
  %v671 = vsel %vm642, %v602, 0
  %v674 = vsel %vm642, %v603, 0
  %v677 = vsel %vm642, %v604, 0
  %v680 = vsel %vm642, %v605, 0
  %v683 = vsel %vm642, %v606, 0
  %v686 = vsel %vm642, %v607, 0
  %v689 = vsel %vm642, %v608, 0
  %v692 = vsel %vm642, %v609, 0
  %v695 = vsel %vm642, %v610, 0
  %v698 = vsel %vm642, %v611, 0
  %v701 = vsel %vm642, %v612, 0
  %v704 = vsel %vm642, %v613, 0
  %v707 = vsel %vm642, %v614, 0
  %v710 = vsel %vm642, %v615, 0
  %v713 = vsel %vm642, %v616, 0
  %v716 = vsel %vm642, %v617, 0
  %v719 = vsel %vm642, %v618, 0
  %v722 = vsel %vm642, %v619, 0
  %v725 = vsel %vm642, %v620, 0
  %v728 = vsel %vm642, %v621, 0
  %v731 = vsel %vm642, %v622, 0
  %v734 = vsel %vm642, %v623, 0
  %v737 = vsel %vm642, %v624, 0
  %739 = vmatpush.bf16.msra.mxu0 0
  %740 = vmatpush.bf16.msra.mxu0 0
  %741 = vmatpush.bf16.msra.mxu0 0
  %742 = vmatpush.bf16.msra.mxu0 0
  %743 = vmatpush.bf16.msra.mxu0 0
  %744 = vmatpush.bf16.msra.mxu0 0
  %745 = vmatpush.bf16.msra.mxu0 %v639
  %746 = vmatpush.bf16.msra.mxu0 %v638
  %747 = vmatmul.bf16.gmra.mxu0 %v644
  %v748 = vpop.f32.mrf.mxu0
  %v749 = vadd.f32 %v629, %v748
  %v750 = vpop.f32.mrf.mxu0
  %v751 = vadd.f32 %v629, %v750
  %752 = vmatmul.bf16.gmra.mxu0 %v647
  %v753 = vpop.f32.mrf.mxu0
  %v754 = vadd.f32 %v629, %v753
  %v755 = vpop.f32.mrf.mxu0
  %v756 = vadd.f32 %v629, %v755
  %757 = vmatmul.bf16.gmra.mxu0 %v650
  %v758 = vpop.f32.mrf.mxu0
  %v759 = vadd.f32 %v629, %v758
  %v760 = vpop.f32.mrf.mxu0
  %v761 = vadd.f32 %v629, %v760
  %762 = vmatmul.bf16.gmra.mxu0 %v653
  %v763 = vpop.f32.mrf.mxu0
  %v764 = vadd.f32 %v629, %v763
  %v765 = vpop.f32.mrf.mxu0
  %v766 = vadd.f32 %v629, %v765
  %767 = vmatmul.bf16.gmra.mxu0 %v656
  %v768 = vpop.f32.mrf.mxu0
  %v769 = vadd.f32 %v629, %v768
  %v770 = vpop.f32.mrf.mxu0
  %v771 = vadd.f32 %v629, %v770
  %772 = vmatmul.bf16.gmra.mxu0 %v659
  %v773 = vpop.f32.mrf.mxu0
  %v774 = vadd.f32 %v629, %v773
  %v775 = vpop.f32.mrf.mxu0
  %v776 = vadd.f32 %v629, %v775
  %777 = vmatmul.bf16.gmra.mxu0 %v662
  %v778 = vpop.f32.mrf.mxu0
  %v779 = vadd.f32 %v629, %v778
  %v780 = vpop.f32.mrf.mxu0
  %v781 = vadd.f32 %v629, %v780
  %782 = vmatmul.bf16.gmra.mxu0 %v665
  %v783 = vpop.f32.mrf.mxu0
  %v784 = vadd.f32 %v629, %v783
  %v785 = vpop.f32.mrf.mxu0
  %v786 = vadd.f32 %v629, %v785
  %787 = vmatmul.bf16.gmra.mxu0 %v668
  %v788 = vpop.f32.mrf.mxu0
  %v789 = vadd.f32 %v629, %v788
  %v790 = vpop.f32.mrf.mxu0
  %v791 = vadd.f32 %v629, %v790
  %792 = vmatmul.bf16.gmra.mxu0 %v671
  %v793 = vpop.f32.mrf.mxu0
  %v794 = vadd.f32 %v629, %v793
  %v795 = vpop.f32.mrf.mxu0
  %v796 = vadd.f32 %v629, %v795
  %797 = vmatmul.bf16.gmra.mxu0 %v674
  %v798 = vpop.f32.mrf.mxu0
  %v799 = vadd.f32 %v629, %v798
  %v800 = vpop.f32.mrf.mxu0
  %v801 = vadd.f32 %v629, %v800
  %802 = vmatmul.bf16.gmra.mxu0 %v677
  %v803 = vpop.f32.mrf.mxu0
  %v804 = vadd.f32 %v629, %v803
  %v805 = vpop.f32.mrf.mxu0
  %v806 = vadd.f32 %v629, %v805
  %807 = vmatmul.bf16.gmra.mxu0 %v680
  %v808 = vpop.f32.mrf.mxu0
  %v809 = vadd.f32 %v629, %v808
  %v810 = vpop.f32.mrf.mxu0
  %v811 = vadd.f32 %v629, %v810
  %812 = vmatmul.bf16.gmra.mxu0 %v683
  %v813 = vpop.f32.mrf.mxu0
  %v814 = vadd.f32 %v629, %v813
  %v815 = vpop.f32.mrf.mxu0
  %v816 = vadd.f32 %v629, %v815
  %817 = vmatmul.bf16.gmra.mxu0 %v686
  %v818 = vpop.f32.mrf.mxu0
  %v819 = vadd.f32 %v629, %v818
  %v820 = vpop.f32.mrf.mxu0
  %v821 = vadd.f32 %v629, %v820
  %822 = vmatmul.bf16.gmra.mxu0 %v689
  %v823 = vpop.f32.mrf.mxu0
  %v824 = vadd.f32 %v629, %v823
  %v825 = vpop.f32.mrf.mxu0
  %v826 = vadd.f32 %v629, %v825
  %827 = vmatmul.bf16.gmra.mxu0 %v692
  %v828 = vpop.f32.mrf.mxu0
  %v829 = vadd.f32 %v629, %v828
  %v830 = vpop.f32.mrf.mxu0
  %v831 = vadd.f32 %v629, %v830
  %832 = vmatmul.bf16.gmra.mxu0 %v695
  %v833 = vpop.f32.mrf.mxu0
  %v834 = vadd.f32 %v629, %v833
  %v835 = vpop.f32.mrf.mxu0
  %v836 = vadd.f32 %v629, %v835
  %837 = vmatmul.bf16.gmra.mxu0 %v698
  %v838 = vpop.f32.mrf.mxu0
  %v839 = vadd.f32 %v629, %v838
  %v840 = vpop.f32.mrf.mxu0
  %v841 = vadd.f32 %v629, %v840
  %842 = vmatmul.bf16.gmra.mxu0 %v701
  %v843 = vpop.f32.mrf.mxu0
  %v844 = vadd.f32 %v629, %v843
  %v845 = vpop.f32.mrf.mxu0
  %v846 = vadd.f32 %v629, %v845
  %847 = vmatmul.bf16.gmra.mxu0 %v704
  %v848 = vpop.f32.mrf.mxu0
  %v849 = vadd.f32 %v629, %v848
  %v850 = vpop.f32.mrf.mxu0
  %v851 = vadd.f32 %v629, %v850
  %852 = vmatmul.bf16.gmra.mxu0 %v707
  %v853 = vpop.f32.mrf.mxu0
  %v854 = vadd.f32 %v629, %v853
  %v855 = vpop.f32.mrf.mxu0
  %v856 = vadd.f32 %v629, %v855
  %857 = vmatmul.bf16.gmra.mxu0 %v710
  %v858 = vpop.f32.mrf.mxu0
  %v859 = vadd.f32 %v629, %v858
  %v860 = vpop.f32.mrf.mxu0
  %v861 = vadd.f32 %v629, %v860
  %862 = vmatmul.bf16.gmra.mxu0 %v713
  %v863 = vpop.f32.mrf.mxu0
  %v864 = vadd.f32 %v629, %v863
  %v865 = vpop.f32.mrf.mxu0
  %v866 = vadd.f32 %v629, %v865
  %867 = vmatmul.bf16.gmra.mxu0 %v716
  %v868 = vpop.f32.mrf.mxu0
  %v869 = vadd.f32 %v629, %v868
  %v870 = vpop.f32.mrf.mxu0
  %v871 = vadd.f32 %v629, %v870
  %872 = vmatmul.bf16.gmra.mxu0 %v719
  %v873 = vpop.f32.mrf.mxu0
  %v874 = vadd.f32 %v629, %v873
  %v875 = vpop.f32.mrf.mxu0
  %v876 = vadd.f32 %v629, %v875
  %877 = vmatmul.bf16.gmra.mxu0 %v722
  %v878 = vpop.f32.mrf.mxu0
  %v879 = vadd.f32 %v629, %v878
  %v880 = vpop.f32.mrf.mxu0
  %v881 = vadd.f32 %v629, %v880
  %882 = vmatmul.bf16.gmra.mxu0 %v725
  %v883 = vpop.f32.mrf.mxu0
  %v884 = vadd.f32 %v629, %v883
  %v885 = vpop.f32.mrf.mxu0
  %v886 = vadd.f32 %v629, %v885
  %887 = vmatmul.bf16.gmra.mxu0 %v728
  %v888 = vpop.f32.mrf.mxu0
  %v889 = vadd.f32 %v629, %v888
  %v890 = vpop.f32.mrf.mxu0
  %v891 = vadd.f32 %v629, %v890
  %892 = vmatmul.bf16.gmra.mxu0 %v731
  %v893 = vpop.f32.mrf.mxu0
  %v894 = vadd.f32 %v629, %v893
  %v895 = vpop.f32.mrf.mxu0
  %v896 = vadd.f32 %v629, %v895
  %897 = vmatmul.bf16.gmra.mxu0 %v734
  %v898 = vpop.f32.mrf.mxu0
  %v899 = vadd.f32 %v629, %v898
  %v900 = vpop.f32.mrf.mxu0
  %v901 = vadd.f32 %v629, %v900
  %902 = vmatmul.bf16.gmra.mxu0 %v737
  %v903 = vpop.f32.mrf.mxu0
  %v904 = vadd.f32 %v629, %v903
  %v905 = vpop.f32.mrf.mxu0
  %v906 = vadd.f32 %v629, %v905
  %907 = vdwg.mxu0
  %v908 = vmax.f32 %v749, 0.0
  %v909 = vmax.f32 %v751, 0.0
  %v910 = vmax.f32 %v754, 0.0
  %v911 = vmax.f32 %v756, 0.0
  %v912 = vmax.f32 %v759, 0.0
  %v913 = vmax.f32 %v761, 0.0
  %v914 = vmax.f32 %v764, 0.0
  %v915 = vmax.f32 %v766, 0.0
  %v916 = vmax.f32 %v769, 0.0
  %v917 = vmax.f32 %v771, 0.0
  %v918 = vmax.f32 %v774, 0.0
  %v919 = vmax.f32 %v776, 0.0
  %v920 = vmax.f32 %v779, 0.0
  %v921 = vmax.f32 %v781, 0.0
  %v922 = vmax.f32 %v784, 0.0
  %v923 = vmax.f32 %v786, 0.0
  %v924 = vmax.f32 %v789, 0.0
  %v925 = vmax.f32 %v791, 0.0
  %v926 = vmax.f32 %v794, 0.0
  %v927 = vmax.f32 %v796, 0.0
  %v928 = vmax.f32 %v799, 0.0
  %v929 = vmax.f32 %v801, 0.0
  %v930 = vmax.f32 %v804, 0.0
  %v931 = vmax.f32 %v806, 0.0
  %v932 = vmax.f32 %v809, 0.0
  %v933 = vmax.f32 %v811, 0.0
  %v934 = vmax.f32 %v814, 0.0
  %v935 = vmax.f32 %v816, 0.0
  %v936 = vmax.f32 %v819, 0.0
  %v937 = vmax.f32 %v821, 0.0
  %v938 = vmax.f32 %v824, 0.0
  %v939 = vmax.f32 %v826, 0.0
  %v940 = vmax.f32 %v829, 0.0
  %v941 = vmax.f32 %v831, 0.0
  %v942 = vmax.f32 %v834, 0.0
  %v943 = vmax.f32 %v836, 0.0
  %v944 = vmax.f32 %v839, 0.0
  %v945 = vmax.f32 %v841, 0.0
  %v946 = vmax.f32 %v844, 0.0
  %v947 = vmax.f32 %v846, 0.0
  %v948 = vmax.f32 %v849, 0.0
  %v949 = vmax.f32 %v851, 0.0
  %v950 = vmax.f32 %v854, 0.0
  %v951 = vmax.f32 %v856, 0.0
  %v952 = vmax.f32 %v859, 0.0
  %v953 = vmax.f32 %v861, 0.0
  %v954 = vmax.f32 %v864, 0.0
  %v955 = vmax.f32 %v866, 0.0
  %v956 = vmax.f32 %v869, 0.0
  %v957 = vmax.f32 %v871, 0.0
  %v958 = vmax.f32 %v874, 0.0
  %v959 = vmax.f32 %v876, 0.0
  %v960 = vmax.f32 %v879, 0.0
  %v961 = vmax.f32 %v881, 0.0
  %v962 = vmax.f32 %v884, 0.0
  %v963 = vmax.f32 %v886, 0.0
  %v964 = vmax.f32 %v889, 0.0
  %v965 = vmax.f32 %v891, 0.0
  %v966 = vmax.f32 %v894, 0.0
  %v967 = vmax.f32 %v896, 0.0
  %v968 = vmax.f32 %v899, 0.0
  %v969 = vmax.f32 %v901, 0.0
  %v970 = vmax.f32 %v904, 0.0
  %v971 = vmax.f32 %v906, 0.0
  %v972 = vpack.c.bf16 %v909, %v908
  %v973 = vpack.c.bf16 %v911, %v910
  %v974 = vpack.c.bf16 %v913, %v912
  %v975 = vpack.c.bf16 %v915, %v914
  %v976 = vpack.c.bf16 %v917, %v916
  %v977 = vpack.c.bf16 %v919, %v918
  %v978 = vpack.c.bf16 %v921, %v920
  %v979 = vpack.c.bf16 %v923, %v922
  %v980 = vpack.c.bf16 %v925, %v924
  %v981 = vpack.c.bf16 %v927, %v926
  %v982 = vpack.c.bf16 %v929, %v928
  %v983 = vpack.c.bf16 %v931, %v930
  %v984 = vpack.c.bf16 %v933, %v932
  %v985 = vpack.c.bf16 %v935, %v934
  %v986 = vpack.c.bf16 %v937, %v936
  %v987 = vpack.c.bf16 %v939, %v938
  %v988 = vpack.c.bf16 %v941, %v940
  %v989 = vpack.c.bf16 %v943, %v942
  %v990 = vpack.c.bf16 %v945, %v944
  %v991 = vpack.c.bf16 %v947, %v946
  %v992 = vpack.c.bf16 %v949, %v948
  %v993 = vpack.c.bf16 %v951, %v950
  %v994 = vpack.c.bf16 %v953, %v952
  %v995 = vpack.c.bf16 %v955, %v954
  %v996 = vpack.c.bf16 %v957, %v956
  %v997 = vpack.c.bf16 %v959, %v958
  %v998 = vpack.c.bf16 %v961, %v960
  %v999 = vpack.c.bf16 %v963, %v962
  %v1000 = vpack.c.bf16 %v965, %v964
  %v1001 = vpack.c.bf16 %v967, %v966
  %v1002 = vpack.c.bf16 %v969, %v968
  %v1003 = vpack.c.bf16 %v971, %v970
  %v1004 = vld [vmem:[%s4] sm:$0xf]
  %v1005 = vld [vmem:[%s4 + $0x4] sm:$0xf]
  %v1006 = vld [vmem:[%s4 + $0x8] sm:$0xf]
  %v1007 = vld [vmem:[%s4 + $0xc] sm:$0xf]
  %v1008 = vld [vmem:[%s4 + $0x10] sm:$0xf]
  %v1009 = vld [vmem:[%s4 + $0x14] sm:$0xf]
  %v1010 = vld [vmem:[%s1 + $0x2] ss:$0 sm:$0xff]
  %v1017 = vunpack.c.l.b16 %v1004
  %v1018 = vunpack.c.l.b16 %v1005
  %v1019 = vunpack.c.l.b16 %v1006
  %v1020 = vunpack.c.l.b16 %v1007
  %v1021 = vunpack.c.l.b16 %v1008
  %v1022 = vunpack.c.l.b16 %v1009
  %v1023 = vpack.c.b16 %v1018, %v1017
  %v1024 = vpack.c.b16 %v1020, %v1019
  %v1025 = vpack.c.b16 %v1022, %v1021
  %vm1029 = vcmask 392192
  %v1031 = vsel %vm1029, %v972, 0
  %v1034 = vsel %vm1029, %v973, 0
  %v1037 = vsel %vm1029, %v974, 0
  %v1040 = vsel %vm1029, %v975, 0
  %v1043 = vsel %vm1029, %v976, 0
  %v1046 = vsel %vm1029, %v977, 0
  %v1049 = vsel %vm1029, %v978, 0
  %v1052 = vsel %vm1029, %v979, 0
  %v1055 = vsel %vm1029, %v980, 0
  %v1058 = vsel %vm1029, %v981, 0
  %v1061 = vsel %vm1029, %v982, 0
  %v1064 = vsel %vm1029, %v983, 0
  %v1067 = vsel %vm1029, %v984, 0
  %v1070 = vsel %vm1029, %v985, 0
  %v1073 = vsel %vm1029, %v986, 0
  %v1076 = vsel %vm1029, %v987, 0
  %v1079 = vsel %vm1029, %v988, 0
  %v1082 = vsel %vm1029, %v989, 0
  %v1085 = vsel %vm1029, %v990, 0
  %v1088 = vsel %vm1029, %v991, 0
  %v1091 = vsel %vm1029, %v992, 0
  %v1094 = vsel %vm1029, %v993, 0
  %v1097 = vsel %vm1029, %v994, 0
  %v1100 = vsel %vm1029, %v995, 0
  %v1103 = vsel %vm1029, %v996, 0
  %v1106 = vsel %vm1029, %v997, 0
  %v1109 = vsel %vm1029, %v998, 0
  %v1112 = vsel %vm1029, %v999, 0
  %v1115 = vsel %vm1029, %v1000, 0
  %v1118 = vsel %vm1029, %v1001, 0
  %v1121 = vsel %vm1029, %v1002, 0
  %v1124 = vsel %vm1029, %v1003, 0
  %1126 = vmatpush.bf16.msra.mxu0 0
  %1127 = vmatpush.bf16.msra.mxu0 0
  %1128 = vmatpush.bf16.msra.mxu0 0
  %1129 = vmatpush.bf16.msra.mxu0 0
  %1130 = vmatpush.bf16.msra.mxu0 0
  %1131 = vmatpush.bf16.msra.mxu0 %v1025
  %1132 = vmatpush.bf16.msra.mxu0 %v1024
  %1133 = vmatpush.bf16.msra.mxu0 %v1023
  %1134 = vmatmul.bf16.gmra.mxu0 %v1031
  %v1135 = vpop.f32.mrf.mxu0
  %v1136 = vadd.f32 %v1010, %v1135
  %v1137 = vpop.f32.mrf.mxu0
  %v1138 = vadd.f32 %v1010, %v1137
  %1139 = vmatmul.bf16.gmra.mxu0 %v1034
  %v1140 = vpop.f32.mrf.mxu0
  %v1141 = vadd.f32 %v1010, %v1140
  %v1142 = vpop.f32.mrf.mxu0
  %v1143 = vadd.f32 %v1010, %v1142
  %1144 = vmatmul.bf16.gmra.mxu0 %v1037
  %v1145 = vpop.f32.mrf.mxu0
  %v1146 = vadd.f32 %v1010, %v1145
  %v1147 = vpop.f32.mrf.mxu0
  %v1148 = vadd.f32 %v1010, %v1147
  %1149 = vmatmul.bf16.gmra.mxu0 %v1040
  %v1150 = vpop.f32.mrf.mxu0
  %v1151 = vadd.f32 %v1010, %v1150
  %v1152 = vpop.f32.mrf.mxu0
  %v1153 = vadd.f32 %v1010, %v1152
  %1154 = vmatmul.bf16.gmra.mxu0 %v1043
  %v1155 = vpop.f32.mrf.mxu0
  %v1156 = vadd.f32 %v1010, %v1155
  %v1157 = vpop.f32.mrf.mxu0
  %v1158 = vadd.f32 %v1010, %v1157
  %1159 = vmatmul.bf16.gmra.mxu0 %v1046
  %v1160 = vpop.f32.mrf.mxu0
  %v1161 = vadd.f32 %v1010, %v1160
  %v1162 = vpop.f32.mrf.mxu0
  %v1163 = vadd.f32 %v1010, %v1162
  %1164 = vmatmul.bf16.gmra.mxu0 %v1049
  %v1165 = vpop.f32.mrf.mxu0
  %v1166 = vadd.f32 %v1010, %v1165
  %v1167 = vpop.f32.mrf.mxu0
  %v1168 = vadd.f32 %v1010, %v1167
  %1169 = vmatmul.bf16.gmra.mxu0 %v1052
  %v1170 = vpop.f32.mrf.mxu0
  %v1171 = vadd.f32 %v1010, %v1170
  %v1172 = vpop.f32.mrf.mxu0
  %v1173 = vadd.f32 %v1010, %v1172
  %1174 = vmatmul.bf16.gmra.mxu0 %v1055
  %v1175 = vpop.f32.mrf.mxu0
  %v1176 = vadd.f32 %v1010, %v1175
  %v1177 = vpop.f32.mrf.mxu0
  %v1178 = vadd.f32 %v1010, %v1177
  %1179 = vmatmul.bf16.gmra.mxu0 %v1058
  %v1180 = vpop.f32.mrf.mxu0
  %v1181 = vadd.f32 %v1010, %v1180
  %v1182 = vpop.f32.mrf.mxu0
  %v1183 = vadd.f32 %v1010, %v1182
  %1184 = vmatmul.bf16.gmra.mxu0 %v1061
  %v1185 = vpop.f32.mrf.mxu0
  %v1186 = vadd.f32 %v1010, %v1185
  %v1187 = vpop.f32.mrf.mxu0
  %v1188 = vadd.f32 %v1010, %v1187
  %1189 = vmatmul.bf16.gmra.mxu0 %v1064
  %v1190 = vpop.f32.mrf.mxu0
  %v1191 = vadd.f32 %v1010, %v1190
  %v1192 = vpop.f32.mrf.mxu0
  %v1193 = vadd.f32 %v1010, %v1192
  %1194 = vmatmul.bf16.gmra.mxu0 %v1067
  %v1195 = vpop.f32.mrf.mxu0
  %v1196 = vadd.f32 %v1010, %v1195
  %v1197 = vpop.f32.mrf.mxu0
  %v1198 = vadd.f32 %v1010, %v1197
  %1199 = vmatmul.bf16.gmra.mxu0 %v1070
  %v1200 = vpop.f32.mrf.mxu0
  %v1201 = vadd.f32 %v1010, %v1200
  %v1202 = vpop.f32.mrf.mxu0
  %v1203 = vadd.f32 %v1010, %v1202
  %1204 = vmatmul.bf16.gmra.mxu0 %v1073
  %v1205 = vpop.f32.mrf.mxu0
  %v1206 = vadd.f32 %v1010, %v1205
  %v1207 = vpop.f32.mrf.mxu0
  %v1208 = vadd.f32 %v1010, %v1207
  %1209 = vmatmul.bf16.gmra.mxu0 %v1076
  %v1210 = vpop.f32.mrf.mxu0
  %v1211 = vadd.f32 %v1010, %v1210
  %v1212 = vpop.f32.mrf.mxu0
  %v1213 = vadd.f32 %v1010, %v1212
  %1214 = vmatmul.bf16.gmra.mxu0 %v1079
  %v1215 = vpop.f32.mrf.mxu0
  %v1216 = vadd.f32 %v1010, %v1215
  %v1217 = vpop.f32.mrf.mxu0
  %v1218 = vadd.f32 %v1010, %v1217
  %1219 = vmatmul.bf16.gmra.mxu0 %v1082
  %v1220 = vpop.f32.mrf.mxu0
  %v1221 = vadd.f32 %v1010, %v1220
  %v1222 = vpop.f32.mrf.mxu0
  %v1223 = vadd.f32 %v1010, %v1222
  %1224 = vmatmul.bf16.gmra.mxu0 %v1085
  %v1225 = vpop.f32.mrf.mxu0
  %v1226 = vadd.f32 %v1010, %v1225
  %v1227 = vpop.f32.mrf.mxu0
  %v1228 = vadd.f32 %v1010, %v1227
  %1229 = vmatmul.bf16.gmra.mxu0 %v1088
  %v1230 = vpop.f32.mrf.mxu0
  %v1231 = vadd.f32 %v1010, %v1230
  %v1232 = vpop.f32.mrf.mxu0
  %v1233 = vadd.f32 %v1010, %v1232
  %1234 = vmatmul.bf16.gmra.mxu0 %v1091
  %v1235 = vpop.f32.mrf.mxu0
  %v1236 = vadd.f32 %v1010, %v1235
  %v1237 = vpop.f32.mrf.mxu0
  %v1238 = vadd.f32 %v1010, %v1237
  %1239 = vmatmul.bf16.gmra.mxu0 %v1094
  %v1240 = vpop.f32.mrf.mxu0
  %v1241 = vadd.f32 %v1010, %v1240
  %v1242 = vpop.f32.mrf.mxu0
  %v1243 = vadd.f32 %v1010, %v1242
  %1244 = vmatmul.bf16.gmra.mxu0 %v1097
  %v1245 = vpop.f32.mrf.mxu0
  %v1246 = vadd.f32 %v1010, %v1245
  %v1247 = vpop.f32.mrf.mxu0
  %v1248 = vadd.f32 %v1010, %v1247
  %1249 = vmatmul.bf16.gmra.mxu0 %v1100
  %v1250 = vpop.f32.mrf.mxu0
  %v1251 = vadd.f32 %v1010, %v1250
  %v1252 = vpop.f32.mrf.mxu0
  %v1253 = vadd.f32 %v1010, %v1252
  %1254 = vmatmul.bf16.gmra.mxu0 %v1103
  %v1255 = vpop.f32.mrf.mxu0
  %v1256 = vadd.f32 %v1010, %v1255
  %v1257 = vpop.f32.mrf.mxu0
  %v1258 = vadd.f32 %v1010, %v1257
  %1259 = vmatmul.bf16.gmra.mxu0 %v1106
  %v1260 = vpop.f32.mrf.mxu0
  %v1261 = vadd.f32 %v1010, %v1260
  %v1262 = vpop.f32.mrf.mxu0
  %v1263 = vadd.f32 %v1010, %v1262
  %1264 = vmatmul.bf16.gmra.mxu0 %v1109
  %v1265 = vpop.f32.mrf.mxu0
  %v1266 = vadd.f32 %v1010, %v1265
  %v1267 = vpop.f32.mrf.mxu0
  %v1268 = vadd.f32 %v1010, %v1267
  %1269 = vmatmul.bf16.gmra.mxu0 %v1112
  %v1270 = vpop.f32.mrf.mxu0
  %v1271 = vadd.f32 %v1010, %v1270
  %v1272 = vpop.f32.mrf.mxu0
  %v1273 = vadd.f32 %v1010, %v1272
  %1274 = vmatmul.bf16.gmra.mxu0 %v1115
  %v1275 = vpop.f32.mrf.mxu0
  %v1276 = vadd.f32 %v1010, %v1275
  %v1277 = vpop.f32.mrf.mxu0
  %v1278 = vadd.f32 %v1010, %v1277
  %1279 = vmatmul.bf16.gmra.mxu0 %v1118
  %v1280 = vpop.f32.mrf.mxu0
  %v1281 = vadd.f32 %v1010, %v1280
  %v1282 = vpop.f32.mrf.mxu0
  %v1283 = vadd.f32 %v1010, %v1282
  %1284 = vmatmul.bf16.gmra.mxu0 %v1121
  %v1285 = vpop.f32.mrf.mxu0
  %v1286 = vadd.f32 %v1010, %v1285
  %v1287 = vpop.f32.mrf.mxu0
  %v1288 = vadd.f32 %v1010, %v1287
  %1289 = vmatmul.bf16.gmra.mxu0 %v1124
  %v1290 = vpop.f32.mrf.mxu0
  %v1291 = vadd.f32 %v1010, %v1290
  %v1292 = vpop.f32.mrf.mxu0
  %v1293 = vadd.f32 %v1010, %v1292
  %1294 = vdwg.mxu0
  %v1295 = vmax.f32 %v1136, 0.0
  %v1296 = vmax.f32 %v1138, 0.0
  %v1297 = vmax.f32 %v1141, 0.0
  %v1298 = vmax.f32 %v1143, 0.0
  %v1299 = vmax.f32 %v1146, 0.0
  %v1300 = vmax.f32 %v1148, 0.0
  %v1301 = vmax.f32 %v1151, 0.0
  %v1302 = vmax.f32 %v1153, 0.0
  %v1303 = vmax.f32 %v1156, 0.0
  %v1304 = vmax.f32 %v1158, 0.0
  %v1305 = vmax.f32 %v1161, 0.0
  %v1306 = vmax.f32 %v1163, 0.0
  %v1307 = vmax.f32 %v1166, 0.0
  %v1308 = vmax.f32 %v1168, 0.0
  %v1309 = vmax.f32 %v1171, 0.0
  %v1310 = vmax.f32 %v1173, 0.0
  %v1311 = vmax.f32 %v1176, 0.0
  %v1312 = vmax.f32 %v1178, 0.0
  %v1313 = vmax.f32 %v1181, 0.0
  %v1314 = vmax.f32 %v1183, 0.0
  %v1315 = vmax.f32 %v1186, 0.0
  %v1316 = vmax.f32 %v1188, 0.0
  %v1317 = vmax.f32 %v1191, 0.0
  %v1318 = vmax.f32 %v1193, 0.0
  %v1319 = vmax.f32 %v1196, 0.0
  %v1320 = vmax.f32 %v1198, 0.0
  %v1321 = vmax.f32 %v1201, 0.0
  %v1322 = vmax.f32 %v1203, 0.0
  %v1323 = vmax.f32 %v1206, 0.0
  %v1324 = vmax.f32 %v1208, 0.0
  %v1325 = vmax.f32 %v1211, 0.0
  %v1326 = vmax.f32 %v1213, 0.0
  %v1327 = vmax.f32 %v1216, 0.0
  %v1328 = vmax.f32 %v1218, 0.0
  %v1329 = vmax.f32 %v1221, 0.0
  %v1330 = vmax.f32 %v1223, 0.0
  %v1331 = vmax.f32 %v1226, 0.0
  %v1332 = vmax.f32 %v1228, 0.0
  %v1333 = vmax.f32 %v1231, 0.0
  %v1334 = vmax.f32 %v1233, 0.0
  %v1335 = vmax.f32 %v1236, 0.0
  %v1336 = vmax.f32 %v1238, 0.0
  %v1337 = vmax.f32 %v1241, 0.0
  %v1338 = vmax.f32 %v1243, 0.0
  %v1339 = vmax.f32 %v1246, 0.0
  %v1340 = vmax.f32 %v1248, 0.0
  %v1341 = vmax.f32 %v1251, 0.0
  %v1342 = vmax.f32 %v1253, 0.0
  %v1343 = vmax.f32 %v1256, 0.0
  %v1344 = vmax.f32 %v1258, 0.0
  %v1345 = vmax.f32 %v1261, 0.0
  %v1346 = vmax.f32 %v1263, 0.0
  %v1347 = vmax.f32 %v1266, 0.0
  %v1348 = vmax.f32 %v1268, 0.0
  %v1349 = vmax.f32 %v1271, 0.0
  %v1350 = vmax.f32 %v1273, 0.0
  %v1351 = vmax.f32 %v1276, 0.0
  %v1352 = vmax.f32 %v1278, 0.0
  %v1353 = vmax.f32 %v1281, 0.0
  %v1354 = vmax.f32 %v1283, 0.0
  %v1355 = vmax.f32 %v1286, 0.0
  %v1356 = vmax.f32 %v1288, 0.0
  %v1357 = vmax.f32 %v1291, 0.0
  %v1358 = vmax.f32 %v1293, 0.0
  %v1359 = vmax.f32 %v1295, %v1297
  %v1360 = vmax.f32 %v1296, %v1298
  %v1361 = vmax.f32 %v1327, %v1329
  %v1362 = vmax.f32 %v1328, %v1330
  %v1363 = vmax.f32 %v1299, %v1301
  %v1364 = vmax.f32 %v1300, %v1302
  %v1365 = vmax.f32 %v1331, %v1333
  %v1366 = vmax.f32 %v1332, %v1334
  %v1367 = vmax.f32 %v1303, %v1305
  %v1368 = vmax.f32 %v1304, %v1306
  %v1369 = vmax.f32 %v1335, %v1337
  %v1370 = vmax.f32 %v1336, %v1338
  %v1371 = vmax.f32 %v1307, %v1309
  %v1372 = vmax.f32 %v1308, %v1310
  %v1373 = vmax.f32 %v1339, %v1341
  %v1374 = vmax.f32 %v1340, %v1342
  %v1375 = vmax.f32 %v1311, %v1313
  %v1376 = vmax.f32 %v1312, %v1314
  %v1377 = vmax.f32 %v1343, %v1345
  %v1378 = vmax.f32 %v1344, %v1346
  %v1379 = vmax.f32 %v1315, %v1317
  %v1380 = vmax.f32 %v1316, %v1318
  %v1381 = vmax.f32 %v1347, %v1349
  %v1382 = vmax.f32 %v1348, %v1350
  %v1383 = vmax.f32 %v1319, %v1321
  %v1384 = vmax.f32 %v1320, %v1322
  %v1385 = vmax.f32 %v1351, %v1353
  %v1386 = vmax.f32 %v1352, %v1354
  %v1387 = vmax.f32 %v1323, %v1325
  %v1388 = vmax.f32 %v1324, %v1326
  %v1389 = vmax.f32 %v1355, %v1357
  %v1390 = vmax.f32 %v1356, %v1358
  %v1391 = vmax.f32 %v1359, %v1363
  %v1392 = vmax.f32 %v1360, %v1364
  %v1393 = vmax.f32 %v1361, %v1365
  %v1394 = vmax.f32 %v1362, %v1366
  %v1395 = vmax.f32 %v1367, %v1371
  %v1396 = vmax.f32 %v1368, %v1372
  %v1397 = vmax.f32 %v1369, %v1373
  %v1398 = vmax.f32 %v1370, %v1374
  %v1399 = vmax.f32 %v1375, %v1379
  %v1400 = vmax.f32 %v1376, %v1380
  %v1401 = vmax.f32 %v1377, %v1381
  %v1402 = vmax.f32 %v1378, %v1382
  %v1403 = vmax.f32 %v1383, %v1387
  %v1404 = vmax.f32 %v1384, %v1388
  %v1405 = vmax.f32 %v1385, %v1389
  %v1406 = vmax.f32 %v1386, %v1390
  %v1407 = vmax.f32 %v1391, %v1395
  %v1408 = vmax.f32 %v1392, %v1396
  %v1409 = vmax.f32 %v1393, %v1397
  %v1410 = vmax.f32 %v1394, %v1398
  %v1411 = vmax.f32 %v1399, %v1403
  %v1412 = vmax.f32 %v1400, %v1404
  %v1413 = vmax.f32 %v1401, %v1405
  %v1414 = vmax.f32 %v1402, %v1406
  %v1415 = vmax.f32 %v1407, %v1411
  %v1416 = vmax.f32 %v1408, %v1412
  %v1417 = vmax.f32 %v1409, %v1413
  %v1418 = vmax.f32 %v1410, %v1414
  %v1419 = vld [vmem:[%s5] sm:$0xff]
  %v1420 = vld [vmem:[%s5 + $0x8] sm:$0xf]
  %v1421 = vld [vmem:[%s5 + $0xc] sm:$0xff]
  %v1422 = vld [vmem:[%s5 + $0x14] sm:$0xf]
  %v1423 = vld [vmem:[%s5 + $0x18] sm:$0xff]
  %v1424 = vld [vmem:[%s5 + $0x20] sm:$0xf]
  %v1425 = vld [vmem:[%s5 + $0x24] sm:$0xff]
  %v1426 = vld [vmem:[%s5 + $0x2c] sm:$0xf]
  %v1427 = vld [vmem:[%s5 + $0x30] sm:$0xff]
  %v1428 = vld [vmem:[%s5 + $0x38] sm:$0xf]
  %v1429 = vld [vmem:[%s5 + $0x3c] sm:$0xff]
  %v1430 = vld [vmem:[%s5 + $0x44] sm:$0xf]
  %v1431 = vld [vmem:[%s5 + $0x48] sm:$0xff]
  %v1432 = vld [vmem:[%s5 + $0x50] sm:$0xf]
  %v1433 = vld [vmem:[%s5 + $0x54] sm:$0xff]
  %v1434 = vld [vmem:[%s5 + $0x5c] sm:$0xf]
  %v1435 = vld [vmem:[%s6] sm:$0xf]
  %v1436 = vld [vmem:[%s6 + $0x4] sm:$0xf]
  %v1437 = vld [vmem:[%s6 + $0x8] sm:$0xf]
  %v1438 = vld [vmem:[%s6 + $0xc] sm:$0xf]
  %v1439 = vld [vmem:[%s6 + $0x10] sm:$0xf]
  %v1440 = vld [vmem:[%s6 + $0x14] sm:$0xf]
  %v1441 = vld [vmem:[%s6 + $0x18] sm:$0xf]
  %v1442 = vld [vmem:[%s6 + $0x1c] sm:$0xf]
  %v1443 = vld [vmem:[%s7] sm:$0xf]
  %v1444 = vld [vmem:[%s7 + $0x4] sm:$0xf]
  %v1445 = vld [vmem:[%s7 + $0x8] sm:$0xf]
  %v1446 = vld [vmem:[%s7 + $0xc] sm:$0xf]
  %v1447 = vld [vmem:[%s7 + $0x10] sm:$0xf]
  %v1448 = vld [vmem:[%s7 + $0x14] sm:$0xf]
  %v1449 = vld [vmem:[%s7 + $0x18] sm:$0xf]
  %v1450 = vld [vmem:[%s7 + $0x1c] sm:$0xf]
  %v1451 = vld [vmem:[%s8] sm:$0xf]
  %v1452 = vld [vmem:[%s8 + $0x4] sm:$0xf]
  %v1453 = vld [vmem:[%s8 + $0x8] sm:$0xf]
  %v1454 = vld [vmem:[%s8 + $0xc] sm:$0xf]
  %v1455 = vld [vmem:[%s8 + $0x10] sm:$0xf]
  %v1456 = vld [vmem:[%s8 + $0x14] sm:$0xf]
  %v1457 = vld [vmem:[%s8 + $0x18] sm:$0xf]
  %v1458 = vld [vmem:[%s8 + $0x1c] sm:$0xf]
  %v1459 = vld [vmem:[%s8 + $0x20] sm:$0xf]
  %v1460 = vld [vmem:[%s8 + $0x24] sm:$0xf]
  %v1461 = vld [vmem:[%s8 + $0x28] sm:$0xf]
  %v1462 = vld [vmem:[%s8 + $0x2c] sm:$0xf]
  %v1463 = vld [vmem:[%s8 + $0x30] sm:$0xf]
  %v1464 = vld [vmem:[%s8 + $0x34] sm:$0xf]
  %v1465 = vld [vmem:[%s8 + $0x38] sm:$0xf]
  %v1466 = vld [vmem:[%s8 + $0x3c] sm:$0xf]
  %s1467 = scalar_lea.vmem %s1, 3
  %v1468 = vld [vmem:[%s1467] ss:$8 sm:$0x7]
  %v1469 = vld [vmem:[%s1 + $0x4] ss:$0 sm:$0xff]
  %v1470 = vld [vmem:[%s1 + $0x5] ss:$0 sm:$0xff]
  %v1471 = vld [vmem:[%s1 + $0x6] ss:$0 sm:$0xff]
  %v1472 = vld [vmem:[%s1 + $0x7] ss:$0 sm:$0xff]
  %v1473 = vld [vmem:[%s1 + $0x18] ss:$0 sm:$0xff]
  %v1474 = vld [vmem:[%s1 + $0x19] ss:$0 sm:$0xff]
  %v1475 = vld [vmem:[%s1 + $0x1a] ss:$0 sm:$0xff]
  %vm1476 = vcmask 523264
  %v1477 = vsel %vm1476, %v1415, 0.0
  %1478 = vadd.xlane.f32.xlu0 %v1477
  %v1479 = vpop.xlane.xlu0 %1478
  %v1480 = vsel %vm1476, %v1416, 0.0
  %1481 = vadd.xlane.f32.xlu0 %v1480
  %v1482 = vpop.xlane.xlu0 %1481
  %v1483 = vsel %vm1476, %v1417, 0.0
  %1484 = vadd.xlane.f32.xlu0 %v1483
  %v1485 = vpop.xlane.xlu0 %1484
  %v1486 = vsel %vm1476, %v1418, 0.0
  %1487 = vadd.xlane.f32.xlu0 %v1486
  %v1488 = vpop.xlane.xlu0 %1487
  %v1489 = vrcp.pop 64.0
  %v1490 = vmul.f32 64.0, %v1489
  %v1491 = vsub.f32 1.0, %v1490
  %v1492 = vmul.f32 %v1489, %v1491
  %v1493 = vadd.f32 %v1489, %v1492
  %vm1494 = vweird.f32 %v1489
  %v1495 = vsel %vm1494, %v1489, %v1493
  %v1496 = vmul.f32 %v1479, %v1495
  %v1497 = vmul.f32 %v1482, %v1495
  %v1498 = vmul.f32 %v1485, %v1495
  %v1499 = vmul.f32 %v1488, %v1495
  %v1500 = vsub.f32 %v1415, %v1496
  %v1501 = vsub.f32 %v1416, %v1497
  %v1502 = vsub.f32 %v1417, %v1498
  %v1503 = vsub.f32 %v1418, %v1499
  %v1504 = vmul.f32 %v1500, %v1500
  %v1505 = vmul.f32 %v1501, %v1501
  %v1506 = vmul.f32 %v1502, %v1502
  %v1507 = vmul.f32 %v1503, %v1503
  %v1508 = vsel %vm1476, %v1504, 0.0
  %1509 = vadd.xlane.f32.xlu0 %v1508
  %v1510 = vpop.xlane.xlu0 %1509
  %v1511 = vsel %vm1476, %v1505, 0.0
  %1512 = vadd.xlane.f32.xlu0 %v1511
  %v1513 = vpop.xlane.xlu0 %1512
  %v1514 = vsel %vm1476, %v1506, 0.0
  %1515 = vadd.xlane.f32.xlu0 %v1514
  %v1516 = vpop.xlane.xlu0 %1515
  %v1517 = vsel %vm1476, %v1507, 0.0
  %1518 = vadd.xlane.f32.xlu0 %v1517
  %v1519 = vpop.xlane.xlu0 %1518
  %v1520 = vmul.f32 %v1510, %v1495
  %v1521 = vmul.f32 %v1513, %v1495
  %v1522 = vmul.f32 %v1516, %v1495
  %v1523 = vmul.f32 %v1519, %v1495
  %v1524 = vadd.f32 %v1520, 1e-05
  %v1525 = vadd.f32 %v1521, 1e-05
  %v1526 = vadd.f32 %v1522, 1e-05
  %v1527 = vadd.f32 %v1523, 1e-05
  %v1528 = vrsqrt.pop %v1524
  %v1529 = vmul.f32 %v1528, %v1524
  %v1530 = vmul.f32 %v1529, %v1528
  %v1531 = vmul.f32 0.5, %v1530
  %v1532 = vsub.f32 1.5, %v1531
  %v1533 = vmul.f32 %v1528, %v1532
  %vm1534 = vweird.f32 %v1524
  %vm1535 = vweird.f32 %v1528
  %vm1536 = vmor %vm1534, %vm1535
  %v1537 = vsel %vm1536, %v1528, %v1533
  %v1538 = vrsqrt.pop %v1525
  %v1539 = vmul.f32 %v1538, %v1525
  %v1540 = vmul.f32 %v1539, %v1538
  %v1541 = vmul.f32 0.5, %v1540
  %v1542 = vsub.f32 1.5, %v1541
  %v1543 = vmul.f32 %v1538, %v1542
  %vm1544 = vweird.f32 %v1525
  %vm1545 = vweird.f32 %v1538
  %vm1546 = vmor %vm1544, %vm1545
  %v1547 = vsel %vm1546, %v1538, %v1543
  %v1548 = vrsqrt.pop %v1526
  %v1549 = vmul.f32 %v1548, %v1526
  %v1550 = vmul.f32 %v1549, %v1548
  %v1551 = vmul.f32 0.5, %v1550
  %v1552 = vsub.f32 1.5, %v1551
  %v1553 = vmul.f32 %v1548, %v1552
  %vm1554 = vweird.f32 %v1526
  %vm1555 = vweird.f32 %v1548
  %vm1556 = vmor %vm1554, %vm1555
  %v1557 = vsel %vm1556, %v1548, %v1553
  %v1558 = vrsqrt.pop %v1527
  %v1559 = vmul.f32 %v1558, %v1527
  %v1560 = vmul.f32 %v1559, %v1558
  %v1561 = vmul.f32 0.5, %v1560
  %v1562 = vsub.f32 1.5, %v1561
  %v1563 = vmul.f32 %v1558, %v1562
  %vm1564 = vweird.f32 %v1527
  %vm1565 = vweird.f32 %v1558
  %vm1566 = vmor %vm1564, %vm1565
  %v1567 = vsel %vm1566, %v1558, %v1563
  %v1568 = vmul.f32 %v1500, %v1537
  %v1569 = vmul.f32 %v1501, %v1547
  %v1570 = vmul.f32 %v1502, %v1557
  %v1571 = vmul.f32 %v1503, %v1567
  %v1572 = vmul.f32 %v1568, %v1470
  %v1573 = vmul.f32 %v1569, %v1470
  %v1574 = vmul.f32 %v1570, %v1470
  %v1575 = vmul.f32 %v1571, %v1470
  %v1576 = vadd.f32 %v1572, %v1471
  %v1577 = vadd.f32 %v1573, %v1471
  %v1578 = vadd.f32 %v1574, %v1471
  %v1579 = vadd.f32 %v1575, %v1471
  %v1580 = vpack.c.bf16 %v1577, %v1576
  %v1581 = vpack.c.bf16 %v1579, %v1578
  %v1583 = vperm.slane %v1468, 0
  %v1584 = vperm.slane %v1468, 1
  %v1585 = vperm.slane %v1468, 2
  %v1605 = vunpack.c.l.b16 %v1419
  %v1606 = vunpack.c.h.b16 %v1419
  %v1607 = vunpack.c.l.b16 %v1420
  %v1608 = vunpack.c.l.b16 %v1421
  %v1609 = vunpack.c.h.b16 %v1421
  %v1610 = vunpack.c.l.b16 %v1422
  %v1611 = vunpack.c.l.b16 %v1423
  %v1612 = vunpack.c.h.b16 %v1423
  %v1613 = vunpack.c.l.b16 %v1424
  %v1614 = vunpack.c.l.b16 %v1425
  %v1615 = vunpack.c.h.b16 %v1425
  %v1616 = vunpack.c.l.b16 %v1426
  %v1617 = vunpack.c.l.b16 %v1427
  %v1618 = vunpack.c.h.b16 %v1427
  %v1619 = vunpack.c.l.b16 %v1428
  %v1620 = vunpack.c.l.b16 %v1429
  %v1621 = vunpack.c.h.b16 %v1429
  %v1622 = vunpack.c.l.b16 %v1430
  %v1623 = vunpack.c.l.b16 %v1431
  %v1624 = vunpack.c.h.b16 %v1431
  %v1625 = vunpack.c.l.b16 %v1432
  %v1626 = vunpack.c.l.b16 %v1433
  %v1627 = vunpack.c.h.b16 %v1433
  %v1628 = vunpack.c.l.b16 %v1434
  %v1629 = vpack.c.b16 %v1608, %v1605
  %v1630 = vpack.c.b16 %v1609, %v1606
  %v1631 = vpack.c.b16 %v1610, %v1607
  %v1632 = vpack.c.b16 %v1614, %v1611
  %v1633 = vpack.c.b16 %v1615, %v1612
  %v1634 = vpack.c.b16 %v1616, %v1613
  %v1635 = vpack.c.b16 %v1620, %v1617
  %v1636 = vpack.c.b16 %v1621, %v1618
  %v1637 = vpack.c.b16 %v1622, %v1619
  %v1638 = vpack.c.b16 %v1626, %v1623
  %v1639 = vpack.c.b16 %v1627, %v1624
  %v1640 = vpack.c.b16 %v1628, %v1625
  %v1654 = vsel %vm1476, %v1580, 0
  %v1657 = vsel %vm1476, %v1581, 0
  %1659 = vmatpush.bf16.msra.mxu0 0
  %1660 = vmatpush.bf16.msra.mxu0 0
  %1661 = vmatpush.bf16.msra.mxu0 0
  %1662 = vmatpush.bf16.msra.mxu0 0
  %1663 = vmatpush.bf16.msra.mxu0 %v1638
  %1664 = vmatpush.bf16.msra.mxu0 %v1635
  %1665 = vmatpush.bf16.msra.mxu0 %v1632
  %1666 = vmatpush.bf16.msra.mxu0 %v1629
  %1667 = vmatmul.bf16.gmra.mxu0 %v1654
  %v1668 = vpop.f32.mrf.mxu0
  %v1669 = vadd.f32 %v1583, %v1668
  %v1670 = vpop.f32.mrf.mxu0
  %v1671 = vadd.f32 %v1583, %v1670
  %1672 = vmatmul.bf16.gmra.mxu0 %v1657
  %v1673 = vpop.f32.mrf.mxu0
  %v1674 = vadd.f32 %v1583, %v1673
  %v1675 = vpop.f32.mrf.mxu0
  %v1676 = vadd.f32 %v1583, %v1675
  %1677 = vdwg.mxu0
  %1678 = vmatpush.bf16.msra.mxu0 0
  %1679 = vmatpush.bf16.msra.mxu0 0
  %1680 = vmatpush.bf16.msra.mxu0 0
  %1681 = vmatpush.bf16.msra.mxu0 0
  %1682 = vmatpush.bf16.msra.mxu0 %v1639
  %1683 = vmatpush.bf16.msra.mxu0 %v1636
  %1684 = vmatpush.bf16.msra.mxu0 %v1633
  %1685 = vmatpush.bf16.msra.mxu0 %v1630
  %1686 = vmatmul.bf16.gmra.mxu0 %v1654
  %v1687 = vpop.f32.mrf.mxu0
  %v1688 = vadd.f32 %v1584, %v1687
  %v1689 = vpop.f32.mrf.mxu0
  %v1690 = vadd.f32 %v1584, %v1689
  %1691 = vmatmul.bf16.gmra.mxu0 %v1657
  %v1692 = vpop.f32.mrf.mxu0
  %v1693 = vadd.f32 %v1584, %v1692
  %v1694 = vpop.f32.mrf.mxu0
  %v1695 = vadd.f32 %v1584, %v1694
  %1696 = vdwg.mxu0
  %1697 = vmatpush.bf16.msra.mxu0 0
  %1698 = vmatpush.bf16.msra.mxu0 0
  %1699 = vmatpush.bf16.msra.mxu0 0
  %1700 = vmatpush.bf16.msra.mxu0 0
  %1701 = vmatpush.bf16.msra.mxu0 %v1640
  %1702 = vmatpush.bf16.msra.mxu0 %v1637
  %1703 = vmatpush.bf16.msra.mxu0 %v1634
  %1704 = vmatpush.bf16.msra.mxu0 %v1631
  %1705 = vmatmul.bf16.gmra.mxu0 %v1654
  %v1706 = vpop.f32.mrf.mxu0
  %v1707 = vadd.f32 %v1585, %v1706
  %v1708 = vpop.f32.mrf.mxu0
  %v1709 = vadd.f32 %v1585, %v1708
  %1710 = vmatmul.bf16.gmra.mxu0 %v1657
  %v1711 = vpop.f32.mrf.mxu0
  %v1712 = vadd.f32 %v1585, %v1711
  %v1713 = vpop.f32.mrf.mxu0
  %v1714 = vadd.f32 %v1585, %v1713
  %1715 = vdwg.mxu0
  %v1716 = vpack.c.bf16 %v1688, %v1669
  %v1717 = vpack.c.bf16 %v1707, %v1707
  %v1718 = vpack.c.bf16 %v1690, %v1671
  %v1719 = vpack.c.bf16 %v1709, %v1709
  %v1720 = vpack.c.bf16 %v1693, %v1674
  %v1721 = vpack.c.bf16 %v1712, %v1712
  %v1722 = vpack.c.bf16 %v1695, %v1676
  %v1723 = vpack.c.bf16 %v1714, %v1714
  %v1728 = vrot.slane %v1716, 4
  %v1729 = vrot.slane %v1718, 4
  %v1730 = vrot.slane %v1720, 4
  %v1731 = vrot.slane %v1722, 4
  %v1732 = vunpack.c.l.b16 %v1716
  %v1733 = vunpack.c.l.b16 %v1718
  %v1734 = vpack.c.b16 %v1733, %v1732
  %v1735 = vunpack.c.l.b16 %v1728
  %v1736 = vunpack.c.l.b16 %v1729
  %v1737 = vpack.c.b16 %v1736, %v1735
  %vm1738 = vcmask 130048
  %v1740 = vsel %vm1738, %v1734, 0
  %v1743 = vsel %vm1738, %v1737, 0
  %1745 = vmatpush.bf16.xpose.msra.mxu0 0
  %1746 = vmatpush.bf16.xpose.msra.mxu0 0
  %1747 = vmatpush.bf16.xpose.msra.mxu0 0
  %1748 = vmatpush.bf16.xpose.msra.mxu0 0
  %1749 = vmatpush.bf16.xpose.msra.mxu0 0
  %1750 = vmatpush.bf16.xpose.msra.mxu0 0
  %1751 = vmatpush.bf16.xpose.msra.mxu0 0
  %1752 = vmatpush.bf16.xpose.msra.mxu0 %v1743
  %1753 = vmatmul.bf16.gmra.mxu0 %v1740
  %v1754 = vpop.f32.mrf.mxu0
  %v1755 = vadd.f32 0.0, %v1754
  %v1756 = vpop.f32.mrf.mxu0
  %v1757 = vadd.f32 0.0, %v1756
  %1758 = vdwg.mxu0
  %v1759 = vunpack.c.l.b16 %v1720
  %v1760 = vunpack.c.l.b16 %v1722
  %v1761 = vpack.c.b16 %v1760, %v1759
  %v1762 = vunpack.c.l.b16 %v1730
  %v1763 = vunpack.c.l.b16 %v1731
  %v1764 = vpack.c.b16 %v1763, %v1762
  %v1766 = vsel %vm1738, %v1761, 0
  %v1769 = vsel %vm1738, %v1764, 0
  %1771 = vmatpush.bf16.xpose.msra.mxu0 0
  %1772 = vmatpush.bf16.xpose.msra.mxu0 0
  %1773 = vmatpush.bf16.xpose.msra.mxu0 0
  %1774 = vmatpush.bf16.xpose.msra.mxu0 0
  %1775 = vmatpush.bf16.xpose.msra.mxu0 0
  %1776 = vmatpush.bf16.xpose.msra.mxu0 0
  %1777 = vmatpush.bf16.xpose.msra.mxu0 0
  %1778 = vmatpush.bf16.xpose.msra.mxu0 %v1769
  %1779 = vmatmul.bf16.gmra.mxu0 %v1766
  %v1780 = vpop.f32.mrf.mxu0
  %v1781 = vadd.f32 0.0, %v1780
  %v1782 = vpop.f32.mrf.mxu0
  %v1783 = vadd.f32 0.0, %v1782
  %1784 = vdwg.mxu0
  %v1785 = vmul.f32 %v1755, 0.25
  %v1786 = vmul.f32 %v1757, 0.25
  %v1787 = vmul.f32 %v1781, 0.25
  %v1788 = vmul.f32 %v1783, 0.25
  %v1789 = vsel %vm1738, %v1785, -inf
  %1790 = vmax.xlane.f32.xlu0 %v1789
  %v1791 = vpop.xlane.xlu0 %1790
  %v1792 = vsel %vm1738, %v1786, -inf
  %1793 = vmax.xlane.f32.xlu0 %v1792
  %v1794 = vpop.xlane.xlu0 %1793
  %v1795 = vsel %vm1738, %v1787, -inf
  %1796 = vmax.xlane.f32.xlu0 %v1795
  %v1797 = vpop.xlane.xlu0 %1796
  %v1798 = vsel %vm1738, %v1788, -inf
  %1799 = vmax.xlane.f32.xlu0 %v1798
  %v1800 = vpop.xlane.xlu0 %1799
  %v1801 = vsub.f32 %v1785, %v1791
  %v1802 = vsub.f32 %v1786, %v1794
  %v1803 = vsub.f32 %v1787, %v1797
  %v1804 = vsub.f32 %v1788, %v1800
  %v1805 = vmul.f32 %v1801, 1.442695
  %v1806 = vpow.pop %v1805
  %v1807 = vmul.f32 %v1802, 1.442695
  %v1808 = vpow.pop %v1807
  %v1809 = vmul.f32 %v1803, 1.442695
  %v1810 = vpow.pop %v1809
  %v1811 = vmul.f32 %v1804, 1.442695
  %v1812 = vpow.pop %v1811
  %v1813 = vsel %vm1738, %v1806, 0.0
  %1814 = vadd.xlane.f32.xlu0 %v1813
  %v1815 = vpop.xlane.xlu0 %1814
  %v1816 = vsel %vm1738, %v1808, 0.0
  %1817 = vadd.xlane.f32.xlu0 %v1816
  %v1818 = vpop.xlane.xlu0 %1817
  %v1819 = vsel %vm1738, %v1810, 0.0
  %1820 = vadd.xlane.f32.xlu0 %v1819
  %v1821 = vpop.xlane.xlu0 %1820
  %v1822 = vsel %vm1738, %v1812, 0.0
  %1823 = vadd.xlane.f32.xlu0 %v1822
  %v1824 = vpop.xlane.xlu0 %1823
  %v1825 = vrcp.pop %v1815
  %v1826 = vrcp.pop %v1818
  %v1827 = vrcp.pop %v1821
  %v1828 = vrcp.pop %v1824
  %v1829 = vmul.f32 %v1806, %v1825
  %v1830 = vmul.f32 %v1808, %v1826
  %v1831 = vmul.f32 %v1810, %v1827
  %v1832 = vmul.f32 %v1812, %v1828
  %v1833 = vpack.c.bf16 %v1829, %v1829
  %v1834 = vpack.c.bf16 %v1830, %v1830
  %v1835 = vpack.c.bf16 %v1831, %v1831
  %v1836 = vpack.c.bf16 %v1832, %v1832
  %v1839 = vunpack.c.l.b16 %v1833
  %v1840 = vunpack.c.l.b16 %v1834
  %v1841 = vpack.c.b16 %v1840, %v1839
  %v1844 = vunpack.c.l.b16 %v1717
  %v1845 = vunpack.c.l.b16 %v1719
  %v1846 = vpack.c.b16 %v1845, %v1844
  %v1849 = vsel %vm1738, %v1841, 0
  %1851 = vmatpush.bf16.msra.mxu0 0
  %1852 = vmatpush.bf16.msra.mxu0 0
  %1853 = vmatpush.bf16.msra.mxu0 0
  %1854 = vmatpush.bf16.msra.mxu0 0
  %1855 = vmatpush.bf16.msra.mxu0 0
  %1856 = vmatpush.bf16.msra.mxu0 0
  %1857 = vmatpush.bf16.msra.mxu0 0
  %1858 = vmatpush.bf16.msra.mxu0 %v1846
  %1859 = vmatmul.bf16.gmra.mxu0 %v1849
  %v1860 = vpop.f32.mrf.mxu0
  %v1861 = vadd.f32 0.0, %v1860
  %v1862 = vpop.f32.mrf.mxu0
  %v1863 = vadd.f32 0.0, %v1862
  %1864 = vdwg.mxu0
  %v1867 = vunpack.c.l.b16 %v1835
  %v1868 = vunpack.c.l.b16 %v1836
  %v1869 = vpack.c.b16 %v1868, %v1867
  %v1872 = vunpack.c.l.b16 %v1721
  %v1873 = vunpack.c.l.b16 %v1723
  %v1874 = vpack.c.b16 %v1873, %v1872
  %v1877 = vsel %vm1738, %v1869, 0
  %1879 = vmatpush.bf16.msra.mxu0 0
  %1880 = vmatpush.bf16.msra.mxu0 0
  %1881 = vmatpush.bf16.msra.mxu0 0
  %1882 = vmatpush.bf16.msra.mxu0 0
  %1883 = vmatpush.bf16.msra.mxu0 0
  %1884 = vmatpush.bf16.msra.mxu0 0
  %1885 = vmatpush.bf16.msra.mxu0 0
  %1886 = vmatpush.bf16.msra.mxu0 %v1874
  %1887 = vmatmul.bf16.gmra.mxu0 %v1877
  %v1888 = vpop.f32.mrf.mxu0
  %v1889 = vadd.f32 0.0, %v1888
  %v1890 = vpop.f32.mrf.mxu0
  %v1891 = vadd.f32 0.0, %v1890
  %1892 = vdwg.mxu0
  %1893 = vrot.lane.b32.xlu0 %v1716, 112
  %v1894 = vpop.permute.xlu0 %1893
  %1895 = vrot.lane.b32.xlu0 %v1718, 112
  %v1896 = vpop.permute.xlu0 %1895
  %1897 = vrot.lane.b32.xlu0 %v1720, 112
  %v1898 = vpop.permute.xlu0 %1897
  %1899 = vrot.lane.b32.xlu0 %v1722, 112
  %v1900 = vpop.permute.xlu0 %1899
  %v1901 = vrot.slane %v1894, 4
  %v1902 = vrot.slane %v1896, 4
  %v1903 = vrot.slane %v1898, 4
  %v1904 = vrot.slane %v1900, 4
  %1905 = vrot.lane.b32.xlu0 %v1734, 112
  %v1906 = vpop.permute.xlu0 %1905
  %v1907 = vunpack.c.l.b16 %v1901
  %v1908 = vunpack.c.l.b16 %v1902
  %v1909 = vpack.c.b16 %v1908, %v1907
  %v1911 = vsel %vm1738, %v1906, 0
  %v1914 = vsel %vm1738, %v1909, 0
  %1916 = vmatpush.bf16.xpose.msra.mxu0 0
  %1917 = vmatpush.bf16.xpose.msra.mxu0 0
  %1918 = vmatpush.bf16.xpose.msra.mxu0 0
  %1919 = vmatpush.bf16.xpose.msra.mxu0 0
  %1920 = vmatpush.bf16.xpose.msra.mxu0 0
  %1921 = vmatpush.bf16.xpose.msra.mxu0 0
  %1922 = vmatpush.bf16.xpose.msra.mxu0 0
  %1923 = vmatpush.bf16.xpose.msra.mxu0 %v1914
  %1924 = vmatmul.bf16.gmra.mxu0 %v1911
  %v1925 = vpop.f32.mrf.mxu0
  %v1926 = vadd.f32 0.0, %v1925
  %v1927 = vpop.f32.mrf.mxu0
  %v1928 = vadd.f32 0.0, %v1927
  %1929 = vdwg.mxu0
  %1930 = vrot.lane.b32.xlu0 %v1761, 112
  %v1931 = vpop.permute.xlu0 %1930
  %v1932 = vunpack.c.l.b16 %v1903
  %v1933 = vunpack.c.l.b16 %v1904
  %v1934 = vpack.c.b16 %v1933, %v1932
  %v1936 = vsel %vm1738, %v1931, 0
  %v1939 = vsel %vm1738, %v1934, 0
  %1941 = vmatpush.bf16.xpose.msra.mxu0 0
  %1942 = vmatpush.bf16.xpose.msra.mxu0 0
  %1943 = vmatpush.bf16.xpose.msra.mxu0 0
  %1944 = vmatpush.bf16.xpose.msra.mxu0 0
  %1945 = vmatpush.bf16.xpose.msra.mxu0 0
  %1946 = vmatpush.bf16.xpose.msra.mxu0 0
  %1947 = vmatpush.bf16.xpose.msra.mxu0 0
  %1948 = vmatpush.bf16.xpose.msra.mxu0 %v1939
  %1949 = vmatmul.bf16.gmra.mxu0 %v1936
  %v1950 = vpop.f32.mrf.mxu0
  %v1951 = vadd.f32 0.0, %v1950
  %v1952 = vpop.f32.mrf.mxu0
  %v1953 = vadd.f32 0.0, %v1952
  %1954 = vdwg.mxu0
  %v1955 = vmul.f32 %v1926, 0.25
  %v1956 = vmul.f32 %v1928, 0.25
  %v1957 = vmul.f32 %v1951, 0.25
  %v1958 = vmul.f32 %v1953, 0.25
  %v1959 = vsel %vm1738, %v1955, -inf
  %1960 = vmax.xlane.f32.xlu0 %v1959
  %v1961 = vpop.xlane.xlu0 %1960
  %v1962 = vsel %vm1738, %v1956, -inf
  %1963 = vmax.xlane.f32.xlu0 %v1962
  %v1964 = vpop.xlane.xlu0 %1963
  %v1965 = vsel %vm1738, %v1957, -inf
  %1966 = vmax.xlane.f32.xlu0 %v1965
  %v1967 = vpop.xlane.xlu0 %1966
  %v1968 = vsel %vm1738, %v1958, -inf
  %1969 = vmax.xlane.f32.xlu0 %v1968
  %v1970 = vpop.xlane.xlu0 %1969
  %v1971 = vsub.f32 %v1955, %v1961
  %v1972 = vsub.f32 %v1956, %v1964
  %v1973 = vsub.f32 %v1957, %v1967
  %v1974 = vsub.f32 %v1958, %v1970
  %v1975 = vmul.f32 %v1971, 1.442695
  %v1976 = vpow.pop %v1975
  %v1977 = vmul.f32 %v1972, 1.442695
  %v1978 = vpow.pop %v1977
  %v1979 = vmul.f32 %v1973, 1.442695
  %v1980 = vpow.pop %v1979
  %v1981 = vmul.f32 %v1974, 1.442695
  %v1982 = vpow.pop %v1981
  %v1983 = vsel %vm1738, %v1976, 0.0
  %1984 = vadd.xlane.f32.xlu0 %v1983
  %v1985 = vpop.xlane.xlu0 %1984
  %v1986 = vsel %vm1738, %v1978, 0.0
  %1987 = vadd.xlane.f32.xlu0 %v1986
  %v1988 = vpop.xlane.xlu0 %1987
  %v1989 = vsel %vm1738, %v1980, 0.0
  %1990 = vadd.xlane.f32.xlu0 %v1989
  %v1991 = vpop.xlane.xlu0 %1990
  %v1992 = vsel %vm1738, %v1982, 0.0
  %1993 = vadd.xlane.f32.xlu0 %v1992
  %v1994 = vpop.xlane.xlu0 %1993
  %v1995 = vrcp.pop %v1985
  %v1996 = vrcp.pop %v1988
  %v1997 = vrcp.pop %v1991
  %v1998 = vrcp.pop %v1994
  %v1999 = vmul.f32 %v1976, %v1995
  %v2000 = vmul.f32 %v1978, %v1996
  %v2001 = vmul.f32 %v1980, %v1997
  %v2002 = vmul.f32 %v1982, %v1998
  %v2003 = vpack.c.bf16 %v1999, %v1999
  %v2004 = vpack.c.bf16 %v2000, %v2000
  %v2005 = vpack.c.bf16 %v2001, %v2001
  %v2006 = vpack.c.bf16 %v2002, %v2002
  %v2009 = vunpack.c.l.b16 %v2003
  %v2010 = vunpack.c.l.b16 %v2004
  %v2011 = vpack.c.b16 %v2010, %v2009
  %2012 = vrot.lane.b32.xlu0 %v1846, 112
  %v2013 = vpop.permute.xlu0 %2012
  %v2016 = vsel %vm1738, %v2011, 0
  %2018 = vmatpush.bf16.msra.mxu0 0
  %2019 = vmatpush.bf16.msra.mxu0 0
  %2020 = vmatpush.bf16.msra.mxu0 0
  %2021 = vmatpush.bf16.msra.mxu0 0
  %2022 = vmatpush.bf16.msra.mxu0 0
  %2023 = vmatpush.bf16.msra.mxu0 0
  %2024 = vmatpush.bf16.msra.mxu0 0
  %2025 = vmatpush.bf16.msra.mxu0 %v2013
  %2026 = vmatmul.bf16.gmra.mxu0 %v2016
  %v2027 = vpop.f32.mrf.mxu0
  %v2028 = vadd.f32 0.0, %v2027
  %v2029 = vpop.f32.mrf.mxu0
  %v2030 = vadd.f32 0.0, %v2029
  %2031 = vdwg.mxu0
  %v2034 = vunpack.c.l.b16 %v2005
  %v2035 = vunpack.c.l.b16 %v2006
  %v2036 = vpack.c.b16 %v2035, %v2034
  %2037 = vrot.lane.b32.xlu0 %v1874, 112
  %v2038 = vpop.permute.xlu0 %2037
  %v2041 = vsel %vm1738, %v2036, 0
  %2043 = vmatpush.bf16.msra.mxu0 0
  %2044 = vmatpush.bf16.msra.mxu0 0
  %2045 = vmatpush.bf16.msra.mxu0 0
  %2046 = vmatpush.bf16.msra.mxu0 0
  %2047 = vmatpush.bf16.msra.mxu0 0
  %2048 = vmatpush.bf16.msra.mxu0 0
  %2049 = vmatpush.bf16.msra.mxu0 0
  %2050 = vmatpush.bf16.msra.mxu0 %v2038
  %2051 = vmatmul.bf16.gmra.mxu0 %v2041
  %v2052 = vpop.f32.mrf.mxu0
  %v2053 = vadd.f32 0.0, %v2052
  %v2054 = vpop.f32.mrf.mxu0
  %v2055 = vadd.f32 0.0, %v2054
  %2056 = vdwg.mxu0
  %2057 = vrot.lane.b32.xlu0 %v1716, 96
  %v2058 = vpop.permute.xlu0 %2057
  %2059 = vrot.lane.b32.xlu0 %v1718, 96
  %v2060 = vpop.permute.xlu0 %2059
  %2061 = vrot.lane.b32.xlu0 %v1720, 96
  %v2062 = vpop.permute.xlu0 %2061
  %2063 = vrot.lane.b32.xlu0 %v1722, 96
  %v2064 = vpop.permute.xlu0 %2063
  %v2065 = vrot.slane %v2058, 4
  %v2066 = vrot.slane %v2060, 4
  %v2067 = vrot.slane %v2062, 4
  %v2068 = vrot.slane %v2064, 4
  %2069 = vrot.lane.b32.xlu0 %v1734, 96
  %v2070 = vpop.permute.xlu0 %2069
  %v2071 = vunpack.c.l.b16 %v2065
  %v2072 = vunpack.c.l.b16 %v2066
  %v2073 = vpack.c.b16 %v2072, %v2071
  %v2075 = vsel %vm1738, %v2070, 0
  %v2078 = vsel %vm1738, %v2073, 0
  %2080 = vmatpush.bf16.xpose.msra.mxu0 0
  %2081 = vmatpush.bf16.xpose.msra.mxu0 0
  %2082 = vmatpush.bf16.xpose.msra.mxu0 0
  %2083 = vmatpush.bf16.xpose.msra.mxu0 0
  %2084 = vmatpush.bf16.xpose.msra.mxu0 0
  %2085 = vmatpush.bf16.xpose.msra.mxu0 0
  %2086 = vmatpush.bf16.xpose.msra.mxu0 0
  %2087 = vmatpush.bf16.xpose.msra.mxu0 %v2078
  %2088 = vmatmul.bf16.gmra.mxu0 %v2075
  %v2089 = vpop.f32.mrf.mxu0
  %v2090 = vadd.f32 0.0, %v2089
  %v2091 = vpop.f32.mrf.mxu0
  %v2092 = vadd.f32 0.0, %v2091
  %2093 = vdwg.mxu0
  %2094 = vrot.lane.b32.xlu0 %v1761, 96
  %v2095 = vpop.permute.xlu0 %2094
  %v2096 = vunpack.c.l.b16 %v2067
  %v2097 = vunpack.c.l.b16 %v2068
  %v2098 = vpack.c.b16 %v2097, %v2096
  %v2100 = vsel %vm1738, %v2095, 0
  %v2103 = vsel %vm1738, %v2098, 0
  %2105 = vmatpush.bf16.xpose.msra.mxu0 0
  %2106 = vmatpush.bf16.xpose.msra.mxu0 0
  %2107 = vmatpush.bf16.xpose.msra.mxu0 0
  %2108 = vmatpush.bf16.xpose.msra.mxu0 0
  %2109 = vmatpush.bf16.xpose.msra.mxu0 0
  %2110 = vmatpush.bf16.xpose.msra.mxu0 0
  %2111 = vmatpush.bf16.xpose.msra.mxu0 0
  %2112 = vmatpush.bf16.xpose.msra.mxu0 %v2103
  %2113 = vmatmul.bf16.gmra.mxu0 %v2100
  %v2114 = vpop.f32.mrf.mxu0
  %v2115 = vadd.f32 0.0, %v2114
  %v2116 = vpop.f32.mrf.mxu0
  %v2117 = vadd.f32 0.0, %v2116
  %2118 = vdwg.mxu0
  %v2119 = vmul.f32 %v2090, 0.25
  %v2120 = vmul.f32 %v2092, 0.25
  %v2121 = vmul.f32 %v2115, 0.25
  %v2122 = vmul.f32 %v2117, 0.25
  %v2123 = vsel %vm1738, %v2119, -inf
  %2124 = vmax.xlane.f32.xlu0 %v2123
  %v2125 = vpop.xlane.xlu0 %2124
  %v2126 = vsel %vm1738, %v2120, -inf
  %2127 = vmax.xlane.f32.xlu0 %v2126
  %v2128 = vpop.xlane.xlu0 %2127
  %v2129 = vsel %vm1738, %v2121, -inf
  %2130 = vmax.xlane.f32.xlu0 %v2129
  %v2131 = vpop.xlane.xlu0 %2130
  %v2132 = vsel %vm1738, %v2122, -inf
  %2133 = vmax.xlane.f32.xlu0 %v2132
  %v2134 = vpop.xlane.xlu0 %2133
  %v2135 = vsub.f32 %v2119, %v2125
  %v2136 = vsub.f32 %v2120, %v2128
  %v2137 = vsub.f32 %v2121, %v2131
  %v2138 = vsub.f32 %v2122, %v2134
  %v2139 = vmul.f32 %v2135, 1.442695
  %v2140 = vpow.pop %v2139
  %v2141 = vmul.f32 %v2136, 1.442695
  %v2142 = vpow.pop %v2141
  %v2143 = vmul.f32 %v2137, 1.442695
  %v2144 = vpow.pop %v2143
  %v2145 = vmul.f32 %v2138, 1.442695
  %v2146 = vpow.pop %v2145
  %v2147 = vsel %vm1738, %v2140, 0.0
  %2148 = vadd.xlane.f32.xlu0 %v2147
  %v2149 = vpop.xlane.xlu0 %2148
  %v2150 = vsel %vm1738, %v2142, 0.0
  %2151 = vadd.xlane.f32.xlu0 %v2150
  %v2152 = vpop.xlane.xlu0 %2151
  %v2153 = vsel %vm1738, %v2144, 0.0
  %2154 = vadd.xlane.f32.xlu0 %v2153
  %v2155 = vpop.xlane.xlu0 %2154
  %v2156 = vsel %vm1738, %v2146, 0.0
  %2157 = vadd.xlane.f32.xlu0 %v2156
  %v2158 = vpop.xlane.xlu0 %2157
  %v2159 = vrcp.pop %v2149
  %v2160 = vrcp.pop %v2152
  %v2161 = vrcp.pop %v2155
  %v2162 = vrcp.pop %v2158
  %v2163 = vmul.f32 %v2140, %v2159
  %v2164 = vmul.f32 %v2142, %v2160
  %v2165 = vmul.f32 %v2144, %v2161
  %v2166 = vmul.f32 %v2146, %v2162
  %v2167 = vpack.c.bf16 %v2163, %v2163
  %v2168 = vpack.c.bf16 %v2164, %v2164
  %v2169 = vpack.c.bf16 %v2165, %v2165
  %v2170 = vpack.c.bf16 %v2166, %v2166
  %v2173 = vunpack.c.l.b16 %v2167
  %v2174 = vunpack.c.l.b16 %v2168
  %v2175 = vpack.c.b16 %v2174, %v2173
  %2176 = vrot.lane.b32.xlu0 %v1846, 96
  %v2177 = vpop.permute.xlu0 %2176
  %v2180 = vsel %vm1738, %v2175, 0
  %2182 = vmatpush.bf16.msra.mxu0 0
  %2183 = vmatpush.bf16.msra.mxu0 0
  %2184 = vmatpush.bf16.msra.mxu0 0
  %2185 = vmatpush.bf16.msra.mxu0 0
  %2186 = vmatpush.bf16.msra.mxu0 0
  %2187 = vmatpush.bf16.msra.mxu0 0
  %2188 = vmatpush.bf16.msra.mxu0 0
  %2189 = vmatpush.bf16.msra.mxu0 %v2177
  %2190 = vmatmul.bf16.gmra.mxu0 %v2180
  %v2191 = vpop.f32.mrf.mxu0
  %v2192 = vadd.f32 0.0, %v2191
  %v2193 = vpop.f32.mrf.mxu0
  %v2194 = vadd.f32 0.0, %v2193
  %2195 = vdwg.mxu0
  %v2198 = vunpack.c.l.b16 %v2169
  %v2199 = vunpack.c.l.b16 %v2170
  %v2200 = vpack.c.b16 %v2199, %v2198
  %2201 = vrot.lane.b32.xlu0 %v1874, 96
  %v2202 = vpop.permute.xlu0 %2201
  %v2205 = vsel %vm1738, %v2200, 0
  %2207 = vmatpush.bf16.msra.mxu0 0
  %2208 = vmatpush.bf16.msra.mxu0 0
  %2209 = vmatpush.bf16.msra.mxu0 0
  %2210 = vmatpush.bf16.msra.mxu0 0
  %2211 = vmatpush.bf16.msra.mxu0 0
  %2212 = vmatpush.bf16.msra.mxu0 0
  %2213 = vmatpush.bf16.msra.mxu0 0
  %2214 = vmatpush.bf16.msra.mxu0 %v2202
  %2215 = vmatmul.bf16.gmra.mxu0 %v2205
  %v2216 = vpop.f32.mrf.mxu0
  %v2217 = vadd.f32 0.0, %v2216
  %v2218 = vpop.f32.mrf.mxu0
  %v2219 = vadd.f32 0.0, %v2218
  %2220 = vdwg.mxu0
  %2221 = vrot.lane.b32.xlu0 %v1716, 80
  %v2222 = vpop.permute.xlu0 %2221
  %2223 = vrot.lane.b32.xlu0 %v1718, 80
  %v2224 = vpop.permute.xlu0 %2223
  %2225 = vrot.lane.b32.xlu0 %v1720, 80
  %v2226 = vpop.permute.xlu0 %2225
  %2227 = vrot.lane.b32.xlu0 %v1722, 80
  %v2228 = vpop.permute.xlu0 %2227
  %v2229 = vrot.slane %v2222, 4
  %v2230 = vrot.slane %v2224, 4
  %v2231 = vrot.slane %v2226, 4
  %v2232 = vrot.slane %v2228, 4
  %2233 = vrot.lane.b32.xlu0 %v1734, 80
  %v2234 = vpop.permute.xlu0 %2233
  %v2235 = vunpack.c.l.b16 %v2229
  %v2236 = vunpack.c.l.b16 %v2230
  %v2237 = vpack.c.b16 %v2236, %v2235
  %v2239 = vsel %vm1738, %v2234, 0
  %v2242 = vsel %vm1738, %v2237, 0
  %2244 = vmatpush.bf16.xpose.msra.mxu0 0
  %2245 = vmatpush.bf16.xpose.msra.mxu0 0
  %2246 = vmatpush.bf16.xpose.msra.mxu0 0
  %2247 = vmatpush.bf16.xpose.msra.mxu0 0
  %2248 = vmatpush.bf16.xpose.msra.mxu0 0
  %2249 = vmatpush.bf16.xpose.msra.mxu0 0
  %2250 = vmatpush.bf16.xpose.msra.mxu0 0
  %2251 = vmatpush.bf16.xpose.msra.mxu0 %v2242
  %2252 = vmatmul.bf16.gmra.mxu0 %v2239
  %v2253 = vpop.f32.mrf.mxu0
  %v2254 = vadd.f32 0.0, %v2253
  %v2255 = vpop.f32.mrf.mxu0
  %v2256 = vadd.f32 0.0, %v2255
  %2257 = vdwg.mxu0
  %2258 = vrot.lane.b32.xlu0 %v1761, 80
  %v2259 = vpop.permute.xlu0 %2258
  %v2260 = vunpack.c.l.b16 %v2231
  %v2261 = vunpack.c.l.b16 %v2232
  %v2262 = vpack.c.b16 %v2261, %v2260
  %v2264 = vsel %vm1738, %v2259, 0
  %v2267 = vsel %vm1738, %v2262, 0
  %2269 = vmatpush.bf16.xpose.msra.mxu0 0
  %2270 = vmatpush.bf16.xpose.msra.mxu0 0
  %2271 = vmatpush.bf16.xpose.msra.mxu0 0
  %2272 = vmatpush.bf16.xpose.msra.mxu0 0
  %2273 = vmatpush.bf16.xpose.msra.mxu0 0
  %2274 = vmatpush.bf16.xpose.msra.mxu0 0
  %2275 = vmatpush.bf16.xpose.msra.mxu0 0
  %2276 = vmatpush.bf16.xpose.msra.mxu0 %v2267
  %2277 = vmatmul.bf16.gmra.mxu0 %v2264
  %v2278 = vpop.f32.mrf.mxu0
  %v2279 = vadd.f32 0.0, %v2278
  %v2280 = vpop.f32.mrf.mxu0
  %v2281 = vadd.f32 0.0, %v2280
  %2282 = vdwg.mxu0
  %v2283 = vmul.f32 %v2254, 0.25
  %v2284 = vmul.f32 %v2256, 0.25
  %v2285 = vmul.f32 %v2279, 0.25
  %v2286 = vmul.f32 %v2281, 0.25
  %v2287 = vsel %vm1738, %v2283, -inf
  %2288 = vmax.xlane.f32.xlu0 %v2287
  %v2289 = vpop.xlane.xlu0 %2288
  %v2290 = vsel %vm1738, %v2284, -inf
  %2291 = vmax.xlane.f32.xlu0 %v2290
  %v2292 = vpop.xlane.xlu0 %2291
  %v2293 = vsel %vm1738, %v2285, -inf
  %2294 = vmax.xlane.f32.xlu0 %v2293
  %v2295 = vpop.xlane.xlu0 %2294
  %v2296 = vsel %vm1738, %v2286, -inf
  %2297 = vmax.xlane.f32.xlu0 %v2296
  %v2298 = vpop.xlane.xlu0 %2297
  %v2299 = vsub.f32 %v2283, %v2289
  %v2300 = vsub.f32 %v2284, %v2292
  %v2301 = vsub.f32 %v2285, %v2295
  %v2302 = vsub.f32 %v2286, %v2298
  %v2303 = vmul.f32 %v2299, 1.442695
  %v2304 = vpow.pop %v2303
  %v2305 = vmul.f32 %v2300, 1.442695
  %v2306 = vpow.pop %v2305
  %v2307 = vmul.f32 %v2301, 1.442695
  %v2308 = vpow.pop %v2307
  %v2309 = vmul.f32 %v2302, 1.442695
  %v2310 = vpow.pop %v2309
  %v2311 = vsel %vm1738, %v2304, 0.0
  %2312 = vadd.xlane.f32.xlu0 %v2311
  %v2313 = vpop.xlane.xlu0 %2312
  %v2314 = vsel %vm1738, %v2306, 0.0
  %2315 = vadd.xlane.f32.xlu0 %v2314
  %v2316 = vpop.xlane.xlu0 %2315
  %v2317 = vsel %vm1738, %v2308, 0.0
  %2318 = vadd.xlane.f32.xlu0 %v2317
  %v2319 = vpop.xlane.xlu0 %2318
  %v2320 = vsel %vm1738, %v2310, 0.0
  %2321 = vadd.xlane.f32.xlu0 %v2320
  %v2322 = vpop.xlane.xlu0 %2321
  %v2323 = vrcp.pop %v2313
  %v2324 = vrcp.pop %v2316
  %v2325 = vrcp.pop %v2319
  %v2326 = vrcp.pop %v2322
  %v2327 = vmul.f32 %v2304, %v2323
  %v2328 = vmul.f32 %v2306, %v2324
  %v2329 = vmul.f32 %v2308, %v2325
  %v2330 = vmul.f32 %v2310, %v2326
  %v2331 = vpack.c.bf16 %v2327, %v2327
  %v2332 = vpack.c.bf16 %v2328, %v2328
  %v2333 = vpack.c.bf16 %v2329, %v2329
  %v2334 = vpack.c.bf16 %v2330, %v2330
  %v2337 = vunpack.c.l.b16 %v2331
  %v2338 = vunpack.c.l.b16 %v2332
  %v2339 = vpack.c.b16 %v2338, %v2337
  %2340 = vrot.lane.b32.xlu0 %v1846, 80
  %v2341 = vpop.permute.xlu0 %2340
  %v2344 = vsel %vm1738, %v2339, 0
  %2346 = vmatpush.bf16.msra.mxu0 0
  %2347 = vmatpush.bf16.msra.mxu0 0
  %2348 = vmatpush.bf16.msra.mxu0 0
  %2349 = vmatpush.bf16.msra.mxu0 0
  %2350 = vmatpush.bf16.msra.mxu0 0
  %2351 = vmatpush.bf16.msra.mxu0 0
  %2352 = vmatpush.bf16.msra.mxu0 0
  %2353 = vmatpush.bf16.msra.mxu0 %v2341
  %2354 = vmatmul.bf16.gmra.mxu0 %v2344
  %v2355 = vpop.f32.mrf.mxu0
  %v2356 = vadd.f32 0.0, %v2355
  %v2357 = vpop.f32.mrf.mxu0
  %v2358 = vadd.f32 0.0, %v2357
  %2359 = vdwg.mxu0
  %v2362 = vunpack.c.l.b16 %v2333
  %v2363 = vunpack.c.l.b16 %v2334
  %v2364 = vpack.c.b16 %v2363, %v2362
  %2365 = vrot.lane.b32.xlu0 %v1874, 80
  %v2366 = vpop.permute.xlu0 %2365
  %v2369 = vsel %vm1738, %v2364, 0
  %2371 = vmatpush.bf16.msra.mxu0 0
  %2372 = vmatpush.bf16.msra.mxu0 0
  %2373 = vmatpush.bf16.msra.mxu0 0
  %2374 = vmatpush.bf16.msra.mxu0 0
  %2375 = vmatpush.bf16.msra.mxu0 0
  %2376 = vmatpush.bf16.msra.mxu0 0
  %2377 = vmatpush.bf16.msra.mxu0 0
  %2378 = vmatpush.bf16.msra.mxu0 %v2366
  %2379 = vmatmul.bf16.gmra.mxu0 %v2369
  %v2380 = vpop.f32.mrf.mxu0
  %v2381 = vadd.f32 0.0, %v2380
  %v2382 = vpop.f32.mrf.mxu0
  %v2383 = vadd.f32 0.0, %v2382
  %2384 = vdwg.mxu0
  %2389 = vrot.lane.b32.xlu0 %v2028, 16
  %v2390 = vpop.permute.xlu0 %2389
  %2391 = vrot.lane.b32.xlu0 %v2030, 16
  %v2392 = vpop.permute.xlu0 %2391
  %2393 = vrot.lane.b32.xlu0 %v2053, 16
  %v2394 = vpop.permute.xlu0 %2393
  %2395 = vrot.lane.b32.xlu0 %v2055, 16
  %v2396 = vpop.permute.xlu0 %2395
  %2405 = vrot.lane.b32.xlu0 %v2192, 32
  %v2406 = vpop.permute.xlu0 %2405
  %2407 = vrot.lane.b32.xlu0 %v2194, 32
  %v2408 = vpop.permute.xlu0 %2407
  %2409 = vrot.lane.b32.xlu0 %v2217, 32
  %v2410 = vpop.permute.xlu0 %2409
  %2411 = vrot.lane.b32.xlu0 %v2219, 32
  %v2412 = vpop.permute.xlu0 %2411
  %2421 = vrot.lane.b32.xlu0 %v2356, 48
  %v2422 = vpop.permute.xlu0 %2421
  %2423 = vrot.lane.b32.xlu0 %v2358, 48
  %v2424 = vpop.permute.xlu0 %2423
  %2425 = vrot.lane.b32.xlu0 %v2381, 48
  %v2426 = vpop.permute.xlu0 %2425
  %2427 = vrot.lane.b32.xlu0 %v2383, 48
  %v2428 = vpop.permute.xlu0 %2427
  %v2433 = vsel %vm1738, %v1861, %v2390
  %v2434 = vsel %vm1738, %v1863, %v2392
  %v2435 = vsel %vm1738, %v1889, %v2394
  %v2436 = vsel %vm1738, %v1891, %v2396
  %v2437 = vsel %vm642, %v2433, %v2406
  %v2438 = vsel %vm642, %v2434, %v2408
  %v2439 = vsel %vm642, %v2435, %v2410
  %v2440 = vsel %vm642, %v2436, %v2412
  %v2441 = vsel %vm1029, %v2437, %v2422
  %v2442 = vsel %vm1029, %v2438, %v2424
  %v2443 = vsel %vm1029, %v2439, %v2426
  %v2444 = vsel %vm1029, %v2440, %v2428
  %v2445 = vpack.c.bf16 %v2442, %v2441
  %v2446 = vpack.c.bf16 %v2444, %v2443
  %v2455 = vunpack.c.l.b16 %v1435
  %v2456 = vunpack.c.l.b16 %v1436
  %v2457 = vunpack.c.l.b16 %v1437
  %v2458 = vunpack.c.l.b16 %v1438
  %v2459 = vunpack.c.l.b16 %v1439
  %v2460 = vunpack.c.l.b16 %v1440
  %v2461 = vunpack.c.l.b16 %v1441
  %v2462 = vunpack.c.l.b16 %v1442
  %v2463 = vpack.c.b16 %v2456, %v2455
  %v2464 = vpack.c.b16 %v2458, %v2457
  %v2465 = vpack.c.b16 %v2460, %v2459
  %v2466 = vpack.c.b16 %v2462, %v2461
  %v2472 = vsel %vm1476, %v2445, 0
  %v2475 = vsel %vm1476, %v2446, 0
  %2477 = vmatpush.bf16.msra.mxu0 0
  %2478 = vmatpush.bf16.msra.mxu0 0
  %2479 = vmatpush.bf16.msra.mxu0 0
  %2480 = vmatpush.bf16.msra.mxu0 0
  %2481 = vmatpush.bf16.msra.mxu0 %v2466
  %2482 = vmatpush.bf16.msra.mxu0 %v2465
  %2483 = vmatpush.bf16.msra.mxu0 %v2464
  %2484 = vmatpush.bf16.msra.mxu0 %v2463
  %2485 = vmatmul.bf16.gmra.mxu0 %v2472
  %v2486 = vpop.f32.mrf.mxu0
  %v2487 = vadd.f32 %v1469, %v2486
  %v2488 = vpop.f32.mrf.mxu0
  %v2489 = vadd.f32 %v1469, %v2488
  %2490 = vmatmul.bf16.gmra.mxu0 %v2475
  %v2491 = vpop.f32.mrf.mxu0
  %v2492 = vadd.f32 %v1469, %v2491
  %v2493 = vpop.f32.mrf.mxu0
  %v2494 = vadd.f32 %v1469, %v2493
  %2495 = vdwg.mxu0
  %v2496 = vadd.f32 %v1415, %v2487
  %v2497 = vadd.f32 %v1416, %v2489
  %v2498 = vadd.f32 %v1417, %v2492
  %v2499 = vadd.f32 %v1418, %v2494
  %v2500 = vsel %vm1476, %v2496, 0.0
  %2501 = vadd.xlane.f32.xlu0 %v2500
  %v2502 = vpop.xlane.xlu0 %2501
  %v2503 = vsel %vm1476, %v2497, 0.0
  %2504 = vadd.xlane.f32.xlu0 %v2503
  %v2505 = vpop.xlane.xlu0 %2504
  %v2506 = vsel %vm1476, %v2498, 0.0
  %2507 = vadd.xlane.f32.xlu0 %v2506
  %v2508 = vpop.xlane.xlu0 %2507
  %v2509 = vsel %vm1476, %v2499, 0.0
  %2510 = vadd.xlane.f32.xlu0 %v2509
  %v2511 = vpop.xlane.xlu0 %2510
  %v2512 = vmul.f32 %v2502, %v1495
  %v2513 = vmul.f32 %v2505, %v1495
  %v2514 = vmul.f32 %v2508, %v1495
  %v2515 = vmul.f32 %v2511, %v1495
  %v2516 = vsub.f32 %v2496, %v2512
  %v2517 = vsub.f32 %v2497, %v2513
  %v2518 = vsub.f32 %v2498, %v2514
  %v2519 = vsub.f32 %v2499, %v2515
  %v2520 = vmul.f32 %v2516, %v2516
  %v2521 = vmul.f32 %v2517, %v2517
  %v2522 = vmul.f32 %v2518, %v2518
  %v2523 = vmul.f32 %v2519, %v2519
  %v2524 = vsel %vm1476, %v2520, 0.0
  %2525 = vadd.xlane.f32.xlu0 %v2524
  %v2526 = vpop.xlane.xlu0 %2525
  %v2527 = vsel %vm1476, %v2521, 0.0
  %2528 = vadd.xlane.f32.xlu0 %v2527
  %v2529 = vpop.xlane.xlu0 %2528
  %v2530 = vsel %vm1476, %v2522, 0.0
  %2531 = vadd.xlane.f32.xlu0 %v2530
  %v2532 = vpop.xlane.xlu0 %2531
  %v2533 = vsel %vm1476, %v2523, 0.0
  %2534 = vadd.xlane.f32.xlu0 %v2533
  %v2535 = vpop.xlane.xlu0 %2534
  %v2536 = vmul.f32 %v2526, %v1495
  %v2537 = vmul.f32 %v2529, %v1495
  %v2538 = vmul.f32 %v2532, %v1495
  %v2539 = vmul.f32 %v2535, %v1495
  %v2540 = vadd.f32 %v2536, 1e-05
  %v2541 = vadd.f32 %v2537, 1e-05
  %v2542 = vadd.f32 %v2538, 1e-05
  %v2543 = vadd.f32 %v2539, 1e-05
  %v2544 = vrsqrt.pop %v2540
  %v2545 = vmul.f32 %v2544, %v2540
  %v2546 = vmul.f32 %v2545, %v2544
  %v2547 = vmul.f32 0.5, %v2546
  %v2548 = vsub.f32 1.5, %v2547
  %v2549 = vmul.f32 %v2544, %v2548
  %vm2550 = vweird.f32 %v2540
  %vm2551 = vweird.f32 %v2544
  %vm2552 = vmor %vm2550, %vm2551
  %v2553 = vsel %vm2552, %v2544, %v2549
  %v2554 = vrsqrt.pop %v2541
  %v2555 = vmul.f32 %v2554, %v2541
  %v2556 = vmul.f32 %v2555, %v2554
  %v2557 = vmul.f32 0.5, %v2556
  %v2558 = vsub.f32 1.5, %v2557
  %v2559 = vmul.f32 %v2554, %v2558
  %vm2560 = vweird.f32 %v2541
  %vm2561 = vweird.f32 %v2554
  %vm2562 = vmor %vm2560, %vm2561
  %v2563 = vsel %vm2562, %v2554, %v2559
  %v2564 = vrsqrt.pop %v2542
  %v2565 = vmul.f32 %v2564, %v2542
  %v2566 = vmul.f32 %v2565, %v2564
  %v2567 = vmul.f32 0.5, %v2566
  %v2568 = vsub.f32 1.5, %v2567
  %v2569 = vmul.f32 %v2564, %v2568
  %vm2570 = vweird.f32 %v2542
  %vm2571 = vweird.f32 %v2564
  %vm2572 = vmor %vm2570, %vm2571
  %v2573 = vsel %vm2572, %v2564, %v2569
  %v2574 = vrsqrt.pop %v2543
  %v2575 = vmul.f32 %v2574, %v2543
  %v2576 = vmul.f32 %v2575, %v2574
  %v2577 = vmul.f32 0.5, %v2576
  %v2578 = vsub.f32 1.5, %v2577
  %v2579 = vmul.f32 %v2574, %v2578
  %vm2580 = vweird.f32 %v2543
  %vm2581 = vweird.f32 %v2574
  %vm2582 = vmor %vm2580, %vm2581
  %v2583 = vsel %vm2582, %v2574, %v2579
  %v2584 = vmul.f32 %v2516, %v2553
  %v2585 = vmul.f32 %v2517, %v2563
  %v2586 = vmul.f32 %v2518, %v2573
  %v2587 = vmul.f32 %v2519, %v2583
  %v2588 = vmul.f32 %v2584, %v1474
  %v2589 = vmul.f32 %v2585, %v1474
  %v2590 = vmul.f32 %v2586, %v1474
  %v2591 = vmul.f32 %v2587, %v1474
  %v2592 = vadd.f32 %v2588, %v1475
  %v2593 = vadd.f32 %v2589, %v1475
  %v2594 = vadd.f32 %v2590, %v1475
  %v2595 = vadd.f32 %v2591, %v1475
  %v2596 = vpack.c.bf16 %v2593, %v2592
  %v2597 = vpack.c.bf16 %v2595, %v2594
  %v2606 = vunpack.c.l.b16 %v1443
  %v2607 = vunpack.c.l.b16 %v1444
  %v2608 = vunpack.c.l.b16 %v1445
  %v2609 = vunpack.c.l.b16 %v1446
  %v2610 = vunpack.c.l.b16 %v1447
  %v2611 = vunpack.c.l.b16 %v1448
  %v2612 = vunpack.c.l.b16 %v1449
  %v2613 = vunpack.c.l.b16 %v1450
  %v2614 = vpack.c.b16 %v2607, %v2606
  %v2615 = vpack.c.b16 %v2609, %v2608
  %v2616 = vpack.c.b16 %v2611, %v2610
  %v2617 = vpack.c.b16 %v2613, %v2612
  %v2623 = vsel %vm1476, %v2596, 0
  %v2626 = vsel %vm1476, %v2597, 0
  %2628 = vmatpush.bf16.msra.mxu0 0
  %2629 = vmatpush.bf16.msra.mxu0 0
  %2630 = vmatpush.bf16.msra.mxu0 0
  %2631 = vmatpush.bf16.msra.mxu0 0
  %2632 = vmatpush.bf16.msra.mxu0 %v2617
  %2633 = vmatpush.bf16.msra.mxu0 %v2616
  %2634 = vmatpush.bf16.msra.mxu0 %v2615
  %2635 = vmatpush.bf16.msra.mxu0 %v2614
  %2636 = vmatmul.bf16.gmra.mxu0 %v2623
  %v2637 = vpop.f32.mrf.mxu0
  %v2638 = vadd.f32 %v1472, %v2637
  %v2639 = vpop.f32.mrf.mxu0
  %v2640 = vadd.f32 %v1472, %v2639
  %2641 = vmatmul.bf16.gmra.mxu0 %v2626
  %v2642 = vpop.f32.mrf.mxu0
  %v2643 = vadd.f32 %v1472, %v2642
  %v2644 = vpop.f32.mrf.mxu0
  %v2645 = vadd.f32 %v1472, %v2644
  %2646 = vdwg.mxu0
  %v2647 = vmax.f32 %v2638, 0.0
  %v2648 = vmax.f32 %v2640, 0.0
  %v2649 = vmax.f32 %v2643, 0.0
  %v2650 = vmax.f32 %v2645, 0.0
  %v2651 = vpack.c.bf16 %v2648, %v2647
  %v2652 = vpack.c.bf16 %v2650, %v2649
  %v2669 = vunpack.c.l.b16 %v1451
  %v2670 = vunpack.c.l.b16 %v1452
  %v2671 = vunpack.c.l.b16 %v1453
  %v2672 = vunpack.c.l.b16 %v1454
  %v2673 = vunpack.c.l.b16 %v1455
  %v2674 = vunpack.c.l.b16 %v1456
  %v2675 = vunpack.c.l.b16 %v1457
  %v2676 = vunpack.c.l.b16 %v1458
  %v2677 = vunpack.c.l.b16 %v1459
  %v2678 = vunpack.c.l.b16 %v1460
  %v2679 = vunpack.c.l.b16 %v1461
  %v2680 = vunpack.c.l.b16 %v1462
  %v2681 = vunpack.c.l.b16 %v1463
  %v2682 = vunpack.c.l.b16 %v1464
  %v2683 = vunpack.c.l.b16 %v1465
  %v2684 = vunpack.c.l.b16 %v1466
  %v2685 = vpack.c.b16 %v2670, %v2669
  %v2686 = vpack.c.b16 %v2672, %v2671
  %v2687 = vpack.c.b16 %v2674, %v2673
  %v2688 = vpack.c.b16 %v2676, %v2675
  %v2689 = vpack.c.b16 %v2678, %v2677
  %v2690 = vpack.c.b16 %v2680, %v2679
  %v2691 = vpack.c.b16 %v2682, %v2681
  %v2692 = vpack.c.b16 %v2684, %v2683
  %2701 = vmatpush.bf16.msra.mxu0 %v2692
  %2702 = vmatpush.bf16.msra.mxu0 %v2691
  %2703 = vmatpush.bf16.msra.mxu0 %v2690
  %2704 = vmatpush.bf16.msra.mxu0 %v2689
  %2705 = vmatpush.bf16.msra.mxu0 %v2688
  %2706 = vmatpush.bf16.msra.mxu0 %v2687
  %2707 = vmatpush.bf16.msra.mxu0 %v2686
  %2708 = vmatpush.bf16.msra.mxu0 %v2685
  %2709 = vmatmul.bf16.gmra.mxu0 %v2651
  %v2710 = vpop.f32.mrf.mxu0
  %v2711 = vadd.f32 %v1473, %v2710
  %v2712 = vpop.f32.mrf.mxu0
  %v2713 = vadd.f32 %v1473, %v2712
  %2714 = vmatmul.bf16.gmra.mxu0 %v2652
  %v2715 = vpop.f32.mrf.mxu0
  %v2716 = vadd.f32 %v1473, %v2715
  %v2717 = vpop.f32.mrf.mxu0
  %v2718 = vadd.f32 %v1473, %v2717
  %2719 = vdwg.mxu0
  %v2720 = vadd.f32 %v2496, %v2711
  %v2721 = vadd.f32 %v2497, %v2713
  %v2722 = vadd.f32 %v2498, %v2716
  %v2723 = vadd.f32 %v2499, %v2718
  %v2724 = vld [vmem:[%s1 + $0x1b] ss:$0 sm:$0xff]
  %v2725 = vld [vmem:[%s1 + $0x1c] ss:$0 sm:$0xff]
  %v2726 = vsel %vm1476, %v2720, 0.0
  %2727 = vadd.xlane.f32.xlu0 %v2726
  %v2728 = vpop.xlane.xlu0 %2727
  %v2729 = vsel %vm1476, %v2721, 0.0
  %2730 = vadd.xlane.f32.xlu0 %v2729
  %v2731 = vpop.xlane.xlu0 %2730
  %v2732 = vsel %vm1476, %v2722, 0.0
  %2733 = vadd.xlane.f32.xlu0 %v2732
  %v2734 = vpop.xlane.xlu0 %2733
  %v2735 = vsel %vm1476, %v2723, 0.0
  %2736 = vadd.xlane.f32.xlu0 %v2735
  %v2737 = vpop.xlane.xlu0 %2736
  %v2738 = vmul.f32 %v2728, %v1495
  %v2739 = vmul.f32 %v2731, %v1495
  %v2740 = vmul.f32 %v2734, %v1495
  %v2741 = vmul.f32 %v2737, %v1495
  %v2742 = vsub.f32 %v2720, %v2738
  %v2743 = vsub.f32 %v2721, %v2739
  %v2744 = vsub.f32 %v2722, %v2740
  %v2745 = vsub.f32 %v2723, %v2741
  %v2746 = vmul.f32 %v2742, %v2742
  %v2747 = vmul.f32 %v2743, %v2743
  %v2748 = vmul.f32 %v2744, %v2744
  %v2749 = vmul.f32 %v2745, %v2745
  %v2750 = vsel %vm1476, %v2746, 0.0
  %2751 = vadd.xlane.f32.xlu0 %v2750
  %v2752 = vpop.xlane.xlu0 %2751
  %v2753 = vsel %vm1476, %v2747, 0.0
  %2754 = vadd.xlane.f32.xlu0 %v2753
  %v2755 = vpop.xlane.xlu0 %2754
  %v2756 = vsel %vm1476, %v2748, 0.0
  %2757 = vadd.xlane.f32.xlu0 %v2756
  %v2758 = vpop.xlane.xlu0 %2757
  %v2759 = vsel %vm1476, %v2749, 0.0
  %2760 = vadd.xlane.f32.xlu0 %v2759
  %v2761 = vpop.xlane.xlu0 %2760
  %v2762 = vmul.f32 %v2752, %v1495
  %v2763 = vmul.f32 %v2755, %v1495
  %v2764 = vmul.f32 %v2758, %v1495
  %v2765 = vmul.f32 %v2761, %v1495
  %v2766 = vadd.f32 %v2762, 1e-05
  %v2767 = vadd.f32 %v2763, 1e-05
  %v2768 = vadd.f32 %v2764, 1e-05
  %v2769 = vadd.f32 %v2765, 1e-05
  %v2770 = vrsqrt.pop %v2766
  %v2771 = vmul.f32 %v2770, %v2766
  %v2772 = vmul.f32 %v2771, %v2770
  %v2773 = vmul.f32 0.5, %v2772
  %v2774 = vsub.f32 1.5, %v2773
  %v2775 = vmul.f32 %v2770, %v2774
  %vm2776 = vweird.f32 %v2766
  %vm2777 = vweird.f32 %v2770
  %vm2778 = vmor %vm2776, %vm2777
  %v2779 = vsel %vm2778, %v2770, %v2775
  %v2780 = vrsqrt.pop %v2767
  %v2781 = vmul.f32 %v2780, %v2767
  %v2782 = vmul.f32 %v2781, %v2780
  %v2783 = vmul.f32 0.5, %v2782
  %v2784 = vsub.f32 1.5, %v2783
  %v2785 = vmul.f32 %v2780, %v2784
  %vm2786 = vweird.f32 %v2767
  %vm2787 = vweird.f32 %v2780
  %vm2788 = vmor %vm2786, %vm2787
  %v2789 = vsel %vm2788, %v2780, %v2785
  %v2790 = vrsqrt.pop %v2768
  %v2791 = vmul.f32 %v2790, %v2768
  %v2792 = vmul.f32 %v2791, %v2790
  %v2793 = vmul.f32 0.5, %v2792
  %v2794 = vsub.f32 1.5, %v2793
  %v2795 = vmul.f32 %v2790, %v2794
  %vm2796 = vweird.f32 %v2768
  %vm2797 = vweird.f32 %v2790
  %vm2798 = vmor %vm2796, %vm2797
  %v2799 = vsel %vm2798, %v2790, %v2795
  %v2800 = vrsqrt.pop %v2769
  %v2801 = vmul.f32 %v2800, %v2769
  %v2802 = vmul.f32 %v2801, %v2800
  %v2803 = vmul.f32 0.5, %v2802
  %v2804 = vsub.f32 1.5, %v2803
  %v2805 = vmul.f32 %v2800, %v2804
  %vm2806 = vweird.f32 %v2769
  %vm2807 = vweird.f32 %v2800
  %vm2808 = vmor %vm2806, %vm2807
  %v2809 = vsel %vm2808, %v2800, %v2805
  %v2810 = vmul.f32 %v2742, %v2779
  %v2811 = vmul.f32 %v2743, %v2789
  %v2812 = vmul.f32 %v2744, %v2799
  %v2813 = vmul.f32 %v2745, %v2809
  %v2814 = vmul.f32 %v2810, %v2724
  %v2815 = vmul.f32 %v2811, %v2724
  %v2816 = vmul.f32 %v2812, %v2724
  %v2817 = vmul.f32 %v2813, %v2724
  %v2818 = vadd.f32 %v2814, %v2725
  %v2819 = vadd.f32 %v2815, %v2725
  %v2820 = vadd.f32 %v2816, %v2725
  %v2821 = vadd.f32 %v2817, %v2725
  %2826 = vrot.lane.b32.xlu0 %v2818, 64
  %v2827 = vpop.permute.xlu0 %2826
  %2828 = vrot.lane.b32.xlu0 %v2819, 64
  %v2829 = vpop.permute.xlu0 %2828
  %2830 = vrot.lane.b32.xlu0 %v2820, 64
  %v2831 = vpop.permute.xlu0 %2830
  %2832 = vrot.lane.b32.xlu0 %v2821, 64
  %v2833 = vpop.permute.xlu0 %2832
  %v2838 = vsel %vm1476, %v1415, %v2827
  %v2839 = vsel %vm1476, %v1416, %v2829
  %v2840 = vsel %vm1476, %v1417, %v2831
  %v2841 = vsel %vm1476, %v1418, %v2833
  %2842 = vst [vmem:[%s9] sm:$0xff] %v2838
  %2843 = vst [vmem:[%s9 + $0x8] sm:$0xff] %v2839
  %2844 = vst [vmem:[%s9 + $0x10] sm:$0xff] %v2840
  %2845 = vst [vmem:[%s9 + $0x18] sm:$0xff] %v2841
  // Predicated region
  $region38: #{transformer_pointnet_sa_msg.3} parent=0 // pred_check
    _
  $region39: #{transformer_pointnet_sa_msg.3} parent=0 // pred_check_branch
    %2847 = sbr.rel (0) target = $region41
  $region40: #{transformer_pointnet_sa_msg.3} parent=0 // pred_region
    _
  $region41: #{transformer_pointnet_sa_msg.3} parent=0 // pred_fallthru
    _
  // Predicated region
  $region42: #{transformer_pointnet_sa_msg.3} parent=0 // pred_check
    _
  $region43: #{transformer_pointnet_sa_msg.3} parent=0 // pred_check_branch
    %2849 = sbr.rel (0) target = $region45
  $region44: #{transformer_pointnet_sa_msg.3} parent=0 // pred_region
    _
  $region45: #{transformer_pointnet_sa_msg.3} parent=0 // pred_fallthru
    _

</llo_original>
